<compile_context>
chip_gen: v6e
topology: v6e:2x2x1
jax: 0.10.0
libtpu: 0.0.40
codegen_flags: <defaults>
</compile_context>

<pallas_src>
import math

import numpy as np
import jax
import jax.numpy as jnp
from jax.experimental import pallas as pl
from jax.experimental.pallas import tpu as pltpu

# ----------------------------- model hyper-params -----------------------------
CH_IN = 3                       # input channels
NC = 4                          # number of classes
NO = NC + 5                     # outputs per anchor (9)
NA = 3                          # anchors per level
NL = 3                          # detection levels
IMG = 32                        # input resolution (square)
BACKBONE_CH = [8, 16, 32]       # channels of the 3 backbone stages
STRIDES = [2.0, 4.0, 8.0]       # what DetectionModel.__init__'s 256-px probe yields
ANCHORS_PX = [[(10.0, 13.0), (16.0, 30.0), (33.0, 23.0)],       # == anchors[i] * stride[i]
              [(30.0, 61.0), (62.0, 45.0), (59.0, 119.0)],
              [(116.0, 90.0), (156.0, 198.0), (373.0, 326.0)]]


def _rup(v, m):
    return ((v + m - 1) // m) * m


# static geometry of the reduced 3-stage backbone (k=3, s=2, p=1 each stage)
H_IN = [IMG >> s for s in range(NL)]                       # 32, 16, 8   input H per stage
OH = [IMG >> (s + 1) for s in range(NL)]                   # 16, 8, 4    output H / level size
C1S = [CH_IN] + BACKBONE_CH[:-1]                           # 3, 8, 16
C2S = BACKBONE_CH                                          # 8, 16, 32
KPAD = [_rup(H_IN[s] * C1S[s], 128) for s in range(NL)]    # 128, 128, 128  (matmul K)
NCONV = [OH[s] * C2S[s] for s in range(NL)]                # 128, 128, 128  (matmul N)
NXH = [_rup(OH[l] * NA * NO, 128) for l in range(NL)]      # 512, 256, 128  (head slab width)


# ------------------------------ the fused kernel -------------------------------
def _detection_kernel(x0_ref,
                      m0_ref, cb0_ref, m1_ref, cb1_ref, m2_ref, cb2_ref,
                      wh0_ref, bh0_ref, wh1_ref, bh1_ref, wh2_ref, bh2_ref,
                      p0_ref, y0_ref, p1_ref, y1_ref, p2_ref, y2_ref,
                      buf1, buf2):
    """One grid step = one image. All activations stay in VMEM / vregs."""
    f32, bf16 = jnp.float32, jnp.bfloat16

    def conv_stage(x_d0, x_d1, x_d2, m_ref, cb_ref):
        # Conv(k=3, s=2, p=1) + folded BN + SiLU as 3 dense (OH,128)x(128,128) matmuls:
        # the W-direction im2col + stride is folded into m_ref at init, the 3 H-taps are
        # the (contiguous) parity-split rows passed in as x_d0/x_d1/x_d2.
        acc = jnp.dot(x_d0.astype(bf16), m_ref[0], preferred_element_type=f32)
        acc = acc + jnp.dot(x_d1.astype(bf16), m_ref[1], preferred_element_type=f32)
        acc = acc + jnp.dot(x_d2.astype(bf16), m_ref[2], preferred_element_type=f32)
        acc = acc + cb_ref[...]
        return acc * pl.reciprocal(1.0 + jnp.exp(-acc), approx=True)      # SiLU

    def scatter_rows(feat, dst_ref):
        # Write activated feature rows into the next stage's parity-split padded-H buffer:
        # feature row oy is padded row (oy+1) -> buffer [parity, slot].  Full 128-lane rows.
        dst_ref[0, 0:1, :] = jnp.zeros((1, feat.shape[1]), f32)           # top padding row
        for oy in range(feat.shape[0]):
            r = oy + 1
            dst_ref[r % 2, r // 2:r // 2 + 1, :] = feat[oy:oy + 1, :]

    def head_decode(feat, wh_ref, bh_ref, p_ref, y_ref, nx, stride, anchors):
        # Fused Detect 1x1 conv + eval decode for one level / one image.  Slab columns are
        # ordered (a, o, gx): col = (a*NO + o)*nx + gx, zero-padded to a multiple of 128.
        p = jnp.dot(feat.astype(bf16), wh_ref[...], preferred_element_type=f32) + bh_ref[...]
        p_ref[0] = p                                                      # raw head output
        gy = jax.lax.broadcasted_iota(jnp.int32, p.shape, 0)              # grid y == row idx
        col = jax.lax.broadcasted_iota(jnp.int32, p.shape, 1)
        gx = jnp.bitwise_and(col, nx - 1)                                 # nx is a power of 2
        j = jnp.right_shift(col, int(math.log2(nx)))                      # j = a*NO + o
        a1 = (j >= NO).astype(jnp.int32)
        a2 = (j >= 2 * NO).astype(jnp.int32)
        o = j - NO * (a1 + a2)                                            # channel within anchor
        s = pl.reciprocal(1.0 + jnp.exp(-p), approx=True)                 # sigmoid (EUP)
        g = jnp.where(o == 0, gx, gy).astype(f32) - 0.5                   # Detect._make_grid
        xy = (s * 2.0 + g) * stride
        aw = jnp.where(a2 == 1, anchors[2][0],
                       jnp.where(a1 == 1, anchors[1][0], anchors[0][0]))
        ah = jnp.where(a2 == 1, anchors[2][1],
                       jnp.where(a1 == 1, anchors[1][1], anchors[0][1]))
        t = s * 2.0
        wh = t * t * jnp.where(o == 2, aw, ah)
        y_ref[0] = jnp.where(o < 2, xy, jnp.where(o < 4, wh, s))

    # ---- backbone stage 0 (3 -> 8 ch, 32 -> 16) + detect level 0 ----
    f0 = conv_stage(x0_ref[0, 0, 0:OH[0], :],
                    x0_ref[0, 1, 0:OH[0], :],
                    x0_ref[0, 0, 1:OH[0] + 1, :], m0_ref, cb0_ref)        # (16, 128)
    head_decode(f0, wh0_ref, bh0_ref, p0_ref, y0_ref, OH[0], STRIDES[0], ANCHORS_PX[0])

    # ---- backbone stage 1 (8 -> 16 ch, 16 -> 8) + detect level 1 ----
    scatter_rows(f0, buf1)
    f1 = conv_stage(buf1[0, 0:OH[1], :],
                    buf1[1, 0:OH[1], :],
                    buf1[0, 1:OH[1] + 1, :], m1_ref, cb1_ref)             # (8, 128)
    head_decode(f1, wh1_ref, bh1_ref, p1_ref, y1_ref, OH[1], STRIDES[1], ANCHORS_PX[1])

    # ---- backbone stage 2 (16 -> 32 ch, 8 -> 4) + detect level 2 ----
    scatter_rows(f1, buf2)
    f2 = conv_stage(buf2[0, 0:OH[2], :],
                    buf2[1, 0:OH[2], :],
                    buf2[0, 1:OH[2] + 1, :], m2_ref, cb2_ref)             # (4, 128)
    head_decode(f2, wh2_ref, bh2_ref, p2_ref, y2_ref, OH[2], STRIDES[2], ANCHORS_PX[2])


# ------------------------------ wrapper (plain JAX) -----------------------------
def _prepare_input(x):
    """NCHW -> H-padded, H-parity-split, channels-last rows: (B, 2, (H+2)//2, KPAD[0]).

    Row r holds the flat (w-major, c-minor) feature row of padded-H row r; the W padding
    is folded into the conv matrices (the left-pad column simply contributes zero)."""
    b, c, h, w = x.shape
    rows = jnp.transpose(x, (0, 2, 3, 1)).reshape(b, h, w * c)          # channels-last rows
    rows = jnp.pad(rows, ((0, 0), (1, 1), (0, KPAD[0] - w * c)))         # H pad + lane pad
    return jnp.stack([rows[:, 0::2, :], rows[:, 1::2, :]], axis=1)


def detection_model_forward(params, x):
    """DetectionModel._forward_once + Detect.forward (eval, non-export).

    Returns (z, raw): z (bs, sum_l na*ny_l*nx_l, no); raw = [(bs, na, ny, nx, no)]*NL."""
    b = x.shape[0]
    x0 = _prepare_input(x)

    out_shape, out_specs = [], []
    for l in range(NL):
        for _ in range(2):                                  # raw slab, decoded slab
            out_shape.append(jax.ShapeDtypeStruct((b, OH[l], NXH[l]), jnp.float32))
            out_specs.append(pl.BlockSpec((1, OH[l], NXH[l]), lambda i: (i, 0, 0)))

    in_specs = [pl.BlockSpec((1, 2, (IMG + 2) // 2, KPAD[0]), lambda i: (i, 0, 0, 0))]
    in_arrays = [x0]
    for s in range(NL):
        in_specs += [pl.BlockSpec((3, KPAD[s], NCONV[s]), lambda i: (0, 0, 0)),
                     pl.BlockSpec((1, NCONV[s]), lambda i: (0, 0))]
        in_arrays += [params[f'M{s}'], params[f'cb{s}']]
    for l in range(NL):
        in_specs += [pl.BlockSpec((NCONV[l], NXH[l]), lambda i: (0, 0)),
                     pl.BlockSpec((1, NXH[l]), lambda i: (0, 0))]
        in_arrays += [params[f'Wh{l}'], params[f'bh{l}']]

    outs = pl.pallas_call(
        _detection_kernel,
        out_shape=tuple(out_shape),
        grid_spec=pltpu.PrefetchScalarGridSpec(
            num_scalar_prefetch=0,
            grid=(b,),
            in_specs=in_specs,
            out_specs=out_specs,
            scratch_shapes=[pltpu.VMEM((2, (H_IN[1] + 2) // 2, KPAD[1]), jnp.float32),
                            pltpu.VMEM((2, (H_IN[2] + 2) // 2, KPAD[2]), jnp.float32)]),
        compiler_params=pltpu.CompilerParams(dimension_semantics=("parallel",)),
    )(*in_arrays)

    def slab_to_head(t, ny, nx):
        # slab columns are (a, o, gx); produce (bs, na, ny, nx, no) like view+permute
        t = t[:, :, :NA * NO * nx].reshape(b, ny, NA, NO, nx)
        return jnp.transpose(t, (0, 2, 1, 4, 3))

    z, raw = [], []
    for l in range(NL):
        ny = nx = OH[l]
        raw.append(slab_to_head(outs[2 * l], ny, nx))
        z.append(slab_to_head(outs[2 * l + 1], ny, nx).reshape(b, NA * ny * nx, NO))
    return jnp.concatenate(z, axis=1), raw


# ------------------------------ deterministic init -----------------------------
def init_params(key):
    """Synthetic deterministic weights, pre-packed for the fused kernel:

      M{s}  (3, 128, 128)  bf16 : per-H-tap conv matrices with the stride-2 W-direction
                                  im2col and the identity-BN fold baked in at init time.
      cb{s} (1, 128)       f32  : fused Conv+BN bias, tiled across the output row.
      Wh{l} (128, NXH)     bf16 : block-diagonal expansion of the Detect 1x1 conv.
      bh{l} (1, NXH)       f32  : Detect bias (per _initialize_biases, cf=None), tiled.
    """
    keys = jax.random.split(key, 2 * NL)
    bn_scale = 1.0 / math.sqrt(1.0 + 1e-3)       # identity BatchNorm (eps=1e-3) folded in
    params = {}
    for s in range(NL):
        c1, c2, ow, w_in = C1S[s], C2S[s], OH[s], H_IN[s]
        w = np.asarray(jax.random.normal(keys[s], (c2, c1, 3, 3), jnp.float32))
        w = w * math.sqrt(2.0 / (c1 * 9)) * bn_scale
        m = np.zeros((3, KPAD[s], ow * c2), np.float32)
        for dy in range(3):
            for ox in range(ow):
                for dx in range(3):
                    wi = 2 * ox + dx - 1                     # unpadded input column index
                    if 0 <= wi < w_in:                       # wi == -1 is the zero left pad
                        m[dy, wi * c1:(wi + 1) * c1, ox * c2:(ox + 1) * c2] = w[:, :, dy, dx].T
        params[f'M{s}'] = jnp.asarray(m, jnp.bfloat16)
        params[f'cb{s}'] = jnp.zeros((1, ow * c2), jnp.float32)    # bias-free conv + BN beta=0
    for l in range(NL):
        c, nx = C2S[l], OH[l]
        whead = np.asarray(jax.random.normal(keys[NL + l], (NA * NO, c), jnp.float32))
        whead = whead * math.sqrt(1.0 / c)
        # Detect bias init per DetectionModel._initialize_biases (cf=None)
        bh = np.zeros((NA, NO), np.float32)
        bh[:, 4] += math.log(8.0 / (640.0 / STRIDES[l]) ** 2)
        bh[:, 5:5 + NC] += math.log(0.6 / (NC - 0.99999))
        bh = bh.reshape(-1)
        wb = np.zeros((nx * c, NXH[l]), np.float32)
        bhb = np.zeros((1, NXH[l]), np.float32)
        for jj in range(NA * NO):
            bhb[0, jj * nx:(jj + 1) * nx] = bh[jj]
            for g in range(nx):
                wb[g * c:(g + 1) * c, jj * nx + g] = whead[jj, :]
        params[f'Wh{l}'] = jnp.asarray(wb, jnp.bfloat16)
        params[f'bh{l}'] = jnp.asarray(bhb, jnp.float32)
    return params


# ------------------------------------ main --------------------------------------
if __name__ == "__main__":
    key = jax.random.PRNGKey(0)
    pkey, xkey = jax.random.split(key)
    params = init_params(pkey)
    x = jax.random.normal(xkey, (2, CH_IN, IMG, IMG), jnp.float32)   # NCHW, like PyTorch

    fwd = jax.jit(detection_model_forward)
    z, raw = fwd(params, x)
    jax.block_until_ready(z)
    for r in raw:
        jax.block_until_ready(r)

    expected_rows = NA * sum(s * s for s in OH)
    assert z.shape == (2, expected_rows, NO), z.shape
    assert raw[0].shape == (2, NA, 16, 16, NO), raw[0].shape
    assert raw[1].shape == (2, NA, 8, 8, NO), raw[1].shape
    assert raw[2].shape == (2, NA, 4, 4, NO), raw[2].shape
    assert bool(jnp.all(jnp.isfinite(z)))
    print("KERNEL_OK")
</pallas_src>

<mosaic_0001>
module attributes {stable_mosaic.version = 11 : i64} {
  func.func @_detection_kernel(%arg0: i32, %arg1: memref<1x2x17x128xf32, #tpu.memory_space<vmem>>, %arg2: memref<3x128x128xbf16, #tpu.memory_space<vmem>>, %arg3: memref<1x128xf32, #tpu.memory_space<vmem>>, %arg4: memref<3x128x128xbf16, #tpu.memory_space<vmem>>, %arg5: memref<1x128xf32, #tpu.memory_space<vmem>>, %arg6: memref<3x128x128xbf16, #tpu.memory_space<vmem>>, %arg7: memref<1x128xf32, #tpu.memory_space<vmem>>, %arg8: memref<128x512xbf16, #tpu.memory_space<vmem>>, %arg9: memref<1x512xf32, #tpu.memory_space<vmem>>, %arg10: memref<128x256xbf16, #tpu.memory_space<vmem>>, %arg11: memref<1x256xf32, #tpu.memory_space<vmem>>, %arg12: memref<128x128xbf16, #tpu.memory_space<vmem>>, %arg13: memref<1x128xf32, #tpu.memory_space<vmem>>, %arg14: memref<1x16x512xf32, #tpu.memory_space<vmem>>, %arg15: memref<1x16x512xf32, #tpu.memory_space<vmem>>, %arg16: memref<1x8x256xf32, #tpu.memory_space<vmem>>, %arg17: memref<1x8x256xf32, #tpu.memory_space<vmem>>, %arg18: memref<1x4x128xf32, #tpu.memory_space<vmem>>, %arg19: memref<1x4x128xf32, #tpu.memory_space<vmem>>, %arg20: memref<2x9x128xf32, #tpu.memory_space<vmem>>, %arg21: memref<2x5x128xf32, #tpu.memory_space<vmem>>) attributes {dimension_semantics = [#tpu.dimension_semantics<parallel>], iteration_bounds = array<i64: 2>, scalar_prefetch = 0 : i64, scratch_operands = 2 : i64, tpu.core_type = #tpu.core_type<tc>, window_params = [{transform_indices = @transform_0, window_bounds = array<i64: 1, 2, 17, 128>}, {pipeline_mode = #tpu.pipeline_mode<synchronous>, transform_indices = @transform_1, window_bounds = array<i64: 3, 128, 128>}, {pipeline_mode = #tpu.pipeline_mode<synchronous>, transform_indices = @transform_2, window_bounds = array<i64: 1, 128>}, {pipeline_mode = #tpu.pipeline_mode<synchronous>, transform_indices = @transform_3, window_bounds = array<i64: 3, 128, 128>}, {pipeline_mode = #tpu.pipeline_mode<synchronous>, transform_indices = @transform_4, window_bounds = array<i64: 1, 128>}, {pipeline_mode = #tpu.pipeline_mode<synchronous>, transform_indices = @transform_5, window_bounds = array<i64: 3, 128, 128>}, {pipeline_mode = #tpu.pipeline_mode<synchronous>, transform_indices = @transform_6, window_bounds = array<i64: 1, 128>}, {pipeline_mode = #tpu.pipeline_mode<synchronous>, transform_indices = @transform_7, window_bounds = array<i64: 128, 512>}, {pipeline_mode = #tpu.pipeline_mode<synchronous>, transform_indices = @transform_8, window_bounds = array<i64: 1, 512>}, {pipeline_mode = #tpu.pipeline_mode<synchronous>, transform_indices = @transform_9, window_bounds = array<i64: 128, 256>}, {pipeline_mode = #tpu.pipeline_mode<synchronous>, transform_indices = @transform_10, window_bounds = array<i64: 1, 256>}, {pipeline_mode = #tpu.pipeline_mode<synchronous>, transform_indices = @transform_11, window_bounds = array<i64: 128, 128>}, {pipeline_mode = #tpu.pipeline_mode<synchronous>, transform_indices = @transform_12, window_bounds = array<i64: 1, 128>}, {transform_indices = @transform_13, window_bounds = array<i64: 1, 16, 512>}, {transform_indices = @transform_14, window_bounds = array<i64: 1, 16, 512>}, {transform_indices = @transform_15, window_bounds = array<i64: 1, 8, 256>}, {transform_indices = @transform_16, window_bounds = array<i64: 1, 8, 256>}, {transform_indices = @transform_17, window_bounds = array<i64: 1, 4, 128>}, {transform_indices = @transform_18, window_bounds = array<i64: 1, 4, 128>}]} {
    %c0 = arith.constant 0 : index
    %c0_0 = arith.constant 0 : index
    %c0_1 = arith.constant 0 : index
    %c0_2 = arith.constant 0 : index
    %0 = vector.load %arg1[%c0, %c0_0, %c0_1, %c0_2] : memref<1x2x17x128xf32, #tpu.memory_space<vmem>>, vector<1x1x16x128xf32>
    %1 = vector.shape_cast %0 : vector<1x1x16x128xf32> to vector<16x128xf32>
    %c0_3 = arith.constant 0 : index
    %c1 = arith.constant 1 : index
    %c0_4 = arith.constant 0 : index
    %c0_5 = arith.constant 0 : index
    %2 = vector.load %arg1[%c0_3, %c1, %c0_4, %c0_5] : memref<1x2x17x128xf32, #tpu.memory_space<vmem>>, vector<1x1x16x128xf32>
    %3 = vector.shape_cast %2 : vector<1x1x16x128xf32> to vector<16x128xf32>
    %c0_6 = arith.constant 0 : index
    %c0_7 = arith.constant 0 : index
    %c1_8 = arith.constant 1 : index
    %c0_9 = arith.constant 0 : index
    %4 = vector.load %arg1[%c0_6, %c0_7, %c1_8, %c0_9] : memref<1x2x17x128xf32, #tpu.memory_space<vmem>>, vector<1x1x16x128xf32>
    %5 = vector.shape_cast %4 : vector<1x1x16x128xf32> to vector<16x128xf32>
    %6 = arith.truncf %1 : vector<16x128xf32> to vector<16x128xbf16>
    %c0_10 = arith.constant 0 : index
    %c0_11 = arith.constant 0 : index
    %c0_12 = arith.constant 0 : index
    %7 = vector.load %arg2[%c0_10, %c0_11, %c0_12] : memref<3x128x128xbf16, #tpu.memory_space<vmem>>, vector<1x128x128xbf16>
    %8 = vector.shape_cast %7 : vector<1x128x128xbf16> to vector<128x128xbf16>
    %cst = arith.constant dense<0.000000e+00> : vector<16x128xf32>
    %9 = tpu.matmul %6, %8, %cst {dimension_numbers = #tpu.dot_dimension_numbers<[1], [0], [0], [1], [0, 0, 1, 1], [], []>} : vector<16x128xbf16>, vector<128x128xbf16>, vector<16x128xf32> -> vector<16x128xf32>
    %10 = arith.truncf %3 : vector<16x128xf32> to vector<16x128xbf16>
    %c1_13 = arith.constant 1 : index
    %c0_14 = arith.constant 0 : index
    %c0_15 = arith.constant 0 : index
    %11 = vector.load %arg2[%c1_13, %c0_14, %c0_15] : memref<3x128x128xbf16, #tpu.memory_space<vmem>>, vector<1x128x128xbf16>
    %12 = vector.shape_cast %11 : vector<1x128x128xbf16> to vector<128x128xbf16>
    %cst_16 = arith.constant dense<0.000000e+00> : vector<16x128xf32>
    %13 = tpu.matmul %10, %12, %cst_16 {dimension_numbers = #tpu.dot_dimension_numbers<[1], [0], [0], [1], [0, 0, 1, 1], [], []>} : vector<16x128xbf16>, vector<128x128xbf16>, vector<16x128xf32> -> vector<16x128xf32>
    %14 = arith.addf %9, %13 : vector<16x128xf32>
    %15 = arith.truncf %5 : vector<16x128xf32> to vector<16x128xbf16>
    %c2 = arith.constant 2 : index
    %c0_17 = arith.constant 0 : index
    %c0_18 = arith.constant 0 : index
    %16 = vector.load %arg2[%c2, %c0_17, %c0_18] : memref<3x128x128xbf16, #tpu.memory_space<vmem>>, vector<1x128x128xbf16>
    %17 = vector.shape_cast %16 : vector<1x128x128xbf16> to vector<128x128xbf16>
    %cst_19 = arith.constant dense<0.000000e+00> : vector<16x128xf32>
    %18 = tpu.matmul %15, %17, %cst_19 {dimension_numbers = #tpu.dot_dimension_numbers<[1], [0], [0], [1], [0, 0, 1, 1], [], []>} : vector<16x128xbf16>, vector<128x128xbf16>, vector<16x128xf32> -> vector<16x128xf32>
    %19 = arith.addf %14, %18 : vector<16x128xf32>
    %c0_20 = arith.constant 0 : index
    %c0_21 = arith.constant 0 : index
    %20 = vector.load %arg3[%c0_20, %c0_21] : memref<1x128xf32, #tpu.memory_space<vmem>>, vector<1x128xf32>
    %21 = vector.broadcast %20 : vector<1x128xf32> to vector<16x128xf32>
    %22 = arith.addf %19, %21 : vector<16x128xf32>
    %cst_22 = arith.constant 0.000000e+00 : f32
    %23 = vector.broadcast %cst_22 : f32 to vector<16x128xf32>
    %24 = arith.subf %23, %22 : vector<16x128xf32>
    %25 = math.exp %24 : vector<16x128xf32>
    %cst_23 = arith.constant 1.000000e+00 : f32
    %26 = vector.broadcast %cst_23 : f32 to vector<16x128xf32>
    %27 = arith.addf %26, %25 : vector<16x128xf32>
    %28 = tpu.reciprocal %27 {approx = true} : vector<16x128xf32> -> vector<16x128xf32>
    %29 = arith.mulf %22, %28 : vector<16x128xf32>
    %30 = arith.truncf %29 : vector<16x128xf32> to vector<16x128xbf16>
    %c0_24 = arith.constant 0 : index
    %c0_25 = arith.constant 0 : index
    %31 = vector.load %arg8[%c0_24, %c0_25] : memref<128x512xbf16, #tpu.memory_space<vmem>>, vector<128x512xbf16>
    %cst_26 = arith.constant dense<0.000000e+00> : vector<16x512xf32>
    %32 = tpu.matmul %30, %31, %cst_26 {dimension_numbers = #tpu.dot_dimension_numbers<[1], [0], [0], [1], [0, 0, 1, 1], [], []>} : vector<16x128xbf16>, vector<128x512xbf16>, vector<16x512xf32> -> vector<16x512xf32>
    %c0_27 = arith.constant 0 : index
    %c0_28 = arith.constant 0 : index
    %33 = vector.load %arg9[%c0_27, %c0_28] : memref<1x512xf32, #tpu.memory_space<vmem>>, vector<1x512xf32>
    %34 = vector.broadcast %33 : vector<1x512xf32> to vector<16x512xf32>
    %35 = arith.addf %32, %34 : vector<16x512xf32>
    %c0_29 = arith.constant 0 : index
    %c0_30 = arith.constant 0 : index
    %c0_31 = arith.constant 0 : index
    %36 = vector.load %arg14[%c0_29, %c0_30, %c0_31] : memref<1x16x512xf32, #tpu.memory_space<vmem>>, vector<1x16x512xf32>
    %37 = vector.shape_cast %36 : vector<1x16x512xf32> to vector<16x512xf32>
    %38 = vector.shape_cast %35 : vector<16x512xf32> to vector<1x16x512xf32>
    tpu.vector_store %arg14[%c0_29, %c0_30, %c0_31], %38 {strides = array<i32>} : memref<1x16x512xf32, #tpu.memory_space<vmem>>, vector<1x16x512xf32>,
    %39 = tpu.iota {dimensions = array<i32: 0>} : vector<16x512xi32>
    %40 = tpu.iota {dimensions = array<i32: 1>} : vector<16x512xi32>
    %c15_i32 = arith.constant 15 : i32
    %41 = vector.broadcast %c15_i32 : i32 to vector<16x512xi32>
    %42 = arith.andi %40, %41 : vector<16x512xi32>
    %c4_i32 = arith.constant 4 : i32
    %43 = vector.broadcast %c4_i32 : i32 to vector<16x512xi32>
    %44 = arith.shrsi %40, %43 : vector<16x512xi32>
    %c9_i32 = arith.constant 9 : i32
    %45 = vector.broadcast %c9_i32 : i32 to vector<16x512xi32>
    %46 = arith.cmpi sge, %44, %45 : vector<16x512xi32>
    %47 = arith.extui %46 : vector<16x512xi1> to vector<16x512xi32>
    %c18_i32 = arith.constant 18 : i32
    %48 = vector.broadcast %c18_i32 : i32 to vector<16x512xi32>
    %49 = arith.cmpi sge, %44, %48 : vector<16x512xi32>
    %50 = arith.extui %49 : vector<16x512xi1> to vector<16x512xi32>
    %51 = arith.addi %47, %50 : vector<16x512xi32>
    %c9_i32_32 = arith.constant 9 : i32
    %52 = vector.broadcast %c9_i32_32 : i32 to vector<16x512xi32>
    %53 = arith.muli %52, %51 : vector<16x512xi32>
    %54 = arith.subi %44, %53 : vector<16x512xi32>
    %cst_33 = arith.constant 0.000000e+00 : f32
    %55 = vector.broadcast %cst_33 : f32 to vector<16x512xf32>
    %56 = arith.subf %55, %35 : vector<16x512xf32>
    %57 = math.exp %56 : vector<16x512xf32>
    %cst_34 = arith.constant 1.000000e+00 : f32
    %58 = vector.broadcast %cst_34 : f32 to vector<16x512xf32>
    %59 = arith.addf %58, %57 : vector<16x512xf32>
    %60 = tpu.reciprocal %59 {approx = true} : vector<16x512xf32> -> vector<16x512xf32>
    %c0_i32 = arith.constant 0 : i32
    %61 = vector.broadcast %c0_i32 : i32 to vector<16x512xi32>
    %62 = arith.cmpi eq, %54, %61 : vector<16x512xi32>
    %63 = arith.select %62, %42, %39 : vector<16x512xi1>, vector<16x512xi32>
    %64 = arith.sitofp %63 : vector<16x512xi32> to vector<16x512xf32>
    %cst_35 = arith.constant 5.000000e-01 : f32
    %65 = vector.broadcast %cst_35 : f32 to vector<16x512xf32>
    %66 = arith.subf %64, %65 : vector<16x512xf32>
    %cst_36 = arith.constant 2.000000e+00 : f32
    %67 = vector.broadcast %cst_36 : f32 to vector<16x512xf32>
    %68 = arith.mulf %60, %67 : vector<16x512xf32>
    %69 = arith.addf %68, %66 : vector<16x512xf32>
    %cst_37 = arith.constant 2.000000e+00 : f32
    %70 = vector.broadcast %cst_37 : f32 to vector<16x512xf32>
    %71 = arith.mulf %69, %70 : vector<16x512xf32>
    %c1_i32 = arith.constant 1 : i32
    %72 = vector.broadcast %c1_i32 : i32 to vector<16x512xi32>
    %73 = arith.cmpi eq, %50, %72 : vector<16x512xi32>
    %c1_i32_38 = arith.constant 1 : i32
    %74 = vector.broadcast %c1_i32_38 : i32 to vector<16x512xi32>
    %75 = arith.cmpi eq, %47, %74 : vector<16x512xi32>
    %cst_39 = arith.constant 1.600000e+01 : f32
    %cst_40 = arith.constant 1.000000e+01 : f32
    %76 = vector.broadcast %cst_39 : f32 to vector<16x512xf32>
    %77 = vector.broadcast %cst_40 : f32 to vector<16x512xf32>
    %78 = arith.select %75, %76, %77 : vector<16x512xi1>, vector<16x512xf32>
    %cst_41 = arith.constant 3.300000e+01 : f32
    %79 = vector.broadcast %cst_41 : f32 to vector<16x512xf32>
    %80 = arith.select %73, %79, %78 : vector<16x512xi1>, vector<16x512xf32>
    %c1_i32_42 = arith.constant 1 : i32
    %81 = vector.broadcast %c1_i32_42 : i32 to vector<16x512xi32>
    %82 = arith.cmpi eq, %50, %81 : vector<16x512xi32>
    %c1_i32_43 = arith.constant 1 : i32
    %83 = vector.broadcast %c1_i32_43 : i32 to vector<16x512xi32>
    %84 = arith.cmpi eq, %47, %83 : vector<16x512xi32>
    %cst_44 = arith.constant 3.000000e+01 : f32
    %cst_45 = arith.constant 1.300000e+01 : f32
    %85 = vector.broadcast %cst_44 : f32 to vector<16x512xf32>
    %86 = vector.broadcast %cst_45 : f32 to vector<16x512xf32>
    %87 = arith.select %84, %85, %86 : vector<16x512xi1>, vector<16x512xf32>
    %cst_46 = arith.constant 2.300000e+01 : f32
    %88 = vector.broadcast %cst_46 : f32 to vector<16x512xf32>
    %89 = arith.select %82, %88, %87 : vector<16x512xi1>, vector<16x512xf32>
    %cst_47 = arith.constant 2.000000e+00 : f32
    %90 = vector.broadcast %cst_47 : f32 to vector<16x512xf32>
    %91 = arith.mulf %60, %90 : vector<16x512xf32>
    %92 = arith.mulf %91, %91 : vector<16x512xf32>
    %c2_i32 = arith.constant 2 : i32
    %93 = vector.broadcast %c2_i32 : i32 to vector<16x512xi32>
    %94 = arith.cmpi eq, %54, %93 : vector<16x512xi32>
    %95 = arith.select %94, %80, %89 : vector<16x512xi1>, vector<16x512xf32>
    %96 = arith.mulf %92, %95 : vector<16x512xf32>
    %c2_i32_48 = arith.constant 2 : i32
    %97 = vector.broadcast %c2_i32_48 : i32 to vector<16x512xi32>
    %98 = arith.cmpi slt, %54, %97 : vector<16x512xi32>
    %c4_i32_49 = arith.constant 4 : i32
    %99 = vector.broadcast %c4_i32_49 : i32 to vector<16x512xi32>
    %100 = arith.cmpi slt, %54, %99 : vector<16x512xi32>
    %101 = arith.select %100, %96, %60 : vector<16x512xi1>, vector<16x512xf32>
    %102 = arith.select %98, %71, %101 : vector<16x512xi1>, vector<16x512xf32>
    %c0_50 = arith.constant 0 : index
    %c0_51 = arith.constant 0 : index
    %c0_52 = arith.constant 0 : index
    %103 = vector.load %arg15[%c0_50, %c0_51, %c0_52] : memref<1x16x512xf32, #tpu.memory_space<vmem>>, vector<1x16x512xf32>
    %104 = vector.shape_cast %103 : vector<1x16x512xf32> to vector<16x512xf32>
    %105 = vector.shape_cast %102 : vector<16x512xf32> to vector<1x16x512xf32>
    tpu.vector_store %arg15[%c0_50, %c0_51, %c0_52], %105 {strides = array<i32>} : memref<1x16x512xf32, #tpu.memory_space<vmem>>, vector<1x16x512xf32>,
    %cst_53 = arith.constant 0.000000e+00 : f32
    %106 = vector.broadcast %cst_53 : f32 to vector<1x128xf32>
    %c0_54 = arith.constant 0 : index
    %c0_55 = arith.constant 0 : index
    %c0_56 = arith.constant 0 : index
    %107 = vector.load %arg20[%c0_54, %c0_55, %c0_56] : memref<2x9x128xf32, #tpu.memory_space<vmem>>, vector<1x1x128xf32>
    %108 = vector.shape_cast %107 : vector<1x1x128xf32> to vector<1x128xf32>
    %109 = vector.shape_cast %106 : vector<1x128xf32> to vector<1x1x128xf32>
    tpu.vector_store %arg20[%c0_54, %c0_55, %c0_56], %109 {strides = array<i32>} : memref<2x9x128xf32, #tpu.memory_space<vmem>>, vector<1x1x128xf32>,
    %110 = vector.extract_strided_slice %29 {offsets = [0, 0], sizes = [1, 128], strides = [1, 1]} : vector<16x128xf32> to vector<1x128xf32>
    %c1_57 = arith.constant 1 : index
    %c0_58 = arith.constant 0 : index
    %c0_59 = arith.constant 0 : index
    %111 = vector.load %arg20[%c1_57, %c0_58, %c0_59] : memref<2x9x128xf32, #tpu.memory_space<vmem>>, vector<1x1x128xf32>
    %112 = vector.shape_cast %111 : vector<1x1x128xf32> to vector<1x128xf32>
    %113 = vector.shape_cast %110 : vector<1x128xf32> to vector<1x1x128xf32>
    tpu.vector_store %arg20[%c1_57, %c0_58, %c0_59], %113 {strides = array<i32>} : memref<2x9x128xf32, #tpu.memory_space<vmem>>, vector<1x1x128xf32>,
    %114 = vector.extract_strided_slice %29 {offsets = [1, 0], sizes = [1, 128], strides = [1, 1]} : vector<16x128xf32> to vector<1x128xf32>
    %c0_60 = arith.constant 0 : index
    %c1_61 = arith.constant 1 : index
    %c0_62 = arith.constant 0 : index
    %115 = vector.load %arg20[%c0_60, %c1_61, %c0_62] : memref<2x9x128xf32, #tpu.memory_space<vmem>>, vector<1x1x128xf32>
    %116 = vector.shape_cast %115 : vector<1x1x128xf32> to vector<1x128xf32>
    %117 = vector.shape_cast %114 : vector<1x128xf32> to vector<1x1x128xf32>
    tpu.vector_store %arg20[%c0_60, %c1_61, %c0_62], %117 {strides = array<i32>} : memref<2x9x128xf32, #tpu.memory_space<vmem>>, vector<1x1x128xf32>,
    %118 = vector.extract_strided_slice %29 {offsets = [2, 0], sizes = [1, 128], strides = [1, 1]} : vector<16x128xf32> to vector<1x128xf32>
    %c1_63 = arith.constant 1 : index
    %c1_64 = arith.constant 1 : index
    %c0_65 = arith.constant 0 : index
    %119 = vector.load %arg20[%c1_63, %c1_64, %c0_65] : memref<2x9x128xf32, #tpu.memory_space<vmem>>, vector<1x1x128xf32>
    %120 = vector.shape_cast %119 : vector<1x1x128xf32> to vector<1x128xf32>
    %121 = vector.shape_cast %118 : vector<1x128xf32> to vector<1x1x128xf32>
    tpu.vector_store %arg20[%c1_63, %c1_64, %c0_65], %121 {strides = array<i32>} : memref<2x9x128xf32, #tpu.memory_space<vmem>>, vector<1x1x128xf32>,
    %122 = vector.extract_strided_slice %29 {offsets = [3, 0], sizes = [1, 128], strides = [1, 1]} : vector<16x128xf32> to vector<1x128xf32>
    %c0_66 = arith.constant 0 : index
    %c2_67 = arith.constant 2 : index
    %c0_68 = arith.constant 0 : index
    %123 = vector.load %arg20[%c0_66, %c2_67, %c0_68] : memref<2x9x128xf32, #tpu.memory_space<vmem>>, vector<1x1x128xf32>
    %124 = vector.shape_cast %123 : vector<1x1x128xf32> to vector<1x128xf32>
    %125 = vector.shape_cast %122 : vector<1x128xf32> to vector<1x1x128xf32>
    tpu.vector_store %arg20[%c0_66, %c2_67, %c0_68], %125 {strides = array<i32>} : memref<2x9x128xf32, #tpu.memory_space<vmem>>, vector<1x1x128xf32>,
    %126 = vector.extract_strided_slice %29 {offsets = [4, 0], sizes = [1, 128], strides = [1, 1]} : vector<16x128xf32> to vector<1x128xf32>
    %c1_69 = arith.constant 1 : index
    %c2_70 = arith.constant 2 : index
    %c0_71 = arith.constant 0 : index
    %127 = vector.load %arg20[%c1_69, %c2_70, %c0_71] : memref<2x9x128xf32, #tpu.memory_space<vmem>>, vector<1x1x128xf32>
    %128 = vector.shape_cast %127 : vector<1x1x128xf32> to vector<1x128xf32>
    %129 = vector.shape_cast %126 : vector<1x128xf32> to vector<1x1x128xf32>
    tpu.vector_store %arg20[%c1_69, %c2_70, %c0_71], %129 {strides = array<i32>} : memref<2x9x128xf32, #tpu.memory_space<vmem>>, vector<1x1x128xf32>,
    %130 = vector.extract_strided_slice %29 {offsets = [5, 0], sizes = [1, 128], strides = [1, 1]} : vector<16x128xf32> to vector<1x128xf32>
    %c0_72 = arith.constant 0 : index
    %c3 = arith.constant 3 : index
    %c0_73 = arith.constant 0 : index
    %131 = vector.load %arg20[%c0_72, %c3, %c0_73] : memref<2x9x128xf32, #tpu.memory_space<vmem>>, vector<1x1x128xf32>
    %132 = vector.shape_cast %131 : vector<1x1x128xf32> to vector<1x128xf32>
    %133 = vector.shape_cast %130 : vector<1x128xf32> to vector<1x1x128xf32>
    tpu.vector_store %arg20[%c0_72, %c3, %c0_73], %133 {strides = array<i32>} : memref<2x9x128xf32, #tpu.memory_space<vmem>>, vector<1x1x128xf32>,
    %134 = vector.extract_strided_slice %29 {offsets = [6, 0], sizes = [1, 128], strides = [1, 1]} : vector<16x128xf32> to vector<1x128xf32>
    %c1_74 = arith.constant 1 : index
    %c3_75 = arith.constant 3 : index
    %c0_76 = arith.constant 0 : index
    %135 = vector.load %arg20[%c1_74, %c3_75, %c0_76] : memref<2x9x128xf32, #tpu.memory_space<vmem>>, vector<1x1x128xf32>
    %136 = vector.shape_cast %135 : vector<1x1x128xf32> to vector<1x128xf32>
    %137 = vector.shape_cast %134 : vector<1x128xf32> to vector<1x1x128xf32>
    tpu.vector_store %arg20[%c1_74, %c3_75, %c0_76], %137 {strides = array<i32>} : memref<2x9x128xf32, #tpu.memory_space<vmem>>, vector<1x1x128xf32>,
    %138 = vector.extract_strided_slice %29 {offsets = [7, 0], sizes = [1, 128], strides = [1, 1]} : vector<16x128xf32> to vector<1x128xf32>
    %c0_77 = arith.constant 0 : index
    %c4 = arith.constant 4 : index
    %c0_78 = arith.constant 0 : index
    %139 = vector.load %arg20[%c0_77, %c4, %c0_78] : memref<2x9x128xf32, #tpu.memory_space<vmem>>, vector<1x1x128xf32>
    %140 = vector.shape_cast %139 : vector<1x1x128xf32> to vector<1x128xf32>
    %141 = vector.shape_cast %138 : vector<1x128xf32> to vector<1x1x128xf32>
    tpu.vector_store %arg20[%c0_77, %c4, %c0_78], %141 {strides = array<i32>} : memref<2x9x128xf32, #tpu.memory_space<vmem>>, vector<1x1x128xf32>,
    %142 = vector.extract_strided_slice %29 {offsets = [8, 0], sizes = [1, 128], strides = [1, 1]} : vector<16x128xf32> to vector<1x128xf32>
    %c1_79 = arith.constant 1 : index
    %c4_80 = arith.constant 4 : index
    %c0_81 = arith.constant 0 : index
    %143 = vector.load %arg20[%c1_79, %c4_80, %c0_81] : memref<2x9x128xf32, #tpu.memory_space<vmem>>, vector<1x1x128xf32>
    %144 = vector.shape_cast %143 : vector<1x1x128xf32> to vector<1x128xf32>
    %145 = vector.shape_cast %142 : vector<1x128xf32> to vector<1x1x128xf32>
    tpu.vector_store %arg20[%c1_79, %c4_80, %c0_81], %145 {strides = array<i32>} : memref<2x9x128xf32, #tpu.memory_space<vmem>>, vector<1x1x128xf32>,
    %146 = vector.extract_strided_slice %29 {offsets = [9, 0], sizes = [1, 128], strides = [1, 1]} : vector<16x128xf32> to vector<1x128xf32>
    %c0_82 = arith.constant 0 : index
    %c5 = arith.constant 5 : index
    %c0_83 = arith.constant 0 : index
    %147 = vector.load %arg20[%c0_82, %c5, %c0_83] : memref<2x9x128xf32, #tpu.memory_space<vmem>>, vector<1x1x128xf32>
    %148 = vector.shape_cast %147 : vector<1x1x128xf32> to vector<1x128xf32>
    %149 = vector.shape_cast %146 : vector<1x128xf32> to vector<1x1x128xf32>
    tpu.vector_store %arg20[%c0_82, %c5, %c0_83], %149 {strides = array<i32>} : memref<2x9x128xf32, #tpu.memory_space<vmem>>, vector<1x1x128xf32>,
    %150 = vector.extract_strided_slice %29 {offsets = [10, 0], sizes = [1, 128], strides = [1, 1]} : vector<16x128xf32> to vector<1x128xf32>
    %c1_84 = arith.constant 1 : index
    %c5_85 = arith.constant 5 : index
    %c0_86 = arith.constant 0 : index
    %151 = vector.load %arg20[%c1_84, %c5_85, %c0_86] : memref<2x9x128xf32, #tpu.memory_space<vmem>>, vector<1x1x128xf32>
    %152 = vector.shape_cast %151 : vector<1x1x128xf32> to vector<1x128xf32>
    %153 = vector.shape_cast %150 : vector<1x128xf32> to vector<1x1x128xf32>
    tpu.vector_store %arg20[%c1_84, %c5_85, %c0_86], %153 {strides = array<i32>} : memref<2x9x128xf32, #tpu.memory_space<vmem>>, vector<1x1x128xf32>,
    %154 = vector.extract_strided_slice %29 {offsets = [11, 0], sizes = [1, 128], strides = [1, 1]} : vector<16x128xf32> to vector<1x128xf32>
    %c0_87 = arith.constant 0 : index
    %c6 = arith.constant 6 : index
    %c0_88 = arith.constant 0 : index
    %155 = vector.load %arg20[%c0_87, %c6, %c0_88] : memref<2x9x128xf32, #tpu.memory_space<vmem>>, vector<1x1x128xf32>
    %156 = vector.shape_cast %155 : vector<1x1x128xf32> to vector<1x128xf32>
    %157 = vector.shape_cast %154 : vector<1x128xf32> to vector<1x1x128xf32>
    tpu.vector_store %arg20[%c0_87, %c6, %c0_88], %157 {strides = array<i32>} : memref<2x9x128xf32, #tpu.memory_space<vmem>>, vector<1x1x128xf32>,
    %158 = vector.extract_strided_slice %29 {offsets = [12, 0], sizes = [1, 128], strides = [1, 1]} : vector<16x128xf32> to vector<1x128xf32>
    %c1_89 = arith.constant 1 : index
    %c6_90 = arith.constant 6 : index
    %c0_91 = arith.constant 0 : index
    %159 = vector.load %arg20[%c1_89, %c6_90, %c0_91] : memref<2x9x128xf32, #tpu.memory_space<vmem>>, vector<1x1x128xf32>
    %160 = vector.shape_cast %159 : vector<1x1x128xf32> to vector<1x128xf32>
    %161 = vector.shape_cast %158 : vector<1x128xf32> to vector<1x1x128xf32>
    tpu.vector_store %arg20[%c1_89, %c6_90, %c0_91], %161 {strides = array<i32>} : memref<2x9x128xf32, #tpu.memory_space<vmem>>, vector<1x1x128xf32>,
    %162 = vector.extract_strided_slice %29 {offsets = [13, 0], sizes = [1, 128], strides = [1, 1]} : vector<16x128xf32> to vector<1x128xf32>
    %c0_92 = arith.constant 0 : index
    %c7 = arith.constant 7 : index
    %c0_93 = arith.constant 0 : index
    %163 = vector.load %arg20[%c0_92, %c7, %c0_93] : memref<2x9x128xf32, #tpu.memory_space<vmem>>, vector<1x1x128xf32>
    %164 = vector.shape_cast %163 : vector<1x1x128xf32> to vector<1x128xf32>
    %165 = vector.shape_cast %162 : vector<1x128xf32> to vector<1x1x128xf32>
    tpu.vector_store %arg20[%c0_92, %c7, %c0_93], %165 {strides = array<i32>} : memref<2x9x128xf32, #tpu.memory_space<vmem>>, vector<1x1x128xf32>,
    %166 = vector.extract_strided_slice %29 {offsets = [14, 0], sizes = [1, 128], strides = [1, 1]} : vector<16x128xf32> to vector<1x128xf32>
    %c1_94 = arith.constant 1 : index
    %c7_95 = arith.constant 7 : index
    %c0_96 = arith.constant 0 : index
    %167 = vector.load %arg20[%c1_94, %c7_95, %c0_96] : memref<2x9x128xf32, #tpu.memory_space<vmem>>, vector<1x1x128xf32>
    %168 = vector.shape_cast %167 : vector<1x1x128xf32> to vector<1x128xf32>
    %169 = vector.shape_cast %166 : vector<1x128xf32> to vector<1x1x128xf32>
    tpu.vector_store %arg20[%c1_94, %c7_95, %c0_96], %169 {strides = array<i32>} : memref<2x9x128xf32, #tpu.memory_space<vmem>>, vector<1x1x128xf32>,
    %170 = vector.extract_strided_slice %29 {offsets = [15, 0], sizes = [1, 128], strides = [1, 1]} : vector<16x128xf32> to vector<1x128xf32>
    %c0_97 = arith.constant 0 : index
    %c8 = arith.constant 8 : index
    %c0_98 = arith.constant 0 : index
    %171 = vector.load %arg20[%c0_97, %c8, %c0_98] : memref<2x9x128xf32, #tpu.memory_space<vmem>>, vector<1x1x128xf32>
    %172 = vector.shape_cast %171 : vector<1x1x128xf32> to vector<1x128xf32>
    %173 = vector.shape_cast %170 : vector<1x128xf32> to vector<1x1x128xf32>
    tpu.vector_store %arg20[%c0_97, %c8, %c0_98], %173 {strides = array<i32>} : memref<2x9x128xf32, #tpu.memory_space<vmem>>, vector<1x1x128xf32>,
    %c0_99 = arith.constant 0 : index
    %c0_100 = arith.constant 0 : index
    %c0_101 = arith.constant 0 : index
    %174 = vector.load %arg20[%c0_99, %c0_100, %c0_101] : memref<2x9x128xf32, #tpu.memory_space<vmem>>, vector<1x8x128xf32>
    %175 = vector.shape_cast %174 : vector<1x8x128xf32> to vector<8x128xf32>
    %c1_102 = arith.constant 1 : index
    %c0_103 = arith.constant 0 : index
    %c0_104 = arith.constant 0 : index
    %176 = vector.load %arg20[%c1_102, %c0_103, %c0_104] : memref<2x9x128xf32, #tpu.memory_space<vmem>>, vector<1x8x128xf32>
    %177 = vector.shape_cast %176 : vector<1x8x128xf32> to vector<8x128xf32>
    %c0_105 = arith.constant 0 : index
    %c1_106 = arith.constant 1 : index
    %c0_107 = arith.constant 0 : index
    %178 = vector.load %arg20[%c0_105, %c1_106, %c0_107] : memref<2x9x128xf32, #tpu.memory_space<vmem>>, vector<1x8x128xf32>
    %179 = vector.shape_cast %178 : vector<1x8x128xf32> to vector<8x128xf32>
    %180 = arith.truncf %175 : vector<8x128xf32> to vector<8x128xbf16>
    %c0_108 = arith.constant 0 : index
    %c0_109 = arith.constant 0 : index
    %c0_110 = arith.constant 0 : index
    %181 = vector.load %arg4[%c0_108, %c0_109, %c0_110] : memref<3x128x128xbf16, #tpu.memory_space<vmem>>, vector<1x128x128xbf16>
    %182 = vector.shape_cast %181 : vector<1x128x128xbf16> to vector<128x128xbf16>
    %cst_111 = arith.constant dense<0.000000e+00> : vector<8x128xf32>
    %183 = tpu.matmul %180, %182, %cst_111 {dimension_numbers = #tpu.dot_dimension_numbers<[1], [0], [0], [1], [0, 0, 1, 1], [], []>} : vector<8x128xbf16>, vector<128x128xbf16>, vector<8x128xf32> -> vector<8x128xf32>
    %184 = arith.truncf %177 : vector<8x128xf32> to vector<8x128xbf16>
    %c1_112 = arith.constant 1 : index
    %c0_113 = arith.constant 0 : index
    %c0_114 = arith.constant 0 : index
    %185 = vector.load %arg4[%c1_112, %c0_113, %c0_114] : memref<3x128x128xbf16, #tpu.memory_space<vmem>>, vector<1x128x128xbf16>
    %186 = vector.shape_cast %185 : vector<1x128x128xbf16> to vector<128x128xbf16>
    %cst_115 = arith.constant dense<0.000000e+00> : vector<8x128xf32>
    %187 = tpu.matmul %184, %186, %cst_115 {dimension_numbers = #tpu.dot_dimension_numbers<[1], [0], [0], [1], [0, 0, 1, 1], [], []>} : vector<8x128xbf16>, vector<128x128xbf16>, vector<8x128xf32> -> vector<8x128xf32>
    %188 = arith.addf %183, %187 : vector<8x128xf32>
    %189 = arith.truncf %179 : vector<8x128xf32> to vector<8x128xbf16>
    %c2_116 = arith.constant 2 : index
    %c0_117 = arith.constant 0 : index
    %c0_118 = arith.constant 0 : index
    %190 = vector.load %arg4[%c2_116, %c0_117, %c0_118] : memref<3x128x128xbf16, #tpu.memory_space<vmem>>, vector<1x128x128xbf16>
    %191 = vector.shape_cast %190 : vector<1x128x128xbf16> to vector<128x128xbf16>
    %cst_119 = arith.constant dense<0.000000e+00> : vector<8x128xf32>
    %192 = tpu.matmul %189, %191, %cst_119 {dimension_numbers = #tpu.dot_dimension_numbers<[1], [0], [0], [1], [0, 0, 1, 1], [], []>} : vector<8x128xbf16>, vector<128x128xbf16>, vector<8x128xf32> -> vector<8x128xf32>
    %193 = arith.addf %188, %192 : vector<8x128xf32>
    %c0_120 = arith.constant 0 : index
    %c0_121 = arith.constant 0 : index
    %194 = vector.load %arg5[%c0_120, %c0_121] : memref<1x128xf32, #tpu.memory_space<vmem>>, vector<1x128xf32>
    %195 = vector.broadcast %194 : vector<1x128xf32> to vector<8x128xf32>
    %196 = arith.addf %193, %195 : vector<8x128xf32>
    %cst_122 = arith.constant 0.000000e+00 : f32
    %197 = vector.broadcast %cst_122 : f32 to vector<8x128xf32>
    %198 = arith.subf %197, %196 : vector<8x128xf32>
    %199 = math.exp %198 : vector<8x128xf32>
    %cst_123 = arith.constant 1.000000e+00 : f32
    %200 = vector.broadcast %cst_123 : f32 to vector<8x128xf32>
    %201 = arith.addf %200, %199 : vector<8x128xf32>
    %202 = tpu.reciprocal %201 {approx = true} : vector<8x128xf32> -> vector<8x128xf32>
    %203 = arith.mulf %196, %202 : vector<8x128xf32>
    %204 = arith.truncf %203 : vector<8x128xf32> to vector<8x128xbf16>
    %c0_124 = arith.constant 0 : index
    %c0_125 = arith.constant 0 : index
    %205 = vector.load %arg10[%c0_124, %c0_125] : memref<128x256xbf16, #tpu.memory_space<vmem>>, vector<128x256xbf16>
    %cst_126 = arith.constant dense<0.000000e+00> : vector<8x256xf32>
    %206 = tpu.matmul %204, %205, %cst_126 {dimension_numbers = #tpu.dot_dimension_numbers<[1], [0], [0], [1], [0, 0, 1, 1], [], []>} : vector<8x128xbf16>, vector<128x256xbf16>, vector<8x256xf32> -> vector<8x256xf32>
    %c0_127 = arith.constant 0 : index
    %c0_128 = arith.constant 0 : index
    %207 = vector.load %arg11[%c0_127, %c0_128] : memref<1x256xf32, #tpu.memory_space<vmem>>, vector<1x256xf32>
    %208 = vector.broadcast %207 : vector<1x256xf32> to vector<8x256xf32>
    %209 = arith.addf %206, %208 : vector<8x256xf32>
    %c0_129 = arith.constant 0 : index
    %c0_130 = arith.constant 0 : index
    %c0_131 = arith.constant 0 : index
    %210 = vector.load %arg16[%c0_129, %c0_130, %c0_131] : memref<1x8x256xf32, #tpu.memory_space<vmem>>, vector<1x8x256xf32>
    %211 = vector.shape_cast %210 : vector<1x8x256xf32> to vector<8x256xf32>
    %212 = vector.shape_cast %209 : vector<8x256xf32> to vector<1x8x256xf32>
    tpu.vector_store %arg16[%c0_129, %c0_130, %c0_131], %212 {strides = array<i32>} : memref<1x8x256xf32, #tpu.memory_space<vmem>>, vector<1x8x256xf32>,
    %213 = tpu.iota {dimensions = array<i32: 0>} : vector<8x256xi32>
    %214 = tpu.iota {dimensions = array<i32: 1>} : vector<8x256xi32>
    %c7_i32 = arith.constant 7 : i32
    %215 = vector.broadcast %c7_i32 : i32 to vector<8x256xi32>
    %216 = arith.andi %214, %215 : vector<8x256xi32>
    %c3_i32 = arith.constant 3 : i32
    %217 = vector.broadcast %c3_i32 : i32 to vector<8x256xi32>
    %218 = arith.shrsi %214, %217 : vector<8x256xi32>
    %c9_i32_132 = arith.constant 9 : i32
    %219 = vector.broadcast %c9_i32_132 : i32 to vector<8x256xi32>
    %220 = arith.cmpi sge, %218, %219 : vector<8x256xi32>
    %221 = arith.extui %220 : vector<8x256xi1> to vector<8x256xi32>
    %c18_i32_133 = arith.constant 18 : i32
    %222 = vector.broadcast %c18_i32_133 : i32 to vector<8x256xi32>
    %223 = arith.cmpi sge, %218, %222 : vector<8x256xi32>
    %224 = arith.extui %223 : vector<8x256xi1> to vector<8x256xi32>
    %225 = arith.addi %221, %224 : vector<8x256xi32>
    %c9_i32_134 = arith.constant 9 : i32
    %226 = vector.broadcast %c9_i32_134 : i32 to vector<8x256xi32>
    %227 = arith.muli %226, %225 : vector<8x256xi32>
    %228 = arith.subi %218, %227 : vector<8x256xi32>
    %cst_135 = arith.constant 0.000000e+00 : f32
    %229 = vector.broadcast %cst_135 : f32 to vector<8x256xf32>
    %230 = arith.subf %229, %209 : vector<8x256xf32>
    %231 = math.exp %230 : vector<8x256xf32>
    %cst_136 = arith.constant 1.000000e+00 : f32
    %232 = vector.broadcast %cst_136 : f32 to vector<8x256xf32>
    %233 = arith.addf %232, %231 : vector<8x256xf32>
    %234 = tpu.reciprocal %233 {approx = true} : vector<8x256xf32> -> vector<8x256xf32>
    %c0_i32_137 = arith.constant 0 : i32
    %235 = vector.broadcast %c0_i32_137 : i32 to vector<8x256xi32>
    %236 = arith.cmpi eq, %228, %235 : vector<8x256xi32>
    %237 = arith.select %236, %216, %213 : vector<8x256xi1>, vector<8x256xi32>
    %238 = arith.sitofp %237 : vector<8x256xi32> to vector<8x256xf32>
    %cst_138 = arith.constant 5.000000e-01 : f32
    %239 = vector.broadcast %cst_138 : f32 to vector<8x256xf32>
    %240 = arith.subf %238, %239 : vector<8x256xf32>
    %cst_139 = arith.constant 2.000000e+00 : f32
    %241 = vector.broadcast %cst_139 : f32 to vector<8x256xf32>
    %242 = arith.mulf %234, %241 : vector<8x256xf32>
    %243 = arith.addf %242, %240 : vector<8x256xf32>
    %cst_140 = arith.constant 4.000000e+00 : f32
    %244 = vector.broadcast %cst_140 : f32 to vector<8x256xf32>
    %245 = arith.mulf %243, %244 : vector<8x256xf32>
    %c1_i32_141 = arith.constant 1 : i32
    %246 = vector.broadcast %c1_i32_141 : i32 to vector<8x256xi32>
    %247 = arith.cmpi eq, %224, %246 : vector<8x256xi32>
    %c1_i32_142 = arith.constant 1 : i32
    %248 = vector.broadcast %c1_i32_142 : i32 to vector<8x256xi32>
    %249 = arith.cmpi eq, %221, %248 : vector<8x256xi32>
    %cst_143 = arith.constant 6.200000e+01 : f32
    %cst_144 = arith.constant 3.000000e+01 : f32
    %250 = vector.broadcast %cst_143 : f32 to vector<8x256xf32>
    %251 = vector.broadcast %cst_144 : f32 to vector<8x256xf32>
    %252 = arith.select %249, %250, %251 : vector<8x256xi1>, vector<8x256xf32>
    %cst_145 = arith.constant 5.900000e+01 : f32
    %253 = vector.broadcast %cst_145 : f32 to vector<8x256xf32>
    %254 = arith.select %247, %253, %252 : vector<8x256xi1>, vector<8x256xf32>
    %c1_i32_146 = arith.constant 1 : i32
    %255 = vector.broadcast %c1_i32_146 : i32 to vector<8x256xi32>
    %256 = arith.cmpi eq, %224, %255 : vector<8x256xi32>
    %c1_i32_147 = arith.constant 1 : i32
    %257 = vector.broadcast %c1_i32_147 : i32 to vector<8x256xi32>
    %258 = arith.cmpi eq, %221, %257 : vector<8x256xi32>
    %cst_148 = arith.constant 4.500000e+01 : f32
    %cst_149 = arith.constant 6.100000e+01 : f32
    %259 = vector.broadcast %cst_148 : f32 to vector<8x256xf32>
    %260 = vector.broadcast %cst_149 : f32 to vector<8x256xf32>
    %261 = arith.select %258, %259, %260 : vector<8x256xi1>, vector<8x256xf32>
    %cst_150 = arith.constant 1.190000e+02 : f32
    %262 = vector.broadcast %cst_150 : f32 to vector<8x256xf32>
    %263 = arith.select %256, %262, %261 : vector<8x256xi1>, vector<8x256xf32>
    %cst_151 = arith.constant 2.000000e+00 : f32
    %264 = vector.broadcast %cst_151 : f32 to vector<8x256xf32>
    %265 = arith.mulf %234, %264 : vector<8x256xf32>
    %266 = arith.mulf %265, %265 : vector<8x256xf32>
    %c2_i32_152 = arith.constant 2 : i32
    %267 = vector.broadcast %c2_i32_152 : i32 to vector<8x256xi32>
    %268 = arith.cmpi eq, %228, %267 : vector<8x256xi32>
    %269 = arith.select %268, %254, %263 : vector<8x256xi1>, vector<8x256xf32>
    %270 = arith.mulf %266, %269 : vector<8x256xf32>
    %c2_i32_153 = arith.constant 2 : i32
    %271 = vector.broadcast %c2_i32_153 : i32 to vector<8x256xi32>
    %272 = arith.cmpi slt, %228, %271 : vector<8x256xi32>
    %c4_i32_154 = arith.constant 4 : i32
    %273 = vector.broadcast %c4_i32_154 : i32 to vector<8x256xi32>
    %274 = arith.cmpi slt, %228, %273 : vector<8x256xi32>
    %275 = arith.select %274, %270, %234 : vector<8x256xi1>, vector<8x256xf32>
    %276 = arith.select %272, %245, %275 : vector<8x256xi1>, vector<8x256xf32>
    %c0_155 = arith.constant 0 : index
    %c0_156 = arith.constant 0 : index
    %c0_157 = arith.constant 0 : index
    %277 = vector.load %arg17[%c0_155, %c0_156, %c0_157] : memref<1x8x256xf32, #tpu.memory_space<vmem>>, vector<1x8x256xf32>
    %278 = vector.shape_cast %277 : vector<1x8x256xf32> to vector<8x256xf32>
    %279 = vector.shape_cast %276 : vector<8x256xf32> to vector<1x8x256xf32>
    tpu.vector_store %arg17[%c0_155, %c0_156, %c0_157], %279 {strides = array<i32>} : memref<1x8x256xf32, #tpu.memory_space<vmem>>, vector<1x8x256xf32>,
    %cst_158 = arith.constant 0.000000e+00 : f32
    %280 = vector.broadcast %cst_158 : f32 to vector<1x128xf32>
    %c0_159 = arith.constant 0 : index
    %c0_160 = arith.constant 0 : index
    %c0_161 = arith.constant 0 : index
    %281 = vector.load %arg21[%c0_159, %c0_160, %c0_161] : memref<2x5x128xf32, #tpu.memory_space<vmem>>, vector<1x1x128xf32>
    %282 = vector.shape_cast %281 : vector<1x1x128xf32> to vector<1x128xf32>
    %283 = vector.shape_cast %280 : vector<1x128xf32> to vector<1x1x128xf32>
    tpu.vector_store %arg21[%c0_159, %c0_160, %c0_161], %283 {strides = array<i32>} : memref<2x5x128xf32, #tpu.memory_space<vmem>>, vector<1x1x128xf32>,
    %284 = vector.extract_strided_slice %203 {offsets = [0, 0], sizes = [1, 128], strides = [1, 1]} : vector<8x128xf32> to vector<1x128xf32>
    %c1_162 = arith.constant 1 : index
    %c0_163 = arith.constant 0 : index
    %c0_164 = arith.constant 0 : index
    %285 = vector.load %arg21[%c1_162, %c0_163, %c0_164] : memref<2x5x128xf32, #tpu.memory_space<vmem>>, vector<1x1x128xf32>
    %286 = vector.shape_cast %285 : vector<1x1x128xf32> to vector<1x128xf32>
    %287 = vector.shape_cast %284 : vector<1x128xf32> to vector<1x1x128xf32>
    tpu.vector_store %arg21[%c1_162, %c0_163, %c0_164], %287 {strides = array<i32>} : memref<2x5x128xf32, #tpu.memory_space<vmem>>, vector<1x1x128xf32>,
    %288 = vector.extract_strided_slice %203 {offsets = [1, 0], sizes = [1, 128], strides = [1, 1]} : vector<8x128xf32> to vector<1x128xf32>
    %c0_165 = arith.constant 0 : index
    %c1_166 = arith.constant 1 : index
    %c0_167 = arith.constant 0 : index
    %289 = vector.load %arg21[%c0_165, %c1_166, %c0_167] : memref<2x5x128xf32, #tpu.memory_space<vmem>>, vector<1x1x128xf32>
    %290 = vector.shape_cast %289 : vector<1x1x128xf32> to vector<1x128xf32>
    %291 = vector.shape_cast %288 : vector<1x128xf32> to vector<1x1x128xf32>
    tpu.vector_store %arg21[%c0_165, %c1_166, %c0_167], %291 {strides = array<i32>} : memref<2x5x128xf32, #tpu.memory_space<vmem>>, vector<1x1x128xf32>,
    %292 = vector.extract_strided_slice %203 {offsets = [2, 0], sizes = [1, 128], strides = [1, 1]} : vector<8x128xf32> to vector<1x128xf32>
    %c1_168 = arith.constant 1 : index
    %c1_169 = arith.constant 1 : index
    %c0_170 = arith.constant 0 : index
    %293 = vector.load %arg21[%c1_168, %c1_169, %c0_170] : memref<2x5x128xf32, #tpu.memory_space<vmem>>, vector<1x1x128xf32>
    %294 = vector.shape_cast %293 : vector<1x1x128xf32> to vector<1x128xf32>
    %295 = vector.shape_cast %292 : vector<1x128xf32> to vector<1x1x128xf32>
    tpu.vector_store %arg21[%c1_168, %c1_169, %c0_170], %295 {strides = array<i32>} : memref<2x5x128xf32, #tpu.memory_space<vmem>>, vector<1x1x128xf32>,
    %296 = vector.extract_strided_slice %203 {offsets = [3, 0], sizes = [1, 128], strides = [1, 1]} : vector<8x128xf32> to vector<1x128xf32>
    %c0_171 = arith.constant 0 : index
    %c2_172 = arith.constant 2 : index
    %c0_173 = arith.constant 0 : index
    %297 = vector.load %arg21[%c0_171, %c2_172, %c0_173] : memref<2x5x128xf32, #tpu.memory_space<vmem>>, vector<1x1x128xf32>
    %298 = vector.shape_cast %297 : vector<1x1x128xf32> to vector<1x128xf32>
    %299 = vector.shape_cast %296 : vector<1x128xf32> to vector<1x1x128xf32>
    tpu.vector_store %arg21[%c0_171, %c2_172, %c0_173], %299 {strides = array<i32>} : memref<2x5x128xf32, #tpu.memory_space<vmem>>, vector<1x1x128xf32>,
    %300 = vector.extract_strided_slice %203 {offsets = [4, 0], sizes = [1, 128], strides = [1, 1]} : vector<8x128xf32> to vector<1x128xf32>
    %c1_174 = arith.constant 1 : index
    %c2_175 = arith.constant 2 : index
    %c0_176 = arith.constant 0 : index
    %301 = vector.load %arg21[%c1_174, %c2_175, %c0_176] : memref<2x5x128xf32, #tpu.memory_space<vmem>>, vector<1x1x128xf32>
    %302 = vector.shape_cast %301 : vector<1x1x128xf32> to vector<1x128xf32>
    %303 = vector.shape_cast %300 : vector<1x128xf32> to vector<1x1x128xf32>
    tpu.vector_store %arg21[%c1_174, %c2_175, %c0_176], %303 {strides = array<i32>} : memref<2x5x128xf32, #tpu.memory_space<vmem>>, vector<1x1x128xf32>,
    %304 = vector.extract_strided_slice %203 {offsets = [5, 0], sizes = [1, 128], strides = [1, 1]} : vector<8x128xf32> to vector<1x128xf32>
    %c0_177 = arith.constant 0 : index
    %c3_178 = arith.constant 3 : index
    %c0_179 = arith.constant 0 : index
    %305 = vector.load %arg21[%c0_177, %c3_178, %c0_179] : memref<2x5x128xf32, #tpu.memory_space<vmem>>, vector<1x1x128xf32>
    %306 = vector.shape_cast %305 : vector<1x1x128xf32> to vector<1x128xf32>
    %307 = vector.shape_cast %304 : vector<1x128xf32> to vector<1x1x128xf32>
    tpu.vector_store %arg21[%c0_177, %c3_178, %c0_179], %307 {strides = array<i32>} : memref<2x5x128xf32, #tpu.memory_space<vmem>>, vector<1x1x128xf32>,
    %308 = vector.extract_strided_slice %203 {offsets = [6, 0], sizes = [1, 128], strides = [1, 1]} : vector<8x128xf32> to vector<1x128xf32>
    %c1_180 = arith.constant 1 : index
    %c3_181 = arith.constant 3 : index
    %c0_182 = arith.constant 0 : index
    %309 = vector.load %arg21[%c1_180, %c3_181, %c0_182] : memref<2x5x128xf32, #tpu.memory_space<vmem>>, vector<1x1x128xf32>
    %310 = vector.shape_cast %309 : vector<1x1x128xf32> to vector<1x128xf32>
    %311 = vector.shape_cast %308 : vector<1x128xf32> to vector<1x1x128xf32>
    tpu.vector_store %arg21[%c1_180, %c3_181, %c0_182], %311 {strides = array<i32>} : memref<2x5x128xf32, #tpu.memory_space<vmem>>, vector<1x1x128xf32>,
    %312 = vector.extract_strided_slice %203 {offsets = [7, 0], sizes = [1, 128], strides = [1, 1]} : vector<8x128xf32> to vector<1x128xf32>
    %c0_183 = arith.constant 0 : index
    %c4_184 = arith.constant 4 : index
    %c0_185 = arith.constant 0 : index
    %313 = vector.load %arg21[%c0_183, %c4_184, %c0_185] : memref<2x5x128xf32, #tpu.memory_space<vmem>>, vector<1x1x128xf32>
    %314 = vector.shape_cast %313 : vector<1x1x128xf32> to vector<1x128xf32>
    %315 = vector.shape_cast %312 : vector<1x128xf32> to vector<1x1x128xf32>
    tpu.vector_store %arg21[%c0_183, %c4_184, %c0_185], %315 {strides = array<i32>} : memref<2x5x128xf32, #tpu.memory_space<vmem>>, vector<1x1x128xf32>,
    %c0_186 = arith.constant 0 : index
    %c0_187 = arith.constant 0 : index
    %c0_188 = arith.constant 0 : index
    %316 = vector.load %arg21[%c0_186, %c0_187, %c0_188] : memref<2x5x128xf32, #tpu.memory_space<vmem>>, vector<1x4x128xf32>
    %317 = vector.shape_cast %316 : vector<1x4x128xf32> to vector<4x128xf32>
    %c1_189 = arith.constant 1 : index
    %c0_190 = arith.constant 0 : index
    %c0_191 = arith.constant 0 : index
    %318 = vector.load %arg21[%c1_189, %c0_190, %c0_191] : memref<2x5x128xf32, #tpu.memory_space<vmem>>, vector<1x4x128xf32>
    %319 = vector.shape_cast %318 : vector<1x4x128xf32> to vector<4x128xf32>
    %c0_192 = arith.constant 0 : index
    %c1_193 = arith.constant 1 : index
    %c0_194 = arith.constant 0 : index
    %320 = vector.load %arg21[%c0_192, %c1_193, %c0_194] : memref<2x5x128xf32, #tpu.memory_space<vmem>>, vector<1x4x128xf32>
    %321 = vector.shape_cast %320 : vector<1x4x128xf32> to vector<4x128xf32>
    %322 = arith.truncf %317 : vector<4x128xf32> to vector<4x128xbf16>
    %c0_195 = arith.constant 0 : index
    %c0_196 = arith.constant 0 : index
    %c0_197 = arith.constant 0 : index
    %323 = vector.load %arg6[%c0_195, %c0_196, %c0_197] : memref<3x128x128xbf16, #tpu.memory_space<vmem>>, vector<1x128x128xbf16>
    %324 = vector.shape_cast %323 : vector<1x128x128xbf16> to vector<128x128xbf16>
    %cst_198 = arith.constant dense<0.000000e+00> : vector<4x128xf32>
    %325 = tpu.matmul %322, %324, %cst_198 {dimension_numbers = #tpu.dot_dimension_numbers<[1], [0], [0], [1], [0, 0, 1, 1], [], []>} : vector<4x128xbf16>, vector<128x128xbf16>, vector<4x128xf32> -> vector<4x128xf32>
    %326 = arith.truncf %319 : vector<4x128xf32> to vector<4x128xbf16>
    %c1_199 = arith.constant 1 : index
    %c0_200 = arith.constant 0 : index
    %c0_201 = arith.constant 0 : index
    %327 = vector.load %arg6[%c1_199, %c0_200, %c0_201] : memref<3x128x128xbf16, #tpu.memory_space<vmem>>, vector<1x128x128xbf16>
    %328 = vector.shape_cast %327 : vector<1x128x128xbf16> to vector<128x128xbf16>
    %cst_202 = arith.constant dense<0.000000e+00> : vector<4x128xf32>
    %329 = tpu.matmul %326, %328, %cst_202 {dimension_numbers = #tpu.dot_dimension_numbers<[1], [0], [0], [1], [0, 0, 1, 1], [], []>} : vector<4x128xbf16>, vector<128x128xbf16>, vector<4x128xf32> -> vector<4x128xf32>
    %330 = arith.addf %325, %329 : vector<4x128xf32>
    %331 = arith.truncf %321 : vector<4x128xf32> to vector<4x128xbf16>
    %c2_203 = arith.constant 2 : index
    %c0_204 = arith.constant 0 : index
    %c0_205 = arith.constant 0 : index
    %332 = vector.load %arg6[%c2_203, %c0_204, %c0_205] : memref<3x128x128xbf16, #tpu.memory_space<vmem>>, vector<1x128x128xbf16>
    %333 = vector.shape_cast %332 : vector<1x128x128xbf16> to vector<128x128xbf16>
    %cst_206 = arith.constant dense<0.000000e+00> : vector<4x128xf32>
    %334 = tpu.matmul %331, %333, %cst_206 {dimension_numbers = #tpu.dot_dimension_numbers<[1], [0], [0], [1], [0, 0, 1, 1], [], []>} : vector<4x128xbf16>, vector<128x128xbf16>, vector<4x128xf32> -> vector<4x128xf32>
    %335 = arith.addf %330, %334 : vector<4x128xf32>
    %c0_207 = arith.constant 0 : index
    %c0_208 = arith.constant 0 : index
    %336 = vector.load %arg7[%c0_207, %c0_208] : memref<1x128xf32, #tpu.memory_space<vmem>>, vector<1x128xf32>
    %337 = vector.broadcast %336 : vector<1x128xf32> to vector<4x128xf32>
    %338 = arith.addf %335, %337 : vector<4x128xf32>
    %cst_209 = arith.constant 0.000000e+00 : f32
    %339 = vector.broadcast %cst_209 : f32 to vector<4x128xf32>
    %340 = arith.subf %339, %338 : vector<4x128xf32>
    %341 = math.exp %340 : vector<4x128xf32>
    %cst_210 = arith.constant 1.000000e+00 : f32
    %342 = vector.broadcast %cst_210 : f32 to vector<4x128xf32>
    %343 = arith.addf %342, %341 : vector<4x128xf32>
    %344 = tpu.reciprocal %343 {approx = true} : vector<4x128xf32> -> vector<4x128xf32>
    %345 = arith.mulf %338, %344 : vector<4x128xf32>
    %346 = arith.truncf %345 : vector<4x128xf32> to vector<4x128xbf16>
    %c0_211 = arith.constant 0 : index
    %c0_212 = arith.constant 0 : index
    %347 = vector.load %arg12[%c0_211, %c0_212] : memref<128x128xbf16, #tpu.memory_space<vmem>>, vector<128x128xbf16>
    %cst_213 = arith.constant dense<0.000000e+00> : vector<4x128xf32>
    %348 = tpu.matmul %346, %347, %cst_213 {dimension_numbers = #tpu.dot_dimension_numbers<[1], [0], [0], [1], [0, 0, 1, 1], [], []>} : vector<4x128xbf16>, vector<128x128xbf16>, vector<4x128xf32> -> vector<4x128xf32>
    %c0_214 = arith.constant 0 : index
    %c0_215 = arith.constant 0 : index
    %349 = vector.load %arg13[%c0_214, %c0_215] : memref<1x128xf32, #tpu.memory_space<vmem>>, vector<1x128xf32>
    %350 = vector.broadcast %349 : vector<1x128xf32> to vector<4x128xf32>
    %351 = arith.addf %348, %350 : vector<4x128xf32>
    %c0_216 = arith.constant 0 : index
    %c0_217 = arith.constant 0 : index
    %c0_218 = arith.constant 0 : index
    %352 = vector.load %arg18[%c0_216, %c0_217, %c0_218] : memref<1x4x128xf32, #tpu.memory_space<vmem>>, vector<1x4x128xf32>
    %353 = vector.shape_cast %352 : vector<1x4x128xf32> to vector<4x128xf32>
    %354 = vector.shape_cast %351 : vector<4x128xf32> to vector<1x4x128xf32>
    tpu.vector_store %arg18[%c0_216, %c0_217, %c0_218], %354 {strides = array<i32>} : memref<1x4x128xf32, #tpu.memory_space<vmem>>, vector<1x4x128xf32>,
    %355 = tpu.iota {dimensions = array<i32: 0>} : vector<4x128xi32>
    %356 = tpu.iota {dimensions = array<i32: 1>} : vector<4x128xi32>
    %c3_i32_219 = arith.constant 3 : i32
    %357 = vector.broadcast %c3_i32_219 : i32 to vector<4x128xi32>
    %358 = arith.andi %356, %357 : vector<4x128xi32>
    %c2_i32_220 = arith.constant 2 : i32
    %359 = vector.broadcast %c2_i32_220 : i32 to vector<4x128xi32>
    %360 = arith.shrsi %356, %359 : vector<4x128xi32>
    %c9_i32_221 = arith.constant 9 : i32
    %361 = vector.broadcast %c9_i32_221 : i32 to vector<4x128xi32>
    %362 = arith.cmpi sge, %360, %361 : vector<4x128xi32>
    %363 = arith.extui %362 : vector<4x128xi1> to vector<4x128xi32>
    %c18_i32_222 = arith.constant 18 : i32
    %364 = vector.broadcast %c18_i32_222 : i32 to vector<4x128xi32>
    %365 = arith.cmpi sge, %360, %364 : vector<4x128xi32>
    %366 = arith.extui %365 : vector<4x128xi1> to vector<4x128xi32>
    %367 = arith.addi %363, %366 : vector<4x128xi32>
    %c9_i32_223 = arith.constant 9 : i32
    %368 = vector.broadcast %c9_i32_223 : i32 to vector<4x128xi32>
    %369 = arith.muli %368, %367 : vector<4x128xi32>
    %370 = arith.subi %360, %369 : vector<4x128xi32>
    %cst_224 = arith.constant 0.000000e+00 : f32
    %371 = vector.broadcast %cst_224 : f32 to vector<4x128xf32>
    %372 = arith.subf %371, %351 : vector<4x128xf32>
    %373 = math.exp %372 : vector<4x128xf32>
    %cst_225 = arith.constant 1.000000e+00 : f32
    %374 = vector.broadcast %cst_225 : f32 to vector<4x128xf32>
    %375 = arith.addf %374, %373 : vector<4x128xf32>
    %376 = tpu.reciprocal %375 {approx = true} : vector<4x128xf32> -> vector<4x128xf32>
    %c0_i32_226 = arith.constant 0 : i32
    %377 = vector.broadcast %c0_i32_226 : i32 to vector<4x128xi32>
    %378 = arith.cmpi eq, %370, %377 : vector<4x128xi32>
    %379 = arith.select %378, %358, %355 : vector<4x128xi1>, vector<4x128xi32>
    %380 = arith.sitofp %379 : vector<4x128xi32> to vector<4x128xf32>
    %cst_227 = arith.constant 5.000000e-01 : f32
    %381 = vector.broadcast %cst_227 : f32 to vector<4x128xf32>
    %382 = arith.subf %380, %381 : vector<4x128xf32>
    %cst_228 = arith.constant 2.000000e+00 : f32
    %383 = vector.broadcast %cst_228 : f32 to vector<4x128xf32>
    %384 = arith.mulf %376, %383 : vector<4x128xf32>
    %385 = arith.addf %384, %382 : vector<4x128xf32>
    %cst_229 = arith.constant 8.000000e+00 : f32
    %386 = vector.broadcast %cst_229 : f32 to vector<4x128xf32>
    %387 = arith.mulf %385, %386 : vector<4x128xf32>
    %c1_i32_230 = arith.constant 1 : i32
    %388 = vector.broadcast %c1_i32_230 : i32 to vector<4x128xi32>
    %389 = arith.cmpi eq, %366, %388 : vector<4x128xi32>
    %c1_i32_231 = arith.constant 1 : i32
    %390 = vector.broadcast %c1_i32_231 : i32 to vector<4x128xi32>
    %391 = arith.cmpi eq, %363, %390 : vector<4x128xi32>
    %cst_232 = arith.constant 1.560000e+02 : f32
    %cst_233 = arith.constant 1.160000e+02 : f32
    %392 = vector.broadcast %cst_232 : f32 to vector<4x128xf32>
    %393 = vector.broadcast %cst_233 : f32 to vector<4x128xf32>
    %394 = arith.select %391, %392, %393 : vector<4x128xi1>, vector<4x128xf32>
    %cst_234 = arith.constant 3.730000e+02 : f32
    %395 = vector.broadcast %cst_234 : f32 to vector<4x128xf32>
    %396 = arith.select %389, %395, %394 : vector<4x128xi1>, vector<4x128xf32>
    %c1_i32_235 = arith.constant 1 : i32
    %397 = vector.broadcast %c1_i32_235 : i32 to vector<4x128xi32>
    %398 = arith.cmpi eq, %366, %397 : vector<4x128xi32>
    %c1_i32_236 = arith.constant 1 : i32
    %399 = vector.broadcast %c1_i32_236 : i32 to vector<4x128xi32>
    %400 = arith.cmpi eq, %363, %399 : vector<4x128xi32>
    %cst_237 = arith.constant 1.980000e+02 : f32
    %cst_238 = arith.constant 9.000000e+01 : f32
    %401 = vector.broadcast %cst_237 : f32 to vector<4x128xf32>
    %402 = vector.broadcast %cst_238 : f32 to vector<4x128xf32>
    %403 = arith.select %400, %401, %402 : vector<4x128xi1>, vector<4x128xf32>
    %cst_239 = arith.constant 3.260000e+02 : f32
    %404 = vector.broadcast %cst_239 : f32 to vector<4x128xf32>
    %405 = arith.select %398, %404, %403 : vector<4x128xi1>, vector<4x128xf32>
    %cst_240 = arith.constant 2.000000e+00 : f32
    %406 = vector.broadcast %cst_240 : f32 to vector<4x128xf32>
    %407 = arith.mulf %376, %406 : vector<4x128xf32>
    %408 = arith.mulf %407, %407 : vector<4x128xf32>
    %c2_i32_241 = arith.constant 2 : i32
    %409 = vector.broadcast %c2_i32_241 : i32 to vector<4x128xi32>
    %410 = arith.cmpi eq, %370, %409 : vector<4x128xi32>
    %411 = arith.select %410, %396, %405 : vector<4x128xi1>, vector<4x128xf32>
    %412 = arith.mulf %408, %411 : vector<4x128xf32>
    %c2_i32_242 = arith.constant 2 : i32
    %413 = vector.broadcast %c2_i32_242 : i32 to vector<4x128xi32>
    %414 = arith.cmpi slt, %370, %413 : vector<4x128xi32>
    %c4_i32_243 = arith.constant 4 : i32
    %415 = vector.broadcast %c4_i32_243 : i32 to vector<4x128xi32>
    %416 = arith.cmpi slt, %370, %415 : vector<4x128xi32>
    %417 = arith.select %416, %412, %376 : vector<4x128xi1>, vector<4x128xf32>
    %418 = arith.select %414, %387, %417 : vector<4x128xi1>, vector<4x128xf32>
    %c0_244 = arith.constant 0 : index
    %c0_245 = arith.constant 0 : index
    %c0_246 = arith.constant 0 : index
    %419 = vector.load %arg19[%c0_244, %c0_245, %c0_246] : memref<1x4x128xf32, #tpu.memory_space<vmem>>, vector<1x4x128xf32>
    %420 = vector.shape_cast %419 : vector<1x4x128xf32> to vector<4x128xf32>
    %421 = vector.shape_cast %418 : vector<4x128xf32> to vector<1x4x128xf32>
    tpu.vector_store %arg19[%c0_244, %c0_245, %c0_246], %421 {strides = array<i32>} : memref<1x4x128xf32, #tpu.memory_space<vmem>>, vector<1x4x128xf32>,
    return
  }
  func.func @transform_0(%arg0: i32) -> (i32, i32, i32, i32) {
    %c0_i32 = arith.constant 0 : i32
    %c0_i32_0 = arith.constant 0 : i32
    %c0_i32_1 = arith.constant 0 : i32
    %c0_i32_2 = arith.constant 0 : i32
    return %arg0, %c0_i32, %c0_i32_0, %c0_i32_1 : i32, i32, i32, i32
  }
  func.func @transform_1(%arg0: i32) -> (i32, i32, i32) {
    %c0_i32 = arith.constant 0 : i32
    %c0_i32_0 = arith.constant 0 : i32
    %c0_i32_1 = arith.constant 0 : i32
    %c0_i32_2 = arith.constant 0 : i32
    return %c0_i32, %c0_i32_0, %c0_i32_1 : i32, i32, i32
  }
  func.func @transform_2(%arg0: i32) -> (i32, i32) {
    %c0_i32 = arith.constant 0 : i32
    %c0_i32_0 = arith.constant 0 : i32
    %c0_i32_1 = arith.constant 0 : i32
    return %c0_i32, %c0_i32_0 : i32, i32
  }
  func.func @transform_3(%arg0: i32) -> (i32, i32, i32) {
    %c0_i32 = arith.constant 0 : i32
    %c0_i32_0 = arith.constant 0 : i32
    %c0_i32_1 = arith.constant 0 : i32
    %c0_i32_2 = arith.constant 0 : i32
    return %c0_i32, %c0_i32_0, %c0_i32_1 : i32, i32, i32
  }
  func.func @transform_4(%arg0: i32) -> (i32, i32) {
    %c0_i32 = arith.constant 0 : i32
    %c0_i32_0 = arith.constant 0 : i32
    %c0_i32_1 = arith.constant 0 : i32
    return %c0_i32, %c0_i32_0 : i32, i32
  }
  func.func @transform_5(%arg0: i32) -> (i32, i32, i32) {
    %c0_i32 = arith.constant 0 : i32
    %c0_i32_0 = arith.constant 0 : i32
    %c0_i32_1 = arith.constant 0 : i32
    %c0_i32_2 = arith.constant 0 : i32
    return %c0_i32, %c0_i32_0, %c0_i32_1 : i32, i32, i32
  }
  func.func @transform_6(%arg0: i32) -> (i32, i32) {
    %c0_i32 = arith.constant 0 : i32
    %c0_i32_0 = arith.constant 0 : i32
    %c0_i32_1 = arith.constant 0 : i32
    return %c0_i32, %c0_i32_0 : i32, i32
  }
  func.func @transform_7(%arg0: i32) -> (i32, i32) {
    %c0_i32 = arith.constant 0 : i32
    %c0_i32_0 = arith.constant 0 : i32
    %c0_i32_1 = arith.constant 0 : i32
    return %c0_i32, %c0_i32_0 : i32, i32
  }
  func.func @transform_8(%arg0: i32) -> (i32, i32) {
    %c0_i32 = arith.constant 0 : i32
    %c0_i32_0 = arith.constant 0 : i32
    %c0_i32_1 = arith.constant 0 : i32
    return %c0_i32, %c0_i32_0 : i32, i32
  }
  func.func @transform_9(%arg0: i32) -> (i32, i32) {
    %c0_i32 = arith.constant 0 : i32
    %c0_i32_0 = arith.constant 0 : i32
    %c0_i32_1 = arith.constant 0 : i32
    return %c0_i32, %c0_i32_0 : i32, i32
  }
  func.func @transform_10(%arg0: i32) -> (i32, i32) {
    %c0_i32 = arith.constant 0 : i32
    %c0_i32_0 = arith.constant 0 : i32
    %c0_i32_1 = arith.constant 0 : i32
    return %c0_i32, %c0_i32_0 : i32, i32
  }
  func.func @transform_11(%arg0: i32) -> (i32, i32) {
    %c0_i32 = arith.constant 0 : i32
    %c0_i32_0 = arith.constant 0 : i32
    %c0_i32_1 = arith.constant 0 : i32
    return %c0_i32, %c0_i32_0 : i32, i32
  }
  func.func @transform_12(%arg0: i32) -> (i32, i32) {
    %c0_i32 = arith.constant 0 : i32
    %c0_i32_0 = arith.constant 0 : i32
    %c0_i32_1 = arith.constant 0 : i32
    return %c0_i32, %c0_i32_0 : i32, i32
  }
  func.func @transform_13(%arg0: i32) -> (i32, i32, i32) {
    %c0_i32 = arith.constant 0 : i32
    %c0_i32_0 = arith.constant 0 : i32
    %c0_i32_1 = arith.constant 0 : i32
    return %arg0, %c0_i32, %c0_i32_0 : i32, i32, i32
  }
  func.func @transform_14(%arg0: i32) -> (i32, i32, i32) {
    %c0_i32 = arith.constant 0 : i32
    %c0_i32_0 = arith.constant 0 : i32
    %c0_i32_1 = arith.constant 0 : i32
    return %arg0, %c0_i32, %c0_i32_0 : i32, i32, i32
  }
  func.func @transform_15(%arg0: i32) -> (i32, i32, i32) {
    %c0_i32 = arith.constant 0 : i32
    %c0_i32_0 = arith.constant 0 : i32
    %c0_i32_1 = arith.constant 0 : i32
    return %arg0, %c0_i32, %c0_i32_0 : i32, i32, i32
  }
  func.func @transform_16(%arg0: i32) -> (i32, i32, i32) {
    %c0_i32 = arith.constant 0 : i32
    %c0_i32_0 = arith.constant 0 : i32
    %c0_i32_1 = arith.constant 0 : i32
    return %arg0, %c0_i32, %c0_i32_0 : i32, i32, i32
  }
  func.func @transform_17(%arg0: i32) -> (i32, i32, i32) {
    %c0_i32 = arith.constant 0 : i32
    %c0_i32_0 = arith.constant 0 : i32
    %c0_i32_1 = arith.constant 0 : i32
    return %arg0, %c0_i32, %c0_i32_0 : i32, i32, i32
  }
  func.func @transform_18(%arg0: i32) -> (i32, i32, i32) {
    %c0_i32 = arith.constant 0 : i32
    %c0_i32_0 = arith.constant 0 : i32
    %c0_i32_1 = arith.constant 0 : i32
    return %arg0, %c0_i32, %c0_i32_0 : i32, i32, i32
  }
}

</mosaic_0001>

<llo_original>
// kernel: detection_model_forward.1
$region0: #{detection_model_forward.1}
  #allocation0 [shape = 'u32[]', space=smem, size = 0x4, offset = 0x4, fixed_abs, tag = 'smem constant byte address 0x4 - core index']
  #allocation1 [shape = 'u32[144,128]{1,0:T(1,128)}', space=vmem, size = 0x12000, scoped, tag = 'internal scratch']
  #allocation2 [shape = 'f32[2,9,128]{2,1,0:T(8,128)}', space=vmem, size = 0x4000, scoped, tag = 'scratch operand']
  #allocation3 [shape = 'f32[2,5,128]{2,1,0:T(8,128)}', space=vmem, size = 0x2000, scoped, tag = 'scratch operand']
  %s0 = inlined_call_operand.vmem [shape: f32[2,2,17,128], index: 0, kind: input, shape index: {}]
  %s1 = inlined_call_operand.vmem [shape: bf16[3,128,128], index: 1, kind: input, shape index: {}]
  %s2 = inlined_call_operand.vmem [shape: f32[1,128], index: 2, kind: input, shape index: {}]
  %s3 = inlined_call_operand.vmem [shape: bf16[3,128,128], index: 3, kind: input, shape index: {}]
  %s4 = inlined_call_operand.vmem [shape: f32[1,128], index: 4, kind: input, shape index: {}]
  %s5 = inlined_call_operand.vmem [shape: bf16[3,128,128], index: 5, kind: input, shape index: {}]
  %s6 = inlined_call_operand.vmem [shape: f32[1,128], index: 6, kind: input, shape index: {}]
  %s7 = inlined_call_operand.vmem [shape: bf16[128,512], index: 7, kind: input, shape index: {}]
  %s8 = inlined_call_operand.vmem [shape: f32[1,512], index: 8, kind: input, shape index: {}]
  %s9 = inlined_call_operand.vmem [shape: bf16[128,256], index: 9, kind: input, shape index: {}]
  %s10 = inlined_call_operand.vmem [shape: f32[1,256], index: 10, kind: input, shape index: {}]
  %s11 = inlined_call_operand.vmem [shape: bf16[128,128], index: 11, kind: input, shape index: {}]
  %s12 = inlined_call_operand.vmem [shape: f32[1,128], index: 12, kind: input, shape index: {}]
  %s13 = inlined_call_operand.vmem [shape: f32[2,16,512], index: 13, kind: output, shape index: {0}]
  %s14 = inlined_call_operand.vmem [shape: f32[2,16,512], index: 14, kind: output, shape index: {1}]
  %s15 = inlined_call_operand.vmem [shape: f32[2,8,256], index: 15, kind: output, shape index: {2}]
  %s16 = inlined_call_operand.vmem [shape: f32[2,8,256], index: 16, kind: output, shape index: {3}]
  %s17 = inlined_call_operand.vmem [shape: f32[2,4,128], index: 17, kind: output, shape index: {4}]
  %s18 = inlined_call_operand.vmem [shape: f32[2,4,128], index: 18, kind: output, shape index: {5}]
  %19 = xla_tuple %s13, %s14, %s15, %s16, %s17, %s18
  %s20 = sld [smem:[#allocation0]]
  $region125: #{detection_model_forward.1} parent=0
    _
  %s22 = ssub.s32 1, %s20
  %s23 = scalar_select 0, %s22, %s20
  loop: start=0, step=1, limit=4
  $region2: #{detection_model_forward.1} parent=0 // loop_pre_header
    _
  $region3: #{detection_model_forward.1} parent=0 // loop_header
    %s25 = sphi 0, %s29
    %p26 = scmp.ge.s32.totalorder %s25, 4
    %s35 = sphi 0, %s37
    %s38 = sphi 0, %s35
    %s39 = sphi 0, %s38
    %s55 = sphi 0, %s39
    %s59 = sphi 0, %s59
    %s61 = sphi 0, %s59
    %s62 = sphi 0, %s61
    %s76 = sphi 0, %s62
    %s80 = sphi 0, %s80
    %s82 = sphi 0, %s80
    %s83 = sphi 0, %s82
    %s97 = sphi 0, %s83
    %s101 = sphi 0, %s101
    %s103 = sphi 0, %s101
    %s104 = sphi 0, %s103
    %s118 = sphi 0, %s104
    %s122 = sphi 0, %s122
    %s124 = sphi 0, %s122
    %s125 = sphi 0, %s124
    %s139 = sphi 0, %s125
    %s143 = sphi 0, %s143
    %s145 = sphi 0, %s143
    %s146 = sphi 0, %s145
    %s160 = sphi 0, %s146
    %s164 = sphi 0, %s164
    %s166 = sphi 0, %s164
    %s167 = sphi 0, %s166
    %s181 = sphi 0, %s167
    %s185 = sphi 0, %s185
    %s187 = sphi 0, %s185
    %s188 = sphi 0, %s187
    %s202 = sphi 0, %s188
    %s206 = sphi 0, %s206
    %s208 = sphi 0, %s206
    %s209 = sphi 0, %s208
    %s223 = sphi 0, %s209
    %s227 = sphi 0, %s227
    %s229 = sphi 0, %s227
    %s230 = sphi 0, %s229
    %s244 = sphi 0, %s230
    %s248 = sphi 0, %s248
    %s250 = sphi 0, %s248
    %s251 = sphi 0, %s250
    %s265 = sphi 0, %s251
    %s269 = sphi 0, %s269
    %s271 = sphi 0, %s269
    %s272 = sphi 0, %s271
    %s286 = sphi 0, %s272
    %s290 = sphi 0, %s290
    %s292 = sphi 0, %s290
    %s293 = sphi 0, %s292
    %s307 = sphi 0, %s293
    %s313 = sphi 0, %s315
    %s316 = sphi 0, %s313
    %s317 = sphi 0, %s316
    %s333 = sphi 0, %s317
    %s339 = sphi 0, %s341
    %s342 = sphi 0, %s339
    %s343 = sphi 0, %s342
    %s359 = sphi 0, %s343
    %s365 = sphi 0, %s367
    %s368 = sphi 0, %s365
    %s369 = sphi 0, %s368
    %s385 = sphi 0, %s369
    %s391 = sphi 0, %s393
    %s394 = sphi 0, %s391
    %s395 = sphi 0, %s394
    %s411 = sphi 0, %s395
    %s417 = sphi 0, %s419
    %s420 = sphi 0, %s417
    %s421 = sphi 0, %s420
    %s437 = sphi 0, %s421
    %s443 = sphi 0, %s445
    %s446 = sphi 0, %s443
    %s447 = sphi 0, %s446
    %s463 = sphi 0, %s447
  $region4: #{detection_model_forward.1} parent=0 // loop_header_branch
    %28 = sbr.rel (%p26) target = $region8
  $region5: #{detection_model_forward.1} parent=0 // loop_body
    %s30 = ssub.s32 %s25, 1
    %s31 = ssub.s32 %s25, 2
    %s32 = sadd.s32 %s25, 1
    %s33 = ssub.s32 %s25, %s32
    %p34 = scmp.eq.s32.totalorder %s33, 0
    %s36 = sadd.s32 %s35, 1
    %s37 = scalar_select %p34, %s35, %s36
    %p40 = pneg %p34
    %p41 = scmp.eq.s32.totalorder %s25, 1
    %p42 = por %p40, %p41
    %p43 = scmp.ne.s32.totalorder %s35, %s38
    %p44 = scmp.eq.s32.totalorder %s25, 0
    %p45 = por %p43, %p44
    %p46 = scmp.ne.s32.totalorder %s35, %s38
    %p47 = scmp.eq.s32.totalorder %s30, 1
    %p48 = por %p46, %p47
    %p49 = scmp.ne.s32.totalorder %s38, %s39
    %p50 = scmp.eq.s32.totalorder %s30, 0
    %p51 = por %p49, %p50
    %p52 = scmp.ne.s32.totalorder %s38, %s39
    %p53 = scmp.eq.s32.totalorder %s31, 1
    %p54 = por %p52, %p53
    %p56 = scmp.ne.s32.totalorder %s39, %s55
    %p57 = scmp.eq.s32.totalorder %s31, 0
    %p58 = por %p56, %p57
    %s60 = sadd.s32 %s59, 1
    %p63 = scmp.eq.s32.totalorder %s25, 1
    %p64 = scmp.ne.s32.totalorder %s59, %s61
    %p65 = scmp.eq.s32.totalorder %s25, 0
    %p66 = por %p64, %p65
    %p67 = scmp.ne.s32.totalorder %s59, %s61
    %p68 = scmp.eq.s32.totalorder %s30, 1
    %p69 = por %p67, %p68
    %p70 = scmp.ne.s32.totalorder %s61, %s62
    %p71 = scmp.eq.s32.totalorder %s30, 0
    %p72 = por %p70, %p71
    %p73 = scmp.ne.s32.totalorder %s61, %s62
    %p74 = scmp.eq.s32.totalorder %s31, 1
    %p75 = por %p73, %p74
    %p77 = scmp.ne.s32.totalorder %s62, %s76
    %p78 = scmp.eq.s32.totalorder %s31, 0
    %p79 = por %p77, %p78
    %s81 = sadd.s32 %s80, 1
    %p84 = scmp.eq.s32.totalorder %s25, 1
    %p85 = scmp.ne.s32.totalorder %s80, %s82
    %p86 = scmp.eq.s32.totalorder %s25, 0
    %p87 = por %p85, %p86
    %p88 = scmp.ne.s32.totalorder %s80, %s82
    %p89 = scmp.eq.s32.totalorder %s30, 1
    %p90 = por %p88, %p89
    %p91 = scmp.ne.s32.totalorder %s82, %s83
    %p92 = scmp.eq.s32.totalorder %s30, 0
    %p93 = por %p91, %p92
    %p94 = scmp.ne.s32.totalorder %s82, %s83
    %p95 = scmp.eq.s32.totalorder %s31, 1
    %p96 = por %p94, %p95
    %p98 = scmp.ne.s32.totalorder %s83, %s97
    %p99 = scmp.eq.s32.totalorder %s31, 0
    %p100 = por %p98, %p99
    %s102 = sadd.s32 %s101, 1
    %p105 = scmp.eq.s32.totalorder %s25, 1
    %p106 = scmp.ne.s32.totalorder %s101, %s103
    %p107 = scmp.eq.s32.totalorder %s25, 0
    %p108 = por %p106, %p107
    %p109 = scmp.ne.s32.totalorder %s101, %s103
    %p110 = scmp.eq.s32.totalorder %s30, 1
    %p111 = por %p109, %p110
    %p112 = scmp.ne.s32.totalorder %s103, %s104
    %p113 = scmp.eq.s32.totalorder %s30, 0
    %p114 = por %p112, %p113
    %p115 = scmp.ne.s32.totalorder %s103, %s104
    %p116 = scmp.eq.s32.totalorder %s31, 1
    %p117 = por %p115, %p116
    %p119 = scmp.ne.s32.totalorder %s104, %s118
    %p120 = scmp.eq.s32.totalorder %s31, 0
    %p121 = por %p119, %p120
    %s123 = sadd.s32 %s122, 1
    %p126 = scmp.eq.s32.totalorder %s25, 1
    %p127 = scmp.ne.s32.totalorder %s122, %s124
    %p128 = scmp.eq.s32.totalorder %s25, 0
    %p129 = por %p127, %p128
    %p130 = scmp.ne.s32.totalorder %s122, %s124
    %p131 = scmp.eq.s32.totalorder %s30, 1
    %p132 = por %p130, %p131
    %p133 = scmp.ne.s32.totalorder %s124, %s125
    %p134 = scmp.eq.s32.totalorder %s30, 0
    %p135 = por %p133, %p134
    %p136 = scmp.ne.s32.totalorder %s124, %s125
    %p137 = scmp.eq.s32.totalorder %s31, 1
    %p138 = por %p136, %p137
    %p140 = scmp.ne.s32.totalorder %s125, %s139
    %p141 = scmp.eq.s32.totalorder %s31, 0
    %p142 = por %p140, %p141
    %s144 = sadd.s32 %s143, 1
    %p147 = scmp.eq.s32.totalorder %s25, 1
    %p148 = scmp.ne.s32.totalorder %s143, %s145
    %p149 = scmp.eq.s32.totalorder %s25, 0
    %p150 = por %p148, %p149
    %p151 = scmp.ne.s32.totalorder %s143, %s145
    %p152 = scmp.eq.s32.totalorder %s30, 1
    %p153 = por %p151, %p152
    %p154 = scmp.ne.s32.totalorder %s145, %s146
    %p155 = scmp.eq.s32.totalorder %s30, 0
    %p156 = por %p154, %p155
    %p157 = scmp.ne.s32.totalorder %s145, %s146
    %p158 = scmp.eq.s32.totalorder %s31, 1
    %p159 = por %p157, %p158
    %p161 = scmp.ne.s32.totalorder %s146, %s160
    %p162 = scmp.eq.s32.totalorder %s31, 0
    %p163 = por %p161, %p162
    %s165 = sadd.s32 %s164, 1
    %p168 = scmp.eq.s32.totalorder %s25, 1
    %p169 = scmp.ne.s32.totalorder %s164, %s166
    %p170 = scmp.eq.s32.totalorder %s25, 0
    %p171 = por %p169, %p170
    %p172 = scmp.ne.s32.totalorder %s164, %s166
    %p173 = scmp.eq.s32.totalorder %s30, 1
    %p174 = por %p172, %p173
    %p175 = scmp.ne.s32.totalorder %s166, %s167
    %p176 = scmp.eq.s32.totalorder %s30, 0
    %p177 = por %p175, %p176
    %p178 = scmp.ne.s32.totalorder %s166, %s167
    %p179 = scmp.eq.s32.totalorder %s31, 1
    %p180 = por %p178, %p179
    %p182 = scmp.ne.s32.totalorder %s167, %s181
    %p183 = scmp.eq.s32.totalorder %s31, 0
    %p184 = por %p182, %p183
    %s186 = sadd.s32 %s185, 1
    %p189 = scmp.eq.s32.totalorder %s25, 1
    %p190 = scmp.ne.s32.totalorder %s185, %s187
    %p191 = scmp.eq.s32.totalorder %s25, 0
    %p192 = por %p190, %p191
    %p193 = scmp.ne.s32.totalorder %s185, %s187
    %p194 = scmp.eq.s32.totalorder %s30, 1
    %p195 = por %p193, %p194
    %p196 = scmp.ne.s32.totalorder %s187, %s188
    %p197 = scmp.eq.s32.totalorder %s30, 0
    %p198 = por %p196, %p197
    %p199 = scmp.ne.s32.totalorder %s187, %s188
    %p200 = scmp.eq.s32.totalorder %s31, 1
    %p201 = por %p199, %p200
    %p203 = scmp.ne.s32.totalorder %s188, %s202
    %p204 = scmp.eq.s32.totalorder %s31, 0
    %p205 = por %p203, %p204
    %s207 = sadd.s32 %s206, 1
    %p210 = scmp.eq.s32.totalorder %s25, 1
    %p211 = scmp.ne.s32.totalorder %s206, %s208
    %p212 = scmp.eq.s32.totalorder %s25, 0
    %p213 = por %p211, %p212
    %p214 = scmp.ne.s32.totalorder %s206, %s208
    %p215 = scmp.eq.s32.totalorder %s30, 1
    %p216 = por %p214, %p215
    %p217 = scmp.ne.s32.totalorder %s208, %s209
    %p218 = scmp.eq.s32.totalorder %s30, 0
    %p219 = por %p217, %p218
    %p220 = scmp.ne.s32.totalorder %s208, %s209
    %p221 = scmp.eq.s32.totalorder %s31, 1
    %p222 = por %p220, %p221
    %p224 = scmp.ne.s32.totalorder %s209, %s223
    %p225 = scmp.eq.s32.totalorder %s31, 0
    %p226 = por %p224, %p225
    %s228 = sadd.s32 %s227, 1
    %p231 = scmp.eq.s32.totalorder %s25, 1
    %p232 = scmp.ne.s32.totalorder %s227, %s229
    %p233 = scmp.eq.s32.totalorder %s25, 0
    %p234 = por %p232, %p233
    %p235 = scmp.ne.s32.totalorder %s227, %s229
    %p236 = scmp.eq.s32.totalorder %s30, 1
    %p237 = por %p235, %p236
    %p238 = scmp.ne.s32.totalorder %s229, %s230
    %p239 = scmp.eq.s32.totalorder %s30, 0
    %p240 = por %p238, %p239
    %p241 = scmp.ne.s32.totalorder %s229, %s230
    %p242 = scmp.eq.s32.totalorder %s31, 1
    %p243 = por %p241, %p242
    %p245 = scmp.ne.s32.totalorder %s230, %s244
    %p246 = scmp.eq.s32.totalorder %s31, 0
    %p247 = por %p245, %p246
    %s249 = sadd.s32 %s248, 1
    %p252 = scmp.eq.s32.totalorder %s25, 1
    %p253 = scmp.ne.s32.totalorder %s248, %s250
    %p254 = scmp.eq.s32.totalorder %s25, 0
    %p255 = por %p253, %p254
    %p256 = scmp.ne.s32.totalorder %s248, %s250
    %p257 = scmp.eq.s32.totalorder %s30, 1
    %p258 = por %p256, %p257
    %p259 = scmp.ne.s32.totalorder %s250, %s251
    %p260 = scmp.eq.s32.totalorder %s30, 0
    %p261 = por %p259, %p260
    %p262 = scmp.ne.s32.totalorder %s250, %s251
    %p263 = scmp.eq.s32.totalorder %s31, 1
    %p264 = por %p262, %p263
    %p266 = scmp.ne.s32.totalorder %s251, %s265
    %p267 = scmp.eq.s32.totalorder %s31, 0
    %p268 = por %p266, %p267
    %s270 = sadd.s32 %s269, 1
    %p273 = scmp.eq.s32.totalorder %s25, 1
    %p274 = scmp.ne.s32.totalorder %s269, %s271
    %p275 = scmp.eq.s32.totalorder %s25, 0
    %p276 = por %p274, %p275
    %p277 = scmp.ne.s32.totalorder %s269, %s271
    %p278 = scmp.eq.s32.totalorder %s30, 1
    %p279 = por %p277, %p278
    %p280 = scmp.ne.s32.totalorder %s271, %s272
    %p281 = scmp.eq.s32.totalorder %s30, 0
    %p282 = por %p280, %p281
    %p283 = scmp.ne.s32.totalorder %s271, %s272
    %p284 = scmp.eq.s32.totalorder %s31, 1
    %p285 = por %p283, %p284
    %p287 = scmp.ne.s32.totalorder %s272, %s286
    %p288 = scmp.eq.s32.totalorder %s31, 0
    %p289 = por %p287, %p288
    %s291 = sadd.s32 %s290, 1
    %p294 = scmp.eq.s32.totalorder %s25, 1
    %p295 = scmp.ne.s32.totalorder %s290, %s292
    %p296 = scmp.eq.s32.totalorder %s25, 0
    %p297 = por %p295, %p296
    %p298 = scmp.ne.s32.totalorder %s290, %s292
    %p299 = scmp.eq.s32.totalorder %s30, 1
    %p300 = por %p298, %p299
    %p301 = scmp.ne.s32.totalorder %s292, %s293
    %p302 = scmp.eq.s32.totalorder %s30, 0
    %p303 = por %p301, %p302
    %p304 = scmp.ne.s32.totalorder %s292, %s293
    %p305 = scmp.eq.s32.totalorder %s31, 1
    %p306 = por %p304, %p305
    %p308 = scmp.ne.s32.totalorder %s293, %s307
    %p309 = scmp.eq.s32.totalorder %s31, 0
    %p310 = por %p308, %p309
    %s311 = ssub.s32 %s25, %s32
    %p312 = scmp.eq.s32.totalorder %s311, 0
    %s314 = sadd.s32 %s313, 1
    %s315 = scalar_select %p312, %s313, %s314
    %p318 = pneg %p312
    %p319 = scmp.eq.s32.totalorder %s25, 1
    %p320 = por %p318, %p319
    %p321 = scmp.ne.s32.totalorder %s313, %s316
    %p322 = scmp.eq.s32.totalorder %s25, 0
    %p323 = por %p321, %p322
    %p324 = scmp.ne.s32.totalorder %s313, %s316
    %p325 = scmp.eq.s32.totalorder %s30, 1
    %p326 = por %p324, %p325
    %p327 = scmp.ne.s32.totalorder %s316, %s317
    %p328 = scmp.eq.s32.totalorder %s30, 0
    %p329 = por %p327, %p328
    %p330 = scmp.ne.s32.totalorder %s316, %s317
    %p331 = scmp.eq.s32.totalorder %s31, 1
    %p332 = por %p330, %p331
    %p334 = scmp.ne.s32.totalorder %s317, %s333
    %p335 = scmp.eq.s32.totalorder %s31, 0
    %p336 = por %p334, %p335
    %s337 = ssub.s32 %s25, %s32
    %p338 = scmp.eq.s32.totalorder %s337, 0
    %s340 = sadd.s32 %s339, 1
    %s341 = scalar_select %p338, %s339, %s340
    %p344 = pneg %p338
    %p345 = scmp.eq.s32.totalorder %s25, 1
    %p346 = por %p344, %p345
    %p347 = scmp.ne.s32.totalorder %s339, %s342
    %p348 = scmp.eq.s32.totalorder %s25, 0
    %p349 = por %p347, %p348
    %p350 = scmp.ne.s32.totalorder %s339, %s342
    %p351 = scmp.eq.s32.totalorder %s30, 1
    %p352 = por %p350, %p351
    %p353 = scmp.ne.s32.totalorder %s342, %s343
    %p354 = scmp.eq.s32.totalorder %s30, 0
    %p355 = por %p353, %p354
    %p356 = scmp.ne.s32.totalorder %s342, %s343
    %p357 = scmp.eq.s32.totalorder %s31, 1
    %p358 = por %p356, %p357
    %p360 = scmp.ne.s32.totalorder %s343, %s359
    %p361 = scmp.eq.s32.totalorder %s31, 0
    %p362 = por %p360, %p361
    %s363 = ssub.s32 %s25, %s32
    %p364 = scmp.eq.s32.totalorder %s363, 0
    %s366 = sadd.s32 %s365, 1
    %s367 = scalar_select %p364, %s365, %s366
    %p370 = pneg %p364
    %p371 = scmp.eq.s32.totalorder %s25, 1
    %p372 = por %p370, %p371
    %p373 = scmp.ne.s32.totalorder %s365, %s368
    %p374 = scmp.eq.s32.totalorder %s25, 0
    %p375 = por %p373, %p374
    %p376 = scmp.ne.s32.totalorder %s365, %s368
    %p377 = scmp.eq.s32.totalorder %s30, 1
    %p378 = por %p376, %p377
    %p379 = scmp.ne.s32.totalorder %s368, %s369
    %p380 = scmp.eq.s32.totalorder %s30, 0
    %p381 = por %p379, %p380
    %p382 = scmp.ne.s32.totalorder %s368, %s369
    %p383 = scmp.eq.s32.totalorder %s31, 1
    %p384 = por %p382, %p383
    %p386 = scmp.ne.s32.totalorder %s369, %s385
    %p387 = scmp.eq.s32.totalorder %s31, 0
    %p388 = por %p386, %p387
    %s389 = ssub.s32 %s25, %s32
    %p390 = scmp.eq.s32.totalorder %s389, 0
    %s392 = sadd.s32 %s391, 1
    %s393 = scalar_select %p390, %s391, %s392
    %p396 = pneg %p390
    %p397 = scmp.eq.s32.totalorder %s25, 1
    %p398 = por %p396, %p397
    %p399 = scmp.ne.s32.totalorder %s391, %s394
    %p400 = scmp.eq.s32.totalorder %s25, 0
    %p401 = por %p399, %p400
    %p402 = scmp.ne.s32.totalorder %s391, %s394
    %p403 = scmp.eq.s32.totalorder %s30, 1
    %p404 = por %p402, %p403
    %p405 = scmp.ne.s32.totalorder %s394, %s395
    %p406 = scmp.eq.s32.totalorder %s30, 0
    %p407 = por %p405, %p406
    %p408 = scmp.ne.s32.totalorder %s394, %s395
    %p409 = scmp.eq.s32.totalorder %s31, 1
    %p410 = por %p408, %p409
    %p412 = scmp.ne.s32.totalorder %s395, %s411
    %p413 = scmp.eq.s32.totalorder %s31, 0
    %p414 = por %p412, %p413
    %s415 = ssub.s32 %s25, %s32
    %p416 = scmp.eq.s32.totalorder %s415, 0
    %s418 = sadd.s32 %s417, 1
    %s419 = scalar_select %p416, %s417, %s418
    %p422 = pneg %p416
    %p423 = scmp.eq.s32.totalorder %s25, 1
    %p424 = por %p422, %p423
    %p425 = scmp.ne.s32.totalorder %s417, %s420
    %p426 = scmp.eq.s32.totalorder %s25, 0
    %p427 = por %p425, %p426
    %p428 = scmp.ne.s32.totalorder %s417, %s420
    %p429 = scmp.eq.s32.totalorder %s30, 1
    %p430 = por %p428, %p429
    %p431 = scmp.ne.s32.totalorder %s420, %s421
    %p432 = scmp.eq.s32.totalorder %s30, 0
    %p433 = por %p431, %p432
    %p434 = scmp.ne.s32.totalorder %s420, %s421
    %p435 = scmp.eq.s32.totalorder %s31, 1
    %p436 = por %p434, %p435
    %p438 = scmp.ne.s32.totalorder %s421, %s437
    %p439 = scmp.eq.s32.totalorder %s31, 0
    %p440 = por %p438, %p439
    %s441 = ssub.s32 %s25, %s32
    %p442 = scmp.eq.s32.totalorder %s441, 0
    %s444 = sadd.s32 %s443, 1
    %s445 = scalar_select %p442, %s443, %s444
    %p448 = pneg %p442
    %p449 = scmp.eq.s32.totalorder %s25, 1
    %p450 = por %p448, %p449
    %p451 = scmp.ne.s32.totalorder %s443, %s446
    %p452 = scmp.eq.s32.totalorder %s25, 0
    %p453 = por %p451, %p452
    %p454 = scmp.ne.s32.totalorder %s443, %s446
    %p455 = scmp.eq.s32.totalorder %s30, 1
    %p456 = por %p454, %p455
    %p457 = scmp.ne.s32.totalorder %s446, %s447
    %p458 = scmp.eq.s32.totalorder %s30, 0
    %p459 = por %p457, %p458
    %p460 = scmp.ne.s32.totalorder %s446, %s447
    %p461 = scmp.eq.s32.totalorder %s31, 1
    %p462 = por %p460, %p461
    %p464 = scmp.ne.s32.totalorder %s447, %s463
    %p465 = scmp.eq.s32.totalorder %s31, 0
    %p466 = por %p464, %p465
    %p467 = scmp.le.s32.totalorder 1, %s25
    %p468 = scmp.lt.s32.totalorder %s25, 3
    %p469 = pnand %p467, %p468
    %p470 = pneg %p469
    // Predicated region
    $region9: #{detection_model_forward.1} parent=5 // pred_check
      _
    $region10: #{detection_model_forward.1} parent=5 // pred_check_branch
      %472 = sbr.rel (%p469) target = $region12
    $region11: #{detection_model_forward.1} parent=5 // pred_region
      %s473 = ssub.s32 %s25, 1
      // Predicated region
      $region13: #{detection_model_forward.1} parent=11 // pred_check
        %p474 = pneg %p72
      $region14: #{detection_model_forward.1} parent=11 // pred_check_branch
        %476 = sbr.rel (%p474) target = $region16
      $region15: #{detection_model_forward.1} parent=11 // pred_region
        _
      $region16: #{detection_model_forward.1} parent=11 // pred_fallthru
        _
      // Predicated region
      $region17: #{detection_model_forward.1} parent=11 // pred_check
        %p477 = pneg %p93
      $region18: #{detection_model_forward.1} parent=11 // pred_check_branch
        %479 = sbr.rel (%p477) target = $region20
      $region19: #{detection_model_forward.1} parent=11 // pred_region
        _
      $region20: #{detection_model_forward.1} parent=11 // pred_fallthru
        _
      // Predicated region
      $region21: #{detection_model_forward.1} parent=11 // pred_check
        %p480 = pneg %p114
      $region22: #{detection_model_forward.1} parent=11 // pred_check_branch
        %482 = sbr.rel (%p480) target = $region24
      $region23: #{detection_model_forward.1} parent=11 // pred_region
        _
      $region24: #{detection_model_forward.1} parent=11 // pred_fallthru
        _
      // Predicated region
      $region25: #{detection_model_forward.1} parent=11 // pred_check
        %p483 = pneg %p135
      $region26: #{detection_model_forward.1} parent=11 // pred_check_branch
        %485 = sbr.rel (%p483) target = $region28
      $region27: #{detection_model_forward.1} parent=11 // pred_region
        _
      $region28: #{detection_model_forward.1} parent=11 // pred_fallthru
        _
      // Predicated region
      $region29: #{detection_model_forward.1} parent=11 // pred_check
        %p486 = pneg %p156
      $region30: #{detection_model_forward.1} parent=11 // pred_check_branch
        %488 = sbr.rel (%p486) target = $region32
      $region31: #{detection_model_forward.1} parent=11 // pred_region
        _
      $region32: #{detection_model_forward.1} parent=11 // pred_fallthru
        _
      // Predicated region
      $region33: #{detection_model_forward.1} parent=11 // pred_check
        %p489 = pneg %p177
      $region34: #{detection_model_forward.1} parent=11 // pred_check_branch
        %491 = sbr.rel (%p489) target = $region36
      $region35: #{detection_model_forward.1} parent=11 // pred_region
        _
      $region36: #{detection_model_forward.1} parent=11 // pred_fallthru
        _
      // Predicated region
      $region37: #{detection_model_forward.1} parent=11 // pred_check
        %p492 = pneg %p198
      $region38: #{detection_model_forward.1} parent=11 // pred_check_branch
        %494 = sbr.rel (%p492) target = $region40
      $region39: #{detection_model_forward.1} parent=11 // pred_region
        _
      $region40: #{detection_model_forward.1} parent=11 // pred_fallthru
        _
      // Predicated region
      $region41: #{detection_model_forward.1} parent=11 // pred_check
        %p495 = pneg %p219
      $region42: #{detection_model_forward.1} parent=11 // pred_check_branch
        %497 = sbr.rel (%p495) target = $region44
      $region43: #{detection_model_forward.1} parent=11 // pred_region
        _
      $region44: #{detection_model_forward.1} parent=11 // pred_fallthru
        _
      // Predicated region
      $region45: #{detection_model_forward.1} parent=11 // pred_check
        %p498 = pneg %p240
      $region46: #{detection_model_forward.1} parent=11 // pred_check_branch
        %500 = sbr.rel (%p498) target = $region48
      $region47: #{detection_model_forward.1} parent=11 // pred_region
        _
      $region48: #{detection_model_forward.1} parent=11 // pred_fallthru
        _
      // Predicated region
      $region49: #{detection_model_forward.1} parent=11 // pred_check
        %p501 = pneg %p261
      $region50: #{detection_model_forward.1} parent=11 // pred_check_branch
        %503 = sbr.rel (%p501) target = $region52
      $region51: #{detection_model_forward.1} parent=11 // pred_region
        _
      $region52: #{detection_model_forward.1} parent=11 // pred_fallthru
        _
      // Predicated region
      $region53: #{detection_model_forward.1} parent=11 // pred_check
        %p504 = pneg %p282
      $region54: #{detection_model_forward.1} parent=11 // pred_check_branch
        %506 = sbr.rel (%p504) target = $region56
      $region55: #{detection_model_forward.1} parent=11 // pred_region
        _
      $region56: #{detection_model_forward.1} parent=11 // pred_fallthru
        _
      // Predicated region
      $region57: #{detection_model_forward.1} parent=11 // pred_check
        %p507 = pneg %p303
      $region58: #{detection_model_forward.1} parent=11 // pred_check_branch
        %509 = sbr.rel (%p507) target = $region60
      $region59: #{detection_model_forward.1} parent=11 // pred_region
        _
      $region60: #{detection_model_forward.1} parent=11 // pred_fallthru
        _
    $region12: #{detection_model_forward.1} parent=5 // pred_fallthru
      _
    %p510 = scmp.lt.s32.totalorder %s25, 2
    // Predicated region
    $region61: #{detection_model_forward.1} parent=5 // pred_check
      %p511 = pneg %p510
    $region62: #{detection_model_forward.1} parent=5 // pred_check_branch
      %513 = sbr.rel (%p511) target = $region64
    $region63: #{detection_model_forward.1} parent=5 // pred_region
      // Predicated region
      $region65: #{detection_model_forward.1} parent=63 // pred_check
        %p514 = pneg %p45
      $region66: #{detection_model_forward.1} parent=63 // pred_check_branch
        %516 = sbr.rel (%p514) target = $region68
      $region67: #{detection_model_forward.1} parent=63 // pred_region
        %p517 = scmp.lt.s32.totalorder %s25, 1
        %s518 = scalar_select %p517, %s25, 1
        %s519 = smul.addr %s518, 6
        %s520 = smul.addr %s519, 8
        %s521 = scalar_lea.vmem %s0, %s520
      $region68: #{detection_model_forward.1} parent=63 // pred_fallthru
        _
    $region64: #{detection_model_forward.1} parent=5 // pred_fallthru
      _
    %p522 = scmp.le.s32.totalorder 1, %s25
    %p523 = scmp.lt.s32.totalorder %s25, 3
    %p524 = pnand %p522, %p523
    %p525 = pneg %p524
    // Predicated region
    $region69: #{detection_model_forward.1} parent=5 // pred_check
      _
    $region70: #{detection_model_forward.1} parent=5 // pred_check_branch
      %527 = sbr.rel (%p524) target = $region72
    $region71: #{detection_model_forward.1} parent=5 // pred_region
      %s528 = ssub.s32 %s25, 1
      %p529 = scmp.lt.s32.totalorder %s30, 1
      %s530 = scalar_select %p529, %s30, 1
      %s531 = smul.addr %s530, 6
      %s532 = smul.addr %s531, 8
      %s533 = scalar_lea.vmem %s0, %s532
      %p534 = pneg %p51
      %p535 = pneg %p48
      %p536 = pneg %p72
      %p537 = pneg %p69
      %p538 = pneg %p93
      %p539 = pneg %p90
      %p540 = pneg %p114
      %p541 = pneg %p111
      %p542 = pneg %p135
      %p543 = pneg %p132
      %p544 = pneg %p156
      %p545 = pneg %p153
      %p546 = pneg %p177
      %p547 = pneg %p174
      %p548 = pneg %p198
      %p549 = pneg %p195
      %p550 = pneg %p219
      %p551 = pneg %p216
      %p552 = pneg %p240
      %p553 = pneg %p237
      %p554 = pneg %p261
      %p555 = pneg %p258
      %p556 = pneg %p282
      %p557 = pneg %p279
      %p558 = pneg %p303
      %p559 = pneg %p300
      %p560 = pneg %p329
      %p561 = pneg %p326
      %p562 = scmp.lt.s32.totalorder %s30, 1
      %s563 = scalar_select %p562, %s30, 1
      %s564 = smul.addr %s563, 8
      %s565 = smul.addr %s564, 8
      %s566 = scalar_lea.vmem %s13, %s565
      %p567 = pneg %p355
      %p568 = pneg %p352
      %p569 = scmp.lt.s32.totalorder %s30, 1
      %s570 = scalar_select %p569, %s30, 1
      %s571 = smul.addr %s570, 8
      %s572 = smul.addr %s571, 8
      %s573 = scalar_lea.vmem %s14, %s572
      %p574 = pneg %p381
      %p575 = pneg %p378
      %p576 = scmp.lt.s32.totalorder %s30, 1
      %s577 = scalar_select %p576, %s30, 1
      %s578 = smul.addr %s577, 2
      %s579 = smul.addr %s578, 8
      %s580 = scalar_lea.vmem %s15, %s579
      %p581 = pneg %p407
      %p582 = pneg %p404
      %p583 = scmp.lt.s32.totalorder %s30, 1
      %s584 = scalar_select %p583, %s30, 1
      %s585 = smul.addr %s584, 2
      %s586 = smul.addr %s585, 8
      %s587 = scalar_lea.vmem %s16, %s586
      %p588 = pneg %p433
      %p589 = pneg %p430
      %p590 = scmp.lt.s32.totalorder %s30, 1
      %s591 = scalar_select %p590, %s30, 1
      %s592 = smul.addr %s591, 4
      %s593 = scalar_lea.vmem %s17, %s592
      %p594 = pneg %p459
      %p595 = pneg %p456
      %p596 = scmp.lt.s32.totalorder %s30, 1
      %s597 = scalar_select %p596, %s30, 1
      %s598 = smul.addr %s597, 4
      %s599 = scalar_lea.vmem %s18, %s598
      %p600 = scmp.lt.s32.totalorder %s30, 1
      %s601 = scalar_select %p600, %s30, 1
      %s602 = smul.addr %s601, 6
      %s603 = smul.addr %s602, 8
      %s604 = scalar_lea.vmem %s0, %s603
      %p605 = scmp.lt.s32.totalorder %s30, 1
      %s606 = scalar_select %p605, %s30, 1
      %s607 = smul.addr %s606, 8
      %s608 = smul.addr %s607, 8
      %s609 = scalar_lea.vmem %s13, %s608
      %p610 = scmp.lt.s32.totalorder %s30, 1
      %s611 = scalar_select %p610, %s30, 1
      %s612 = smul.addr %s611, 8
      %s613 = smul.addr %s612, 8
      %s614 = scalar_lea.vmem %s14, %s613
      %p615 = scmp.lt.s32.totalorder %s30, 1
      %s616 = scalar_select %p615, %s30, 1
      %s617 = smul.addr %s616, 2
      %s618 = smul.addr %s617, 8
      %s619 = scalar_lea.vmem %s15, %s618
      %p620 = scmp.lt.s32.totalorder %s30, 1
      %s621 = scalar_select %p620, %s30, 1
      %s622 = smul.addr %s621, 2
      %s623 = smul.addr %s622, 8
      %s624 = scalar_lea.vmem %s16, %s623
      %p625 = scmp.lt.s32.totalorder %s30, 1
      %s626 = scalar_select %p625, %s30, 1
      %s627 = smul.addr %s626, 4
      %s628 = scalar_lea.vmem %s17, %s627
      %p629 = scmp.lt.s32.totalorder %s30, 1
      %s630 = scalar_select %p629, %s30, 1
      %s631 = smul.addr %s630, 4
      %s632 = scalar_lea.vmem %s18, %s631
      %v634 = vld [vmem:[%s604] sm:$0xff]
      %v635 = vld [vmem:[%s604 + $0x8] sm:$0xff]
      %s636 = scalar_lea.vmem %s604, 24
      %v637 = vld [vmem:[%s636] sm:$0xff]
      %v638 = vld [vmem:[%s636 + $0x8] sm:$0xff]
      %v639 = vld [vmem:[%s604 + $0x1] sm:$0xff]
      %v640 = vld [vmem:[%s604 + $0x9] sm:$0xff]
      %v641 = vpack.c.bf16 %v635, %v634
      %v642 = vld [vmem:[%s1] sm:$0xf]
      %v643 = vld [vmem:[%s1 + $0x4] sm:$0xf]
      %v644 = vld [vmem:[%s1 + $0x8] sm:$0xf]
      %v645 = vld [vmem:[%s1 + $0xc] sm:$0xf]
      %v646 = vld [vmem:[%s1 + $0x10] sm:$0xf]
      %v647 = vld [vmem:[%s1 + $0x14] sm:$0xf]
      %v648 = vld [vmem:[%s1 + $0x18] sm:$0xf]
      %v649 = vld [vmem:[%s1 + $0x1c] sm:$0xf]
      %v650 = vld [vmem:[%s1 + $0x20] sm:$0xf]
      %v651 = vld [vmem:[%s1 + $0x24] sm:$0xf]
      %v652 = vld [vmem:[%s1 + $0x28] sm:$0xf]
      %v653 = vld [vmem:[%s1 + $0x2c] sm:$0xf]
      %v654 = vld [vmem:[%s1 + $0x30] sm:$0xf]
      %v655 = vld [vmem:[%s1 + $0x34] sm:$0xf]
      %v656 = vld [vmem:[%s1 + $0x38] sm:$0xf]
      %v657 = vld [vmem:[%s1 + $0x3c] sm:$0xf]
      %v658 = vpack.c.bf16 %v638, %v637
      %s659 = scalar_lea.vmem %s1, 64
      %v660 = vld [vmem:[%s659] sm:$0xf]
      %v661 = vld [vmem:[%s659 + $0x4] sm:$0xf]
      %v662 = vld [vmem:[%s659 + $0x8] sm:$0xf]
      %v663 = vld [vmem:[%s659 + $0xc] sm:$0xf]
      %v664 = vld [vmem:[%s659 + $0x10] sm:$0xf]
      %v665 = vld [vmem:[%s659 + $0x14] sm:$0xf]
      %v666 = vld [vmem:[%s659 + $0x18] sm:$0xf]
      %v667 = vld [vmem:[%s659 + $0x1c] sm:$0xf]
      %v668 = vld [vmem:[%s659 + $0x20] sm:$0xf]
      %v669 = vld [vmem:[%s659 + $0x24] sm:$0xf]
      %v670 = vld [vmem:[%s659 + $0x28] sm:$0xf]
      %v671 = vld [vmem:[%s659 + $0x2c] sm:$0xf]
      %v672 = vld [vmem:[%s659 + $0x30] sm:$0xf]
      %v673 = vld [vmem:[%s659 + $0x34] sm:$0xf]
      %v674 = vld [vmem:[%s659 + $0x38] sm:$0xf]
      %v675 = vld [vmem:[%s659 + $0x3c] sm:$0xf]
      %v692 = vunpack.c.l.b16 %v660
      %v693 = vunpack.c.l.b16 %v661
      %v694 = vunpack.c.l.b16 %v662
      %v695 = vunpack.c.l.b16 %v663
      %v696 = vunpack.c.l.b16 %v664
      %v697 = vunpack.c.l.b16 %v665
      %v698 = vunpack.c.l.b16 %v666
      %v699 = vunpack.c.l.b16 %v667
      %v700 = vunpack.c.l.b16 %v668
      %v701 = vunpack.c.l.b16 %v669
      %v702 = vunpack.c.l.b16 %v670
      %v703 = vunpack.c.l.b16 %v671
      %v704 = vunpack.c.l.b16 %v672
      %v705 = vunpack.c.l.b16 %v673
      %v706 = vunpack.c.l.b16 %v674
      %v707 = vunpack.c.l.b16 %v675
      %v708 = vpack.c.b16 %v693, %v692
      %v709 = vpack.c.b16 %v695, %v694
      %v710 = vpack.c.b16 %v697, %v696
      %v711 = vpack.c.b16 %v699, %v698
      %v712 = vpack.c.b16 %v701, %v700
      %v713 = vpack.c.b16 %v703, %v702
      %v714 = vpack.c.b16 %v705, %v704
      %v715 = vpack.c.b16 %v707, %v706
      %724 = vmatprep.subr.bf16.mxu0 0
      %725 = vmatpush1.bf16.msra.mxu0 %v715
      %726 = vmatprep.subr.bf16.mxu0 0
      %727 = vmatpush1.bf16.msra.mxu0 %v714
      %728 = vmatprep.subr.bf16.mxu0 0
      %729 = vmatpush1.bf16.msra.mxu0 %v713
      %730 = vmatprep.subr.bf16.mxu0 0
      %731 = vmatpush1.bf16.msra.mxu0 %v712
      %732 = vmatprep.subr.bf16.mxu0 0
      %733 = vmatpush1.bf16.msra.mxu0 %v711
      %734 = vmatprep.subr.bf16.mxu0 0
      %735 = vmatpush1.bf16.msra.mxu0 %v710
      %736 = vmatprep.subr.bf16.mxu0 0
      %737 = vmatpush1.bf16.msra.mxu0 %v709
      %738 = vmatprep.subr.bf16.mxu0 0
      %739 = vmatpush1.bf16.msra.mxu0 %v708
      %740 = vmatprep.subr.bf16.mxu0 0
      %741 = vmatpush2.bf16.msra.mxu0 0
      %742 = vmatprep.subr.bf16.mxu0 0
      %743 = vmatpush2.bf16.msra.mxu0 0
      %744 = vmatprep.subr.bf16.mxu0 0
      %745 = vmatpush2.bf16.msra.mxu0 0
      %746 = vmatprep.subr.bf16.mxu0 0
      %747 = vmatpush2.bf16.msra.mxu0 0
      %748 = vmatprep.subr.bf16.mxu0 0
      %749 = vmatpush2.bf16.msra.mxu0 0
      %750 = vmatprep.subr.bf16.mxu0 0
      %751 = vmatpush2.bf16.msra.mxu0 0
      %752 = vmatprep.subr.bf16.mxu0 0
      %753 = vmatpush2.bf16.msra.mxu0 0
      %754 = vmatprep.subr.bf16.mxu0 0
      %755 = vmatpush2.bf16.msra.mxu0 0
      %756 = vmatprep.mubr.bf16.mxu0 0
      %757 = vmatmul.mubr.bf16.gmra.mxu0 %v658
      %v758 = vpop.f32.mrf.mxu0
      %v759 = vadd.f32 0.0, %v758
      %v760 = vpop.f32.mrf.mxu0
      %v761 = vpop.f32.mrf.mxu0
      %v762 = vadd.f32 0.0, %v761
      %v763 = vpop.f32.mrf.mxu0
      %764 = vdwg.mxu0
      %v781 = vunpack.c.l.b16 %v642
      %v782 = vunpack.c.l.b16 %v643
      %v783 = vunpack.c.l.b16 %v644
      %v784 = vunpack.c.l.b16 %v645
      %v785 = vunpack.c.l.b16 %v646
      %v786 = vunpack.c.l.b16 %v647
      %v787 = vunpack.c.l.b16 %v648
      %v788 = vunpack.c.l.b16 %v649
      %v789 = vunpack.c.l.b16 %v650
      %v790 = vunpack.c.l.b16 %v651
      %v791 = vunpack.c.l.b16 %v652
      %v792 = vunpack.c.l.b16 %v653
      %v793 = vunpack.c.l.b16 %v654
      %v794 = vunpack.c.l.b16 %v655
      %v795 = vunpack.c.l.b16 %v656
      %v796 = vunpack.c.l.b16 %v657
      %v797 = vpack.c.b16 %v782, %v781
      %v798 = vpack.c.b16 %v784, %v783
      %v799 = vpack.c.b16 %v786, %v785
      %v800 = vpack.c.b16 %v788, %v787
      %v801 = vpack.c.b16 %v790, %v789
      %v802 = vpack.c.b16 %v792, %v791
      %v803 = vpack.c.b16 %v794, %v793
      %v804 = vpack.c.b16 %v796, %v795
      %813 = vmatprep.subr.bf16.mxu0 0
      %814 = vmatpush1.bf16.msra.mxu0 %v804
      %815 = vmatprep.subr.bf16.mxu0 0
      %816 = vmatpush1.bf16.msra.mxu0 %v803
      %817 = vmatprep.subr.bf16.mxu0 0
      %818 = vmatpush1.bf16.msra.mxu0 %v802
      %819 = vmatprep.subr.bf16.mxu0 0
      %820 = vmatpush1.bf16.msra.mxu0 %v801
      %821 = vmatprep.subr.bf16.mxu0 0
      %822 = vmatpush1.bf16.msra.mxu0 %v800
      %823 = vmatprep.subr.bf16.mxu0 0
      %824 = vmatpush1.bf16.msra.mxu0 %v799
      %825 = vmatprep.subr.bf16.mxu0 0
      %826 = vmatpush1.bf16.msra.mxu0 %v798
      %827 = vmatprep.subr.bf16.mxu0 0
      %828 = vmatpush1.bf16.msra.mxu0 %v797
      %829 = vmatprep.subr.bf16.mxu0 0
      %830 = vmatpush2.bf16.msra.mxu0 0
      %831 = vmatprep.subr.bf16.mxu0 0
      %832 = vmatpush2.bf16.msra.mxu0 0
      %833 = vmatprep.subr.bf16.mxu0 0
      %834 = vmatpush2.bf16.msra.mxu0 0
      %835 = vmatprep.subr.bf16.mxu0 0
      %836 = vmatpush2.bf16.msra.mxu0 0
      %837 = vmatprep.subr.bf16.mxu0 0
      %838 = vmatpush2.bf16.msra.mxu0 0
      %839 = vmatprep.subr.bf16.mxu0 0
      %840 = vmatpush2.bf16.msra.mxu0 0
      %841 = vmatprep.subr.bf16.mxu0 0
      %842 = vmatpush2.bf16.msra.mxu0 0
      %843 = vmatprep.subr.bf16.mxu0 0
      %844 = vmatpush2.bf16.msra.mxu0 0
      %845 = vmatprep.mubr.bf16.mxu0 0
      %846 = vmatmul.mubr.bf16.gmra.mxu0 %v641
      %v847 = vpop.f32.mrf.mxu0
      %v848 = vadd.f32 %v759, %v847
      %v849 = vpop.f32.mrf.mxu0
      %v850 = vpop.f32.mrf.mxu0
      %v851 = vadd.f32 %v762, %v850
      %v852 = vpop.f32.mrf.mxu0
      %853 = vdwg.mxu0
      %v854 = vpack.c.bf16 %v640, %v639
      %s855 = scalar_lea.vmem %s1, 128
      %v856 = vld [vmem:[%s855] sm:$0xf]
      %v857 = vld [vmem:[%s855 + $0x4] sm:$0xf]
      %v858 = vld [vmem:[%s855 + $0x8] sm:$0xf]
      %v859 = vld [vmem:[%s855 + $0xc] sm:$0xf]
      %v860 = vld [vmem:[%s855 + $0x10] sm:$0xf]
      %v861 = vld [vmem:[%s855 + $0x14] sm:$0xf]
      %v862 = vld [vmem:[%s855 + $0x18] sm:$0xf]
      %v863 = vld [vmem:[%s855 + $0x1c] sm:$0xf]
      %v864 = vld [vmem:[%s855 + $0x20] sm:$0xf]
      %v865 = vld [vmem:[%s855 + $0x24] sm:$0xf]
      %v866 = vld [vmem:[%s855 + $0x28] sm:$0xf]
      %v867 = vld [vmem:[%s855 + $0x2c] sm:$0xf]
      %v868 = vld [vmem:[%s855 + $0x30] sm:$0xf]
      %v869 = vld [vmem:[%s855 + $0x34] sm:$0xf]
      %v870 = vld [vmem:[%s855 + $0x38] sm:$0xf]
      %v871 = vld [vmem:[%s855 + $0x3c] sm:$0xf]
      %v888 = vunpack.c.l.b16 %v856
      %v889 = vunpack.c.l.b16 %v857
      %v890 = vunpack.c.l.b16 %v858
      %v891 = vunpack.c.l.b16 %v859
      %v892 = vunpack.c.l.b16 %v860
      %v893 = vunpack.c.l.b16 %v861
      %v894 = vunpack.c.l.b16 %v862
      %v895 = vunpack.c.l.b16 %v863
      %v896 = vunpack.c.l.b16 %v864
      %v897 = vunpack.c.l.b16 %v865
      %v898 = vunpack.c.l.b16 %v866
      %v899 = vunpack.c.l.b16 %v867
      %v900 = vunpack.c.l.b16 %v868
      %v901 = vunpack.c.l.b16 %v869
      %v902 = vunpack.c.l.b16 %v870
      %v903 = vunpack.c.l.b16 %v871
      %v904 = vpack.c.b16 %v889, %v888
      %v905 = vpack.c.b16 %v891, %v890
      %v906 = vpack.c.b16 %v893, %v892
      %v907 = vpack.c.b16 %v895, %v894
      %v908 = vpack.c.b16 %v897, %v896
      %v909 = vpack.c.b16 %v899, %v898
      %v910 = vpack.c.b16 %v901, %v900
      %v911 = vpack.c.b16 %v903, %v902
      %920 = vmatprep.subr.bf16.mxu0 0
      %921 = vmatpush1.bf16.msra.mxu0 %v911
      %922 = vmatprep.subr.bf16.mxu0 0
      %923 = vmatpush1.bf16.msra.mxu0 %v910
      %924 = vmatprep.subr.bf16.mxu0 0
      %925 = vmatpush1.bf16.msra.mxu0 %v909
      %926 = vmatprep.subr.bf16.mxu0 0
      %927 = vmatpush1.bf16.msra.mxu0 %v908
      %928 = vmatprep.subr.bf16.mxu0 0
      %929 = vmatpush1.bf16.msra.mxu0 %v907
      %930 = vmatprep.subr.bf16.mxu0 0
      %931 = vmatpush1.bf16.msra.mxu0 %v906
      %932 = vmatprep.subr.bf16.mxu0 0
      %933 = vmatpush1.bf16.msra.mxu0 %v905
      %934 = vmatprep.subr.bf16.mxu0 0
      %935 = vmatpush1.bf16.msra.mxu0 %v904
      %936 = vmatprep.subr.bf16.mxu0 0
      %937 = vmatpush2.bf16.msra.mxu0 0
      %938 = vmatprep.subr.bf16.mxu0 0
      %939 = vmatpush2.bf16.msra.mxu0 0
      %940 = vmatprep.subr.bf16.mxu0 0
      %941 = vmatpush2.bf16.msra.mxu0 0
      %942 = vmatprep.subr.bf16.mxu0 0
      %943 = vmatpush2.bf16.msra.mxu0 0
      %944 = vmatprep.subr.bf16.mxu0 0
      %945 = vmatpush2.bf16.msra.mxu0 0
      %946 = vmatprep.subr.bf16.mxu0 0
      %947 = vmatpush2.bf16.msra.mxu0 0
      %948 = vmatprep.subr.bf16.mxu0 0
      %949 = vmatpush2.bf16.msra.mxu0 0
      %950 = vmatprep.subr.bf16.mxu0 0
      %951 = vmatpush2.bf16.msra.mxu0 0
      %952 = vmatprep.mubr.bf16.mxu0 0
      %953 = vmatmul.mubr.bf16.gmra.mxu0 %v854
      %v954 = vpop.f32.mrf.mxu0
      %v955 = vadd.f32 0.0, %v954
      %v956 = vpop.f32.mrf.mxu0
      %v957 = vpop.f32.mrf.mxu0
      %v958 = vadd.f32 0.0, %v957
      %v959 = vpop.f32.mrf.mxu0
      %960 = vdwg.mxu0
      %v961 = vadd.f32 %v848, %v955
      %v962 = vadd.f32 %v851, %v958
      %v963 = vld [vmem:[%s2] sm:$0x1]
      %v965 = vlaneseq
      %v966 = vshrl.u32 %v965, 7
      %v967 = vsub.s32 0, %v966
      %v968 = vrot.slane %v963, %v967
      %v970 = vadd.f32 %v961, %v968
      %v971 = vadd.f32 %v962, %v968
      %v972 = vsub.f32 0.0, %v970
      %v973 = vsub.f32 0.0, %v971
      %v974 = vmul.f32 %v972, 1.442695
      %v975 = vpow.pop %v974
      %v976 = vmul.f32 %v973, 1.442695
      %v977 = vpow.pop %v976
      %v978 = vadd.f32 %v975, 1.0
      %v979 = vadd.f32 %v977, 1.0
      %v980 = vrcp.pop %v978
      %v981 = vrcp.pop %v979
      %v982 = vmul.f32 %v970, %v980
      %v983 = vmul.f32 %v971, %v981
      %v984 = vpack.c.bf16 %v983, %v982
      %v985 = vld [vmem:[%s7] sm:$0xff]
      %v986 = vld [vmem:[%s7 + $0x8] sm:$0xff]
      %v987 = vld [vmem:[%s7 + $0x10] sm:$0xff]
      %v988 = vld [vmem:[%s7 + $0x18] sm:$0xff]
      %v989 = vld [vmem:[%s7 + $0x20] sm:$0xff]
      %v990 = vld [vmem:[%s7 + $0x28] sm:$0xff]
      %v991 = vld [vmem:[%s7 + $0x30] sm:$0xff]
      %v992 = vld [vmem:[%s7 + $0x38] sm:$0xff]
      %v993 = vld [vmem:[%s7 + $0x40] sm:$0xff]
      %v994 = vld [vmem:[%s7 + $0x48] sm:$0xff]
      %v995 = vld [vmem:[%s7 + $0x50] sm:$0xff]
      %v996 = vld [vmem:[%s7 + $0x58] sm:$0xff]
      %v997 = vld [vmem:[%s7 + $0x60] sm:$0xff]
      %v998 = vld [vmem:[%s7 + $0x68] sm:$0xff]
      %v999 = vld [vmem:[%s7 + $0x70] sm:$0xff]
      %v1000 = vld [vmem:[%s7 + $0x78] sm:$0xff]
      %v1001 = vld [vmem:[%s7 + $0x80] sm:$0xff]
      %v1002 = vld [vmem:[%s7 + $0x88] sm:$0xff]
      %v1003 = vld [vmem:[%s7 + $0x90] sm:$0xff]
      %v1004 = vld [vmem:[%s7 + $0x98] sm:$0xff]
      %v1005 = vld [vmem:[%s7 + $0xa0] sm:$0xff]
      %v1006 = vld [vmem:[%s7 + $0xa8] sm:$0xff]
      %v1007 = vld [vmem:[%s7 + $0xb0] sm:$0xff]
      %v1008 = vld [vmem:[%s7 + $0xb8] sm:$0xff]
      %v1009 = vld [vmem:[%s7 + $0xc0] sm:$0xff]
      %v1010 = vld [vmem:[%s7 + $0xc8] sm:$0xff]
      %v1011 = vld [vmem:[%s7 + $0xd0] sm:$0xff]
      %v1012 = vld [vmem:[%s7 + $0xd8] sm:$0xff]
      %v1013 = vld [vmem:[%s7 + $0xe0] sm:$0xff]
      %v1014 = vld [vmem:[%s7 + $0xe8] sm:$0xff]
      %v1015 = vld [vmem:[%s7 + $0xf0] sm:$0xff]
      %v1016 = vld [vmem:[%s7 + $0xf8] sm:$0xff]
      %v1017 = vld [vmem:[%s8] sm:$0xf]
      %v1019 = vlaneseq
      %v1020 = vshrl.u32 %v1019, 7
      %v1021 = vsub.s32 0, %v1020
      %v1022 = vrot.slane %v1017, %v1021
      %v1023 = vlaneseq
      %v1024 = vshrl.u32 %v1023, 7
      %v1025 = vsub.s32 1, %v1024
      %v1026 = vrot.slane %v1017, %v1025
      %v1027 = vlaneseq
      %v1028 = vshrl.u32 %v1027, 7
      %v1029 = vsub.s32 2, %v1028
      %v1030 = vrot.slane %v1017, %v1029
      %v1031 = vlaneseq
      %v1032 = vshrl.u32 %v1031, 7
      %v1033 = vsub.s32 3, %v1032
      %v1034 = vrot.slane %v1017, %v1033
      %v1071 = vunpack.c.l.b16 %v985
      %v1072 = vunpack.c.h.b16 %v985
      %v1073 = vunpack.c.l.b16 %v986
      %v1074 = vunpack.c.h.b16 %v986
      %v1075 = vunpack.c.l.b16 %v987
      %v1076 = vunpack.c.h.b16 %v987
      %v1077 = vunpack.c.l.b16 %v988
      %v1078 = vunpack.c.h.b16 %v988
      %v1079 = vunpack.c.l.b16 %v989
      %v1080 = vunpack.c.h.b16 %v989
      %v1081 = vunpack.c.l.b16 %v990
      %v1082 = vunpack.c.h.b16 %v990
      %v1083 = vunpack.c.l.b16 %v991
      %v1084 = vunpack.c.h.b16 %v991
      %v1085 = vunpack.c.l.b16 %v992
      %v1086 = vunpack.c.h.b16 %v992
      %v1087 = vunpack.c.l.b16 %v993
      %v1088 = vunpack.c.h.b16 %v993
      %v1089 = vunpack.c.l.b16 %v994
      %v1090 = vunpack.c.h.b16 %v994
      %v1091 = vunpack.c.l.b16 %v995
      %v1092 = vunpack.c.h.b16 %v995
      %v1093 = vunpack.c.l.b16 %v996
      %v1094 = vunpack.c.h.b16 %v996
      %v1095 = vunpack.c.l.b16 %v997
      %v1096 = vunpack.c.h.b16 %v997
      %v1097 = vunpack.c.l.b16 %v998
      %v1098 = vunpack.c.h.b16 %v998
      %v1099 = vunpack.c.l.b16 %v999
      %v1100 = vunpack.c.h.b16 %v999
      %v1101 = vunpack.c.l.b16 %v1000
      %v1102 = vunpack.c.h.b16 %v1000
      %v1103 = vunpack.c.l.b16 %v1001
      %v1104 = vunpack.c.h.b16 %v1001
      %v1105 = vunpack.c.l.b16 %v1002
      %v1106 = vunpack.c.h.b16 %v1002
      %v1107 = vunpack.c.l.b16 %v1003
      %v1108 = vunpack.c.h.b16 %v1003
      %v1109 = vunpack.c.l.b16 %v1004
      %v1110 = vunpack.c.h.b16 %v1004
      %v1111 = vunpack.c.l.b16 %v1005
      %v1112 = vunpack.c.h.b16 %v1005
      %v1113 = vunpack.c.l.b16 %v1006
      %v1114 = vunpack.c.h.b16 %v1006
      %v1115 = vunpack.c.l.b16 %v1007
      %v1116 = vunpack.c.h.b16 %v1007
      %v1117 = vunpack.c.l.b16 %v1008
      %v1118 = vunpack.c.h.b16 %v1008
      %v1119 = vunpack.c.l.b16 %v1009
      %v1120 = vunpack.c.h.b16 %v1009
      %v1121 = vunpack.c.l.b16 %v1010
      %v1122 = vunpack.c.h.b16 %v1010
      %v1123 = vunpack.c.l.b16 %v1011
      %v1124 = vunpack.c.h.b16 %v1011
      %v1125 = vunpack.c.l.b16 %v1012
      %v1126 = vunpack.c.h.b16 %v1012
      %v1127 = vunpack.c.l.b16 %v1013
      %v1128 = vunpack.c.h.b16 %v1013
      %v1129 = vunpack.c.l.b16 %v1014
      %v1130 = vunpack.c.h.b16 %v1014
      %v1131 = vunpack.c.l.b16 %v1015
      %v1132 = vunpack.c.h.b16 %v1015
      %v1133 = vunpack.c.l.b16 %v1016
      %v1134 = vunpack.c.h.b16 %v1016
      %v1135 = vpack.c.b16 %v1075, %v1071
      %v1136 = vpack.c.b16 %v1076, %v1072
      %v1137 = vpack.c.b16 %v1077, %v1073
      %v1138 = vpack.c.b16 %v1078, %v1074
      %v1139 = vpack.c.b16 %v1083, %v1079
      %v1140 = vpack.c.b16 %v1084, %v1080
      %v1141 = vpack.c.b16 %v1085, %v1081
      %v1142 = vpack.c.b16 %v1086, %v1082
      %v1143 = vpack.c.b16 %v1091, %v1087
      %v1144 = vpack.c.b16 %v1092, %v1088
      %v1145 = vpack.c.b16 %v1093, %v1089
      %v1146 = vpack.c.b16 %v1094, %v1090
      %v1147 = vpack.c.b16 %v1099, %v1095
      %v1148 = vpack.c.b16 %v1100, %v1096
      %v1149 = vpack.c.b16 %v1101, %v1097
      %v1150 = vpack.c.b16 %v1102, %v1098
      %v1151 = vpack.c.b16 %v1107, %v1103
      %v1152 = vpack.c.b16 %v1108, %v1104
      %v1153 = vpack.c.b16 %v1109, %v1105
      %v1154 = vpack.c.b16 %v1110, %v1106
      %v1155 = vpack.c.b16 %v1115, %v1111
      %v1156 = vpack.c.b16 %v1116, %v1112
      %v1157 = vpack.c.b16 %v1117, %v1113
      %v1158 = vpack.c.b16 %v1118, %v1114
      %v1159 = vpack.c.b16 %v1123, %v1119
      %v1160 = vpack.c.b16 %v1124, %v1120
      %v1161 = vpack.c.b16 %v1125, %v1121
      %v1162 = vpack.c.b16 %v1126, %v1122
      %v1163 = vpack.c.b16 %v1131, %v1127
      %v1164 = vpack.c.b16 %v1132, %v1128
      %v1165 = vpack.c.b16 %v1133, %v1129
      %v1166 = vpack.c.b16 %v1134, %v1130
      %1199 = vmatprep.subr.bf16.mxu0 %v1164
      %1200 = vmatpush1.bf16.msra.mxu0 %v1163
      %1201 = vmatprep.subr.bf16.mxu0 %v1160
      %1202 = vmatpush1.bf16.msra.mxu0 %v1159
      %1203 = vmatprep.subr.bf16.mxu0 %v1156
      %1204 = vmatpush1.bf16.msra.mxu0 %v1155
      %1205 = vmatprep.subr.bf16.mxu0 %v1152
      %1206 = vmatpush1.bf16.msra.mxu0 %v1151
      %1207 = vmatprep.subr.bf16.mxu0 %v1148
      %1208 = vmatpush1.bf16.msra.mxu0 %v1147
      %1209 = vmatprep.subr.bf16.mxu0 %v1144
      %1210 = vmatpush1.bf16.msra.mxu0 %v1143
      %1211 = vmatprep.subr.bf16.mxu0 %v1140
      %1212 = vmatpush1.bf16.msra.mxu0 %v1139
      %1213 = vmatprep.subr.bf16.mxu0 %v1136
      %1214 = vmatpush1.bf16.msra.mxu0 %v1135
      %1215 = vmatprep.subr.bf16.mxu0 0
      %1216 = vmatpush2.bf16.msra.mxu0 0
      %1217 = vmatprep.subr.bf16.mxu0 0
      %1218 = vmatpush2.bf16.msra.mxu0 0
      %1219 = vmatprep.subr.bf16.mxu0 0
      %1220 = vmatpush2.bf16.msra.mxu0 0
      %1221 = vmatprep.subr.bf16.mxu0 0
      %1222 = vmatpush2.bf16.msra.mxu0 0
      %1223 = vmatprep.subr.bf16.mxu0 0
      %1224 = vmatpush2.bf16.msra.mxu0 0
      %1225 = vmatprep.subr.bf16.mxu0 0
      %1226 = vmatpush2.bf16.msra.mxu0 0
      %1227 = vmatprep.subr.bf16.mxu0 0
      %1228 = vmatpush2.bf16.msra.mxu0 0
      %1229 = vmatprep.subr.bf16.mxu0 0
      %1230 = vmatpush2.bf16.msra.mxu0 0
      %1231 = vmatprep.mubr.bf16.mxu0 0
      %1232 = vmatmul.mubr.bf16.gmra.mxu0 %v984
      %v1233 = vpop.f32.mrf.mxu0
      %v1234 = vadd.f32 %v1022, %v1233
      %v1235 = vpop.f32.mrf.mxu0
      %v1236 = vadd.f32 %v1026, %v1235
      %v1237 = vpop.f32.mrf.mxu0
      %v1238 = vadd.f32 %v1022, %v1237
      %v1239 = vpop.f32.mrf.mxu0
      %v1240 = vadd.f32 %v1026, %v1239
      %1241 = vdwg.mxu0
      %1242 = vmatprep.subr.bf16.mxu0 %v1166
      %1243 = vmatpush1.bf16.msra.mxu0 %v1165
      %1244 = vmatprep.subr.bf16.mxu0 %v1162
      %1245 = vmatpush1.bf16.msra.mxu0 %v1161
      %1246 = vmatprep.subr.bf16.mxu0 %v1158
      %1247 = vmatpush1.bf16.msra.mxu0 %v1157
      %1248 = vmatprep.subr.bf16.mxu0 %v1154
      %1249 = vmatpush1.bf16.msra.mxu0 %v1153
      %1250 = vmatprep.subr.bf16.mxu0 %v1150
      %1251 = vmatpush1.bf16.msra.mxu0 %v1149
      %1252 = vmatprep.subr.bf16.mxu0 %v1146
      %1253 = vmatpush1.bf16.msra.mxu0 %v1145
      %1254 = vmatprep.subr.bf16.mxu0 %v1142
      %1255 = vmatpush1.bf16.msra.mxu0 %v1141
      %1256 = vmatprep.subr.bf16.mxu0 %v1138
      %1257 = vmatpush1.bf16.msra.mxu0 %v1137
      %1258 = vmatprep.subr.bf16.mxu0 0
      %1259 = vmatpush2.bf16.msra.mxu0 0
      %1260 = vmatprep.subr.bf16.mxu0 0
      %1261 = vmatpush2.bf16.msra.mxu0 0
      %1262 = vmatprep.subr.bf16.mxu0 0
      %1263 = vmatpush2.bf16.msra.mxu0 0
      %1264 = vmatprep.subr.bf16.mxu0 0
      %1265 = vmatpush2.bf16.msra.mxu0 0
      %1266 = vmatprep.subr.bf16.mxu0 0
      %1267 = vmatpush2.bf16.msra.mxu0 0
      %1268 = vmatprep.subr.bf16.mxu0 0
      %1269 = vmatpush2.bf16.msra.mxu0 0
      %1270 = vmatprep.subr.bf16.mxu0 0
      %1271 = vmatpush2.bf16.msra.mxu0 0
      %1272 = vmatprep.subr.bf16.mxu0 0
      %1273 = vmatpush2.bf16.msra.mxu0 0
      %1274 = vmatprep.mubr.bf16.mxu0 0
      %1275 = vmatmul.mubr.bf16.gmra.mxu0 %v984
      %v1276 = vpop.f32.mrf.mxu0
      %v1277 = vadd.f32 %v1030, %v1276
      %v1278 = vpop.f32.mrf.mxu0
      %v1279 = vadd.f32 %v1034, %v1278
      %v1280 = vpop.f32.mrf.mxu0
      %v1281 = vadd.f32 %v1030, %v1280
      %v1282 = vpop.f32.mrf.mxu0
      %v1283 = vadd.f32 %v1034, %v1282
      %1284 = vdwg.mxu0
      %1285 = vst [vmem:[%s609] sm:$0xff] %v1234
      %1286 = vst [vmem:[%s609 + $0x8] sm:$0xff] %v1236
      %1287 = vst [vmem:[%s609 + $0x10] sm:$0xff] %v1277
      %1288 = vst [vmem:[%s609 + $0x18] sm:$0xff] %v1279
      %1289 = vst [vmem:[%s609 + $0x20] sm:$0xff] %v1238
      %1290 = vst [vmem:[%s609 + $0x28] sm:$0xff] %v1240
      %1291 = vst [vmem:[%s609 + $0x30] sm:$0xff] %v1281
      %1292 = vst [vmem:[%s609 + $0x38] sm:$0xff] %v1283
      %v1293 = vlaneseq
      %v1294 = vshrl.u32 %v1293, 7
      %v1295 = vadd.s32 %v1294, 8
      %v1296 = vlaneseq
      %v1297 = vand.u32 %v1296, 127
      %v1298 = vadd.s32 %v1297, 128
      %v1299 = vadd.s32 %v1297, 256
      %v1300 = vadd.s32 %v1297, 384
      %v1301 = vand.u32 %v1297, 15
      %v1302 = vand.u32 %v1298, 15
      %v1303 = vand.u32 %v1299, 15
      %v1304 = vand.u32 %v1300, 15
      %v1305 = vshra.s32 %v1297, 4
      %v1306 = vshra.s32 %v1298, 4
      %v1307 = vshra.s32 %v1299, 4
      %v1308 = vshra.s32 %v1300, 4
      %vm1309 = vcmp.ge.s32.totalorder %v1305, 9
      %vm1310 = vcmp.ge.s32.totalorder %v1306, 9
      %vm1311 = vcmp.ge.s32.totalorder %v1307, 9
      %vm1312 = vcmp.ge.s32.totalorder %v1308, 9
      %v1313 = vsel %vm1309, 1, 0
      %v1314 = vsel %vm1310, 1, 0
      %v1315 = vsel %vm1311, 1, 0
      %v1316 = vsel %vm1312, 1, 0
      %vm1317 = vcmp.ge.s32.totalorder %v1305, 18
      %vm1318 = vcmp.ge.s32.totalorder %v1306, 18
      %vm1319 = vcmp.ge.s32.totalorder %v1307, 18
      %vm1320 = vcmp.ge.s32.totalorder %v1308, 18
      %v1321 = vsel %vm1317, 1, 0
      %v1322 = vsel %vm1318, 1, 0
      %v1323 = vsel %vm1319, 1, 0
      %v1324 = vsel %vm1320, 1, 0
      %v1325 = vadd.s32 %v1313, %v1321
      %v1326 = vadd.s32 %v1314, %v1322
      %v1327 = vadd.s32 %v1315, %v1323
      %v1328 = vadd.s32 %v1316, %v1324
      %v1329 = vmul.u32 %v1325, 9
      %v1330 = vmul.u32 %v1326, 9
      %v1331 = vmul.u32 %v1327, 9
      %v1332 = vmul.u32 %v1328, 9
      %v1333 = vsub.s32 %v1305, %v1329
      %v1334 = vsub.s32 %v1306, %v1330
      %v1335 = vsub.s32 %v1307, %v1331
      %v1336 = vsub.s32 %v1308, %v1332
      %v1337 = vsub.f32 0.0, %v1234
      %v1338 = vsub.f32 0.0, %v1236
      %v1339 = vsub.f32 0.0, %v1277
      %v1340 = vsub.f32 0.0, %v1279
      %v1341 = vsub.f32 0.0, %v1238
      %v1342 = vsub.f32 0.0, %v1240
      %v1343 = vsub.f32 0.0, %v1281
      %v1344 = vsub.f32 0.0, %v1283
      %v1345 = vmul.f32 %v1337, 1.442695
      %v1346 = vpow.pop %v1345
      %v1347 = vmul.f32 %v1338, 1.442695
      %v1348 = vpow.pop %v1347
      %v1349 = vmul.f32 %v1339, 1.442695
      %v1350 = vpow.pop %v1349
      %v1351 = vmul.f32 %v1340, 1.442695
      %v1352 = vpow.pop %v1351
      %v1353 = vmul.f32 %v1341, 1.442695
      %v1354 = vpow.pop %v1353
      %v1355 = vmul.f32 %v1342, 1.442695
      %v1356 = vpow.pop %v1355
      %v1357 = vmul.f32 %v1343, 1.442695
      %v1358 = vpow.pop %v1357
      %v1359 = vmul.f32 %v1344, 1.442695
      %v1360 = vpow.pop %v1359
      %v1361 = vadd.f32 %v1346, 1.0
      %v1362 = vadd.f32 %v1348, 1.0
      %v1363 = vadd.f32 %v1350, 1.0
      %v1364 = vadd.f32 %v1352, 1.0
      %v1365 = vadd.f32 %v1354, 1.0
      %v1366 = vadd.f32 %v1356, 1.0
      %v1367 = vadd.f32 %v1358, 1.0
      %v1368 = vadd.f32 %v1360, 1.0
      %v1369 = vrcp.pop %v1361
      %v1370 = vrcp.pop %v1362
      %v1371 = vrcp.pop %v1363
      %v1372 = vrcp.pop %v1364
      %v1373 = vrcp.pop %v1365
      %v1374 = vrcp.pop %v1366
      %v1375 = vrcp.pop %v1367
      %v1376 = vrcp.pop %v1368
      %vm1377 = vcmp.eq.s32.totalorder %v1333, 0
      %vm1378 = vcmp.eq.s32.totalorder %v1334, 0
      %vm1379 = vcmp.eq.s32.totalorder %v1335, 0
      %vm1380 = vcmp.eq.s32.totalorder %v1336, 0
      %v1381 = vsel %vm1377, %v1301, %v1294
      %v1382 = vsel %vm1378, %v1302, %v1294
      %v1383 = vsel %vm1379, %v1303, %v1294
      %v1384 = vsel %vm1380, %v1304, %v1294
      %v1385 = vsel %vm1377, %v1301, %v1295
      %v1386 = vsel %vm1378, %v1302, %v1295
      %v1387 = vsel %vm1379, %v1303, %v1295
      %v1388 = vsel %vm1380, %v1304, %v1295
      %v1389 = vcvt.s32.f32 %v1381
      %v1390 = vcvt.s32.f32 %v1382
      %v1391 = vcvt.s32.f32 %v1383
      %v1392 = vcvt.s32.f32 %v1384
      %v1393 = vcvt.s32.f32 %v1385
      %v1394 = vcvt.s32.f32 %v1386
      %v1395 = vcvt.s32.f32 %v1387
      %v1396 = vcvt.s32.f32 %v1388
      %v1397 = vsub.f32 %v1389, 0.5
      %v1398 = vsub.f32 %v1390, 0.5
      %v1399 = vsub.f32 %v1391, 0.5
      %v1400 = vsub.f32 %v1392, 0.5
      %v1401 = vsub.f32 %v1393, 0.5
      %v1402 = vsub.f32 %v1394, 0.5
      %v1403 = vsub.f32 %v1395, 0.5
      %v1404 = vsub.f32 %v1396, 0.5
      %v1405 = vmul.f32 %v1369, 2.0
      %v1406 = vmul.f32 %v1370, 2.0
      %v1407 = vmul.f32 %v1371, 2.0
      %v1408 = vmul.f32 %v1372, 2.0
      %v1409 = vmul.f32 %v1373, 2.0
      %v1410 = vmul.f32 %v1374, 2.0
      %v1411 = vmul.f32 %v1375, 2.0
      %v1412 = vmul.f32 %v1376, 2.0
      %v1413 = vadd.f32 %v1405, %v1397
      %v1414 = vadd.f32 %v1406, %v1398
      %v1415 = vadd.f32 %v1407, %v1399
      %v1416 = vadd.f32 %v1408, %v1400
      %v1417 = vadd.f32 %v1409, %v1401
      %v1418 = vadd.f32 %v1410, %v1402
      %v1419 = vadd.f32 %v1411, %v1403
      %v1420 = vadd.f32 %v1412, %v1404
      %v1421 = vmul.f32 %v1413, 2.0
      %v1422 = vmul.f32 %v1414, 2.0
      %v1423 = vmul.f32 %v1415, 2.0
      %v1424 = vmul.f32 %v1416, 2.0
      %v1425 = vmul.f32 %v1417, 2.0
      %v1426 = vmul.f32 %v1418, 2.0
      %v1427 = vmul.f32 %v1419, 2.0
      %v1428 = vmul.f32 %v1420, 2.0
      %vm1429 = vcmp.eq.s32.totalorder %v1321, 1
      %vm1430 = vcmp.eq.s32.totalorder %v1322, 1
      %vm1431 = vcmp.eq.s32.totalorder %v1323, 1
      %vm1432 = vcmp.eq.s32.totalorder %v1324, 1
      %vm1433 = vcmp.eq.s32.totalorder %v1313, 1
      %vm1434 = vcmp.eq.s32.totalorder %v1314, 1
      %vm1435 = vcmp.eq.s32.totalorder %v1315, 1
      %vm1436 = vcmp.eq.s32.totalorder %v1316, 1
      %v1437 = vsel %vm1433, 16.0, 10.0
      %v1438 = vsel %vm1434, 16.0, 10.0
      %v1439 = vsel %vm1435, 16.0, 10.0
      %v1440 = vsel %vm1436, 16.0, 10.0
      %v1441 = vsel %vm1429, 33.0, %v1437
      %v1442 = vsel %vm1430, 33.0, %v1438
      %v1443 = vsel %vm1431, 33.0, %v1439
      %v1444 = vsel %vm1432, 33.0, %v1440
      %v1445 = vsel %vm1433, 30.0, 13.0
      %v1446 = vsel %vm1434, 30.0, 13.0
      %v1447 = vsel %vm1435, 30.0, 13.0
      %v1448 = vsel %vm1436, 30.0, 13.0
      %v1449 = vsel %vm1429, 23.0, %v1445
      %v1450 = vsel %vm1430, 23.0, %v1446
      %v1451 = vsel %vm1431, 23.0, %v1447
      %v1452 = vsel %vm1432, 23.0, %v1448
      %v1453 = vmul.f32 %v1405, %v1405
      %v1454 = vmul.f32 %v1406, %v1406
      %v1455 = vmul.f32 %v1407, %v1407
      %v1456 = vmul.f32 %v1408, %v1408
      %v1457 = vmul.f32 %v1409, %v1409
      %v1458 = vmul.f32 %v1410, %v1410
      %v1459 = vmul.f32 %v1411, %v1411
      %v1460 = vmul.f32 %v1412, %v1412
      %vm1461 = vcmp.eq.s32.totalorder %v1333, 2
      %vm1462 = vcmp.eq.s32.totalorder %v1334, 2
      %vm1463 = vcmp.eq.s32.totalorder %v1335, 2
      %vm1464 = vcmp.eq.s32.totalorder %v1336, 2
      %v1465 = vsel %vm1461, %v1441, %v1449
      %v1466 = vsel %vm1462, %v1442, %v1450
      %v1467 = vsel %vm1463, %v1443, %v1451
      %v1468 = vsel %vm1464, %v1444, %v1452
      %v1469 = vmul.f32 %v1453, %v1465
      %v1470 = vmul.f32 %v1454, %v1466
      %v1471 = vmul.f32 %v1455, %v1467
      %v1472 = vmul.f32 %v1456, %v1468
      %v1473 = vmul.f32 %v1457, %v1465
      %v1474 = vmul.f32 %v1458, %v1466
      %v1475 = vmul.f32 %v1459, %v1467
      %v1476 = vmul.f32 %v1460, %v1468
      %vm1477 = vcmp.lt.s32.totalorder %v1333, 2
      %vm1478 = vcmp.lt.s32.totalorder %v1334, 2
      %vm1479 = vcmp.lt.s32.totalorder %v1335, 2
      %vm1480 = vcmp.lt.s32.totalorder %v1336, 2
      %vm1481 = vcmp.lt.s32.totalorder %v1333, 4
      %vm1482 = vcmp.lt.s32.totalorder %v1334, 4
      %vm1483 = vcmp.lt.s32.totalorder %v1335, 4
      %vm1484 = vcmp.lt.s32.totalorder %v1336, 4
      %v1485 = vsel %vm1481, %v1469, %v1369
      %v1486 = vsel %vm1482, %v1470, %v1370
      %v1487 = vsel %vm1483, %v1471, %v1371
      %v1488 = vsel %vm1484, %v1472, %v1372
      %v1489 = vsel %vm1481, %v1473, %v1373
      %v1490 = vsel %vm1482, %v1474, %v1374
      %v1491 = vsel %vm1483, %v1475, %v1375
      %v1492 = vsel %vm1484, %v1476, %v1376
      %v1493 = vsel %vm1477, %v1421, %v1485
      %v1494 = vsel %vm1478, %v1422, %v1486
      %v1495 = vsel %vm1479, %v1423, %v1487
      %v1496 = vsel %vm1480, %v1424, %v1488
      %v1497 = vsel %vm1477, %v1425, %v1489
      %v1498 = vsel %vm1478, %v1426, %v1490
      %v1499 = vsel %vm1479, %v1427, %v1491
      %v1500 = vsel %vm1480, %v1428, %v1492
      %1501 = vst [vmem:[%s614] sm:$0xff] %v1493
      %1502 = vst [vmem:[%s614 + $0x8] sm:$0xff] %v1494
      %1503 = vst [vmem:[%s614 + $0x10] sm:$0xff] %v1495
      %1504 = vst [vmem:[%s614 + $0x18] sm:$0xff] %v1496
      %1505 = vst [vmem:[%s614 + $0x20] sm:$0xff] %v1497
      %1506 = vst [vmem:[%s614 + $0x28] sm:$0xff] %v1498
      %1507 = vst [vmem:[%s614 + $0x30] sm:$0xff] %v1499
      %1508 = vst [vmem:[%s614 + $0x38] sm:$0xff] %v1500
      %1509 = vst [vmem:[#allocation2] sm:$0x1] 0.0
      %s1510 = scalar_lea.vmem [#allocation2], 16
      %1511 = vst [vmem:[%s1510] sm:$0x1] %v982
      %1512 = vst [vmem:[#allocation2] sm:$0x2] %v982
      %1513 = vst [vmem:[%s1510 - $0x1] sm:$0x4] %v982
      %1514 = vst [vmem:[#allocation2 - $0x1] sm:$0x8] %v982
      %1515 = vst [vmem:[%s1510 - $0x2] sm:$0x10] %v982
      %1516 = vst [vmem:[#allocation2 - $0x2] sm:$0x20] %v982
      %1517 = vst [vmem:[%s1510 - $0x3] sm:$0x40] %v982
      %1518 = vst [vmem:[#allocation2 - $0x3] sm:$0x80] %v982
      %1519 = vst [vmem:[%s1510 + $0x4] sm:$0x1] %v983
      %1520 = vst [vmem:[#allocation2 + $0x4] sm:$0x2] %v983
      %1521 = vst [vmem:[%s1510 + $0x3] sm:$0x4] %v983
      %1522 = vst [vmem:[#allocation2 + $0x3] sm:$0x8] %v983
      %1523 = vst [vmem:[%s1510 + $0x2] sm:$0x10] %v983
      %1524 = vst [vmem:[#allocation2 + $0x2] sm:$0x20] %v983
      %1525 = vst [vmem:[%s1510 + $0x1] sm:$0x40] %v983
      %1526 = vst [vmem:[#allocation2 + $0x1] sm:$0x80] %v983
      %v1527 = vld [vmem:[#allocation2] sm:$0xff]
      %v1528 = vld [vmem:[%s1510] sm:$0xff]
      %v1529 = vld [vmem:[#allocation2 + $0x1] sm:$0xff]
      %v1530 = vpack.c.bf16 %v1527, %v1527
      %v1531 = vld [vmem:[%s3] sm:$0xf]
      %v1532 = vld [vmem:[%s3 + $0x4] sm:$0xf]
      %v1533 = vld [vmem:[%s3 + $0x8] sm:$0xf]
      %v1534 = vld [vmem:[%s3 + $0xc] sm:$0xf]
      %v1535 = vld [vmem:[%s3 + $0x10] sm:$0xf]
      %v1536 = vld [vmem:[%s3 + $0x14] sm:$0xf]
      %v1537 = vld [vmem:[%s3 + $0x18] sm:$0xf]
      %v1538 = vld [vmem:[%s3 + $0x1c] sm:$0xf]
      %v1539 = vld [vmem:[%s3 + $0x20] sm:$0xf]
      %v1540 = vld [vmem:[%s3 + $0x24] sm:$0xf]
      %v1541 = vld [vmem:[%s3 + $0x28] sm:$0xf]
      %v1542 = vld [vmem:[%s3 + $0x2c] sm:$0xf]
      %v1543 = vld [vmem:[%s3 + $0x30] sm:$0xf]
      %v1544 = vld [vmem:[%s3 + $0x34] sm:$0xf]
      %v1545 = vld [vmem:[%s3 + $0x38] sm:$0xf]
      %v1546 = vld [vmem:[%s3 + $0x3c] sm:$0xf]
      %v1547 = vpack.c.bf16 %v1528, %v1528
      %s1548 = scalar_lea.vmem %s3, 64
      %v1549 = vld [vmem:[%s1548] sm:$0xf]
      %v1550 = vld [vmem:[%s1548 + $0x4] sm:$0xf]
      %v1551 = vld [vmem:[%s1548 + $0x8] sm:$0xf]
      %v1552 = vld [vmem:[%s1548 + $0xc] sm:$0xf]
      %v1553 = vld [vmem:[%s1548 + $0x10] sm:$0xf]
      %v1554 = vld [vmem:[%s1548 + $0x14] sm:$0xf]
      %v1555 = vld [vmem:[%s1548 + $0x18] sm:$0xf]
      %v1556 = vld [vmem:[%s1548 + $0x1c] sm:$0xf]
      %v1557 = vld [vmem:[%s1548 + $0x20] sm:$0xf]
      %v1558 = vld [vmem:[%s1548 + $0x24] sm:$0xf]
      %v1559 = vld [vmem:[%s1548 + $0x28] sm:$0xf]
      %v1560 = vld [vmem:[%s1548 + $0x2c] sm:$0xf]
      %v1561 = vld [vmem:[%s1548 + $0x30] sm:$0xf]
      %v1562 = vld [vmem:[%s1548 + $0x34] sm:$0xf]
      %v1563 = vld [vmem:[%s1548 + $0x38] sm:$0xf]
      %v1564 = vld [vmem:[%s1548 + $0x3c] sm:$0xf]
      %v1581 = vunpack.c.l.b16 %v1549
      %v1582 = vunpack.c.l.b16 %v1550
      %v1583 = vunpack.c.l.b16 %v1551
      %v1584 = vunpack.c.l.b16 %v1552
      %v1585 = vunpack.c.l.b16 %v1553
      %v1586 = vunpack.c.l.b16 %v1554
      %v1587 = vunpack.c.l.b16 %v1555
      %v1588 = vunpack.c.l.b16 %v1556
      %v1589 = vunpack.c.l.b16 %v1557
      %v1590 = vunpack.c.l.b16 %v1558
      %v1591 = vunpack.c.l.b16 %v1559
      %v1592 = vunpack.c.l.b16 %v1560
      %v1593 = vunpack.c.l.b16 %v1561
      %v1594 = vunpack.c.l.b16 %v1562
      %v1595 = vunpack.c.l.b16 %v1563
      %v1596 = vunpack.c.l.b16 %v1564
      %v1597 = vpack.c.b16 %v1582, %v1581
      %v1598 = vpack.c.b16 %v1584, %v1583
      %v1599 = vpack.c.b16 %v1586, %v1585
      %v1600 = vpack.c.b16 %v1588, %v1587
      %v1601 = vpack.c.b16 %v1590, %v1589
      %v1602 = vpack.c.b16 %v1592, %v1591
      %v1603 = vpack.c.b16 %v1594, %v1593
      %v1604 = vpack.c.b16 %v1596, %v1595
      %1613 = vmatprep.subr.bf16.mxu0 0
      %1614 = vmatpush1.bf16.msra.mxu0 %v1604
      %1615 = vmatprep.subr.bf16.mxu0 0
      %1616 = vmatpush1.bf16.msra.mxu0 %v1603
      %1617 = vmatprep.subr.bf16.mxu0 0
      %1618 = vmatpush1.bf16.msra.mxu0 %v1602
      %1619 = vmatprep.subr.bf16.mxu0 0
      %1620 = vmatpush1.bf16.msra.mxu0 %v1601
      %1621 = vmatprep.subr.bf16.mxu0 0
      %1622 = vmatpush1.bf16.msra.mxu0 %v1600
      %1623 = vmatprep.subr.bf16.mxu0 0
      %1624 = vmatpush1.bf16.msra.mxu0 %v1599
      %1625 = vmatprep.subr.bf16.mxu0 0
      %1626 = vmatpush1.bf16.msra.mxu0 %v1598
      %1627 = vmatprep.subr.bf16.mxu0 0
      %1628 = vmatpush1.bf16.msra.mxu0 %v1597
      %1629 = vmatprep.subr.bf16.mxu0 0
      %1630 = vmatpush2.bf16.msra.mxu0 0
      %1631 = vmatprep.subr.bf16.mxu0 0
      %1632 = vmatpush2.bf16.msra.mxu0 0
      %1633 = vmatprep.subr.bf16.mxu0 0
      %1634 = vmatpush2.bf16.msra.mxu0 0
      %1635 = vmatprep.subr.bf16.mxu0 0
      %1636 = vmatpush2.bf16.msra.mxu0 0
      %1637 = vmatprep.subr.bf16.mxu0 0
      %1638 = vmatpush2.bf16.msra.mxu0 0
      %1639 = vmatprep.subr.bf16.mxu0 0
      %1640 = vmatpush2.bf16.msra.mxu0 0
      %1641 = vmatprep.subr.bf16.mxu0 0
      %1642 = vmatpush2.bf16.msra.mxu0 0
      %1643 = vmatprep.subr.bf16.mxu0 0
      %1644 = vmatpush2.bf16.msra.mxu0 0
      %1645 = vmatprep.mubr.bf16.mxu0 0
      %1646 = vmatmul.mubr.bf16.gmra.mxu0 %v1547
      %v1647 = vpop.f32.mrf.mxu0
      %v1648 = vadd.f32 0.0, %v1647
      %v1649 = vpop.f32.mrf.mxu0
      %v1650 = vpop.f32.mrf.mxu0
      %v1651 = vpop.f32.mrf.mxu0
      %1652 = vdwg.mxu0
      %v1669 = vunpack.c.l.b16 %v1531
      %v1670 = vunpack.c.l.b16 %v1532
      %v1671 = vunpack.c.l.b16 %v1533
      %v1672 = vunpack.c.l.b16 %v1534
      %v1673 = vunpack.c.l.b16 %v1535
      %v1674 = vunpack.c.l.b16 %v1536
      %v1675 = vunpack.c.l.b16 %v1537
      %v1676 = vunpack.c.l.b16 %v1538
      %v1677 = vunpack.c.l.b16 %v1539
      %v1678 = vunpack.c.l.b16 %v1540
      %v1679 = vunpack.c.l.b16 %v1541
      %v1680 = vunpack.c.l.b16 %v1542
      %v1681 = vunpack.c.l.b16 %v1543
      %v1682 = vunpack.c.l.b16 %v1544
      %v1683 = vunpack.c.l.b16 %v1545
      %v1684 = vunpack.c.l.b16 %v1546
      %v1685 = vpack.c.b16 %v1670, %v1669
      %v1686 = vpack.c.b16 %v1672, %v1671
      %v1687 = vpack.c.b16 %v1674, %v1673
      %v1688 = vpack.c.b16 %v1676, %v1675
      %v1689 = vpack.c.b16 %v1678, %v1677
      %v1690 = vpack.c.b16 %v1680, %v1679
      %v1691 = vpack.c.b16 %v1682, %v1681
      %v1692 = vpack.c.b16 %v1684, %v1683
      %1701 = vmatprep.subr.bf16.mxu0 0
      %1702 = vmatpush1.bf16.msra.mxu0 %v1692
      %1703 = vmatprep.subr.bf16.mxu0 0
      %1704 = vmatpush1.bf16.msra.mxu0 %v1691
      %1705 = vmatprep.subr.bf16.mxu0 0
      %1706 = vmatpush1.bf16.msra.mxu0 %v1690
      %1707 = vmatprep.subr.bf16.mxu0 0
      %1708 = vmatpush1.bf16.msra.mxu0 %v1689
      %1709 = vmatprep.subr.bf16.mxu0 0
      %1710 = vmatpush1.bf16.msra.mxu0 %v1688
      %1711 = vmatprep.subr.bf16.mxu0 0
      %1712 = vmatpush1.bf16.msra.mxu0 %v1687
      %1713 = vmatprep.subr.bf16.mxu0 0
      %1714 = vmatpush1.bf16.msra.mxu0 %v1686
      %1715 = vmatprep.subr.bf16.mxu0 0
      %1716 = vmatpush1.bf16.msra.mxu0 %v1685
      %1717 = vmatprep.subr.bf16.mxu0 0
      %1718 = vmatpush2.bf16.msra.mxu0 0
      %1719 = vmatprep.subr.bf16.mxu0 0
      %1720 = vmatpush2.bf16.msra.mxu0 0
      %1721 = vmatprep.subr.bf16.mxu0 0
      %1722 = vmatpush2.bf16.msra.mxu0 0
      %1723 = vmatprep.subr.bf16.mxu0 0
      %1724 = vmatpush2.bf16.msra.mxu0 0
      %1725 = vmatprep.subr.bf16.mxu0 0
      %1726 = vmatpush2.bf16.msra.mxu0 0
      %1727 = vmatprep.subr.bf16.mxu0 0
      %1728 = vmatpush2.bf16.msra.mxu0 0
      %1729 = vmatprep.subr.bf16.mxu0 0
      %1730 = vmatpush2.bf16.msra.mxu0 0
      %1731 = vmatprep.subr.bf16.mxu0 0
      %1732 = vmatpush2.bf16.msra.mxu0 0
      %1733 = vmatprep.mubr.bf16.mxu0 0
      %1734 = vmatmul.mubr.bf16.gmra.mxu0 %v1530
      %v1735 = vpop.f32.mrf.mxu0
      %v1736 = vadd.f32 %v1648, %v1735
      %v1737 = vpop.f32.mrf.mxu0
      %v1738 = vpop.f32.mrf.mxu0
      %v1739 = vpop.f32.mrf.mxu0
      %1740 = vdwg.mxu0
      %v1741 = vpack.c.bf16 %v1529, %v1529
      %s1742 = scalar_lea.vmem %s3, 128
      %v1743 = vld [vmem:[%s1742] sm:$0xf]
      %v1744 = vld [vmem:[%s1742 + $0x4] sm:$0xf]
      %v1745 = vld [vmem:[%s1742 + $0x8] sm:$0xf]
      %v1746 = vld [vmem:[%s1742 + $0xc] sm:$0xf]
      %v1747 = vld [vmem:[%s1742 + $0x10] sm:$0xf]
      %v1748 = vld [vmem:[%s1742 + $0x14] sm:$0xf]
      %v1749 = vld [vmem:[%s1742 + $0x18] sm:$0xf]
      %v1750 = vld [vmem:[%s1742 + $0x1c] sm:$0xf]
      %v1751 = vld [vmem:[%s1742 + $0x20] sm:$0xf]
      %v1752 = vld [vmem:[%s1742 + $0x24] sm:$0xf]
      %v1753 = vld [vmem:[%s1742 + $0x28] sm:$0xf]
      %v1754 = vld [vmem:[%s1742 + $0x2c] sm:$0xf]
      %v1755 = vld [vmem:[%s1742 + $0x30] sm:$0xf]
      %v1756 = vld [vmem:[%s1742 + $0x34] sm:$0xf]
      %v1757 = vld [vmem:[%s1742 + $0x38] sm:$0xf]
      %v1758 = vld [vmem:[%s1742 + $0x3c] sm:$0xf]
      %v1775 = vunpack.c.l.b16 %v1743
      %v1776 = vunpack.c.l.b16 %v1744
      %v1777 = vunpack.c.l.b16 %v1745
      %v1778 = vunpack.c.l.b16 %v1746
      %v1779 = vunpack.c.l.b16 %v1747
      %v1780 = vunpack.c.l.b16 %v1748
      %v1781 = vunpack.c.l.b16 %v1749
      %v1782 = vunpack.c.l.b16 %v1750
      %v1783 = vunpack.c.l.b16 %v1751
      %v1784 = vunpack.c.l.b16 %v1752
      %v1785 = vunpack.c.l.b16 %v1753
      %v1786 = vunpack.c.l.b16 %v1754
      %v1787 = vunpack.c.l.b16 %v1755
      %v1788 = vunpack.c.l.b16 %v1756
      %v1789 = vunpack.c.l.b16 %v1757
      %v1790 = vunpack.c.l.b16 %v1758
      %v1791 = vpack.c.b16 %v1776, %v1775
      %v1792 = vpack.c.b16 %v1778, %v1777
      %v1793 = vpack.c.b16 %v1780, %v1779
      %v1794 = vpack.c.b16 %v1782, %v1781
      %v1795 = vpack.c.b16 %v1784, %v1783
      %v1796 = vpack.c.b16 %v1786, %v1785
      %v1797 = vpack.c.b16 %v1788, %v1787
      %v1798 = vpack.c.b16 %v1790, %v1789
      %1807 = vmatprep.subr.bf16.mxu0 0
      %1808 = vmatpush1.bf16.msra.mxu0 %v1798
      %1809 = vmatprep.subr.bf16.mxu0 0
      %1810 = vmatpush1.bf16.msra.mxu0 %v1797
      %1811 = vmatprep.subr.bf16.mxu0 0
      %1812 = vmatpush1.bf16.msra.mxu0 %v1796
      %1813 = vmatprep.subr.bf16.mxu0 0
      %1814 = vmatpush1.bf16.msra.mxu0 %v1795
      %1815 = vmatprep.subr.bf16.mxu0 0
      %1816 = vmatpush1.bf16.msra.mxu0 %v1794
      %1817 = vmatprep.subr.bf16.mxu0 0
      %1818 = vmatpush1.bf16.msra.mxu0 %v1793
      %1819 = vmatprep.subr.bf16.mxu0 0
      %1820 = vmatpush1.bf16.msra.mxu0 %v1792
      %1821 = vmatprep.subr.bf16.mxu0 0
      %1822 = vmatpush1.bf16.msra.mxu0 %v1791
      %1823 = vmatprep.subr.bf16.mxu0 0
      %1824 = vmatpush2.bf16.msra.mxu0 0
      %1825 = vmatprep.subr.bf16.mxu0 0
      %1826 = vmatpush2.bf16.msra.mxu0 0
      %1827 = vmatprep.subr.bf16.mxu0 0
      %1828 = vmatpush2.bf16.msra.mxu0 0
      %1829 = vmatprep.subr.bf16.mxu0 0
      %1830 = vmatpush2.bf16.msra.mxu0 0
      %1831 = vmatprep.subr.bf16.mxu0 0
      %1832 = vmatpush2.bf16.msra.mxu0 0
      %1833 = vmatprep.subr.bf16.mxu0 0
      %1834 = vmatpush2.bf16.msra.mxu0 0
      %1835 = vmatprep.subr.bf16.mxu0 0
      %1836 = vmatpush2.bf16.msra.mxu0 0
      %1837 = vmatprep.subr.bf16.mxu0 0
      %1838 = vmatpush2.bf16.msra.mxu0 0
      %1839 = vmatprep.mubr.bf16.mxu0 0
      %1840 = vmatmul.mubr.bf16.gmra.mxu0 %v1741
      %v1841 = vpop.f32.mrf.mxu0
      %v1842 = vadd.f32 0.0, %v1841
      %v1843 = vpop.f32.mrf.mxu0
      %v1844 = vpop.f32.mrf.mxu0
      %v1845 = vpop.f32.mrf.mxu0
      %1846 = vdwg.mxu0
      %v1847 = vadd.f32 %v1736, %v1842
      %v1848 = vld [vmem:[%s4] sm:$0x1]
      %v1850 = vlaneseq
      %v1851 = vshrl.u32 %v1850, 7
      %v1852 = vsub.s32 0, %v1851
      %v1853 = vrot.slane %v1848, %v1852
      %v1855 = vadd.f32 %v1847, %v1853
      %v1856 = vsub.f32 0.0, %v1855
      %v1857 = vmul.f32 %v1856, 1.442695
      %v1858 = vpow.pop %v1857
      %v1859 = vadd.f32 %v1858, 1.0
      %v1860 = vrcp.pop %v1859
      %v1861 = vmul.f32 %v1855, %v1860
      %v1862 = vpack.c.bf16 %v1861, %v1861
      %v1863 = vld [vmem:[%s9] sm:$0xff]
      %v1864 = vld [vmem:[%s9 + $0x8] sm:$0xff]
      %v1865 = vld [vmem:[%s9 + $0x10] sm:$0xff]
      %v1866 = vld [vmem:[%s9 + $0x18] sm:$0xff]
      %v1867 = vld [vmem:[%s9 + $0x20] sm:$0xff]
      %v1868 = vld [vmem:[%s9 + $0x28] sm:$0xff]
      %v1869 = vld [vmem:[%s9 + $0x30] sm:$0xff]
      %v1870 = vld [vmem:[%s9 + $0x38] sm:$0xff]
      %v1871 = vld [vmem:[%s9 + $0x40] sm:$0xff]
      %v1872 = vld [vmem:[%s9 + $0x48] sm:$0xff]
      %v1873 = vld [vmem:[%s9 + $0x50] sm:$0xff]
      %v1874 = vld [vmem:[%s9 + $0x58] sm:$0xff]
      %v1875 = vld [vmem:[%s9 + $0x60] sm:$0xff]
      %v1876 = vld [vmem:[%s9 + $0x68] sm:$0xff]
      %v1877 = vld [vmem:[%s9 + $0x70] sm:$0xff]
      %v1878 = vld [vmem:[%s9 + $0x78] sm:$0xff]
      %v1879 = vld [vmem:[%s10] sm:$0x3]
      %v1881 = vlaneseq
      %v1882 = vshrl.u32 %v1881, 7
      %v1883 = vsub.s32 0, %v1882
      %v1884 = vrot.slane %v1879, %v1883
      %v1885 = vlaneseq
      %v1886 = vshrl.u32 %v1885, 7
      %v1887 = vsub.s32 1, %v1886
      %v1888 = vrot.slane %v1879, %v1887
      %v1907 = vunpack.c.l.b16 %v1863
      %v1908 = vunpack.c.h.b16 %v1863
      %v1909 = vunpack.c.l.b16 %v1864
      %v1910 = vunpack.c.h.b16 %v1864
      %v1911 = vunpack.c.l.b16 %v1865
      %v1912 = vunpack.c.h.b16 %v1865
      %v1913 = vunpack.c.l.b16 %v1866
      %v1914 = vunpack.c.h.b16 %v1866
      %v1915 = vunpack.c.l.b16 %v1867
      %v1916 = vunpack.c.h.b16 %v1867
      %v1917 = vunpack.c.l.b16 %v1868
      %v1918 = vunpack.c.h.b16 %v1868
      %v1919 = vunpack.c.l.b16 %v1869
      %v1920 = vunpack.c.h.b16 %v1869
      %v1921 = vunpack.c.l.b16 %v1870
      %v1922 = vunpack.c.h.b16 %v1870
      %v1923 = vunpack.c.l.b16 %v1871
      %v1924 = vunpack.c.h.b16 %v1871
      %v1925 = vunpack.c.l.b16 %v1872
      %v1926 = vunpack.c.h.b16 %v1872
      %v1927 = vunpack.c.l.b16 %v1873
      %v1928 = vunpack.c.h.b16 %v1873
      %v1929 = vunpack.c.l.b16 %v1874
      %v1930 = vunpack.c.h.b16 %v1874
      %v1931 = vunpack.c.l.b16 %v1875
      %v1932 = vunpack.c.h.b16 %v1875
      %v1933 = vunpack.c.l.b16 %v1876
      %v1934 = vunpack.c.h.b16 %v1876
      %v1935 = vunpack.c.l.b16 %v1877
      %v1936 = vunpack.c.h.b16 %v1877
      %v1937 = vunpack.c.l.b16 %v1878
      %v1938 = vunpack.c.h.b16 %v1878
      %v1939 = vpack.c.b16 %v1909, %v1907
      %v1940 = vpack.c.b16 %v1910, %v1908
      %v1941 = vpack.c.b16 %v1913, %v1911
      %v1942 = vpack.c.b16 %v1914, %v1912
      %v1943 = vpack.c.b16 %v1917, %v1915
      %v1944 = vpack.c.b16 %v1918, %v1916
      %v1945 = vpack.c.b16 %v1921, %v1919
      %v1946 = vpack.c.b16 %v1922, %v1920
      %v1947 = vpack.c.b16 %v1925, %v1923
      %v1948 = vpack.c.b16 %v1926, %v1924
      %v1949 = vpack.c.b16 %v1929, %v1927
      %v1950 = vpack.c.b16 %v1930, %v1928
      %v1951 = vpack.c.b16 %v1933, %v1931
      %v1952 = vpack.c.b16 %v1934, %v1932
      %v1953 = vpack.c.b16 %v1937, %v1935
      %v1954 = vpack.c.b16 %v1938, %v1936
      %1971 = vmatprep.subr.bf16.mxu0 %v1954
      %1972 = vmatpush1.bf16.msra.mxu0 %v1953
      %1973 = vmatprep.subr.bf16.mxu0 %v1952
      %1974 = vmatpush1.bf16.msra.mxu0 %v1951
      %1975 = vmatprep.subr.bf16.mxu0 %v1950
      %1976 = vmatpush1.bf16.msra.mxu0 %v1949
      %1977 = vmatprep.subr.bf16.mxu0 %v1948
      %1978 = vmatpush1.bf16.msra.mxu0 %v1947
      %1979 = vmatprep.subr.bf16.mxu0 %v1946
      %1980 = vmatpush1.bf16.msra.mxu0 %v1945
      %1981 = vmatprep.subr.bf16.mxu0 %v1944
      %1982 = vmatpush1.bf16.msra.mxu0 %v1943
      %1983 = vmatprep.subr.bf16.mxu0 %v1942
      %1984 = vmatpush1.bf16.msra.mxu0 %v1941
      %1985 = vmatprep.subr.bf16.mxu0 %v1940
      %1986 = vmatpush1.bf16.msra.mxu0 %v1939
      %1987 = vmatprep.subr.bf16.mxu0 0
      %1988 = vmatpush2.bf16.msra.mxu0 0
      %1989 = vmatprep.subr.bf16.mxu0 0
      %1990 = vmatpush2.bf16.msra.mxu0 0
      %1991 = vmatprep.subr.bf16.mxu0 0
      %1992 = vmatpush2.bf16.msra.mxu0 0
      %1993 = vmatprep.subr.bf16.mxu0 0
      %1994 = vmatpush2.bf16.msra.mxu0 0
      %1995 = vmatprep.subr.bf16.mxu0 0
      %1996 = vmatpush2.bf16.msra.mxu0 0
      %1997 = vmatprep.subr.bf16.mxu0 0
      %1998 = vmatpush2.bf16.msra.mxu0 0
      %1999 = vmatprep.subr.bf16.mxu0 0
      %2000 = vmatpush2.bf16.msra.mxu0 0
      %2001 = vmatprep.subr.bf16.mxu0 0
      %2002 = vmatpush2.bf16.msra.mxu0 0
      %2003 = vmatprep.mubr.bf16.mxu0 0
      %2004 = vmatmul.mubr.bf16.gmra.mxu0 %v1862
      %v2005 = vpop.f32.mrf.mxu0
      %v2006 = vadd.f32 %v1884, %v2005
      %v2007 = vpop.f32.mrf.mxu0
      %v2008 = vadd.f32 %v1888, %v2007
      %v2009 = vpop.f32.mrf.mxu0
      %v2010 = vpop.f32.mrf.mxu0
      %2011 = vdwg.mxu0
      %2012 = vst [vmem:[%s619] sm:$0xff] %v2006
      %2013 = vst [vmem:[%s619 + $0x8] sm:$0xff] %v2008
      %v2014 = vand.u32 %v1297, 7
      %v2015 = vand.u32 %v1298, 7
      %v2016 = vshra.s32 %v1297, 3
      %v2017 = vshra.s32 %v1298, 3
      %vm2018 = vcmp.ge.s32.totalorder %v2016, 9
      %vm2019 = vcmp.ge.s32.totalorder %v2017, 9
      %v2020 = vsel %vm2018, 1, 0
      %v2021 = vsel %vm2019, 1, 0
      %vm2022 = vcmp.ge.s32.totalorder %v2016, 18
      %vm2023 = vcmp.ge.s32.totalorder %v2017, 18
      %v2024 = vsel %vm2022, 1, 0
      %v2025 = vsel %vm2023, 1, 0
      %v2026 = vadd.s32 %v2020, %v2024
      %v2027 = vadd.s32 %v2021, %v2025
      %v2028 = vmul.u32 %v2026, 9
      %v2029 = vmul.u32 %v2027, 9
      %v2030 = vsub.s32 %v2016, %v2028
      %v2031 = vsub.s32 %v2017, %v2029
      %v2032 = vsub.f32 0.0, %v2006
      %v2033 = vsub.f32 0.0, %v2008
      %v2034 = vmul.f32 %v2032, 1.442695
      %v2035 = vpow.pop %v2034
      %v2036 = vmul.f32 %v2033, 1.442695
      %v2037 = vpow.pop %v2036
      %v2038 = vadd.f32 %v2035, 1.0
      %v2039 = vadd.f32 %v2037, 1.0
      %v2040 = vrcp.pop %v2038
      %v2041 = vrcp.pop %v2039
      %vm2042 = vcmp.eq.s32.totalorder %v2030, 0
      %vm2043 = vcmp.eq.s32.totalorder %v2031, 0
      %v2044 = vsel %vm2042, %v2014, %v1294
      %v2045 = vsel %vm2043, %v2015, %v1294
      %v2046 = vcvt.s32.f32 %v2044
      %v2047 = vcvt.s32.f32 %v2045
      %v2048 = vsub.f32 %v2046, 0.5
      %v2049 = vsub.f32 %v2047, 0.5
      %v2050 = vmul.f32 %v2040, 2.0
      %v2051 = vmul.f32 %v2041, 2.0
      %v2052 = vadd.f32 %v2050, %v2048
      %v2053 = vadd.f32 %v2051, %v2049
      %v2054 = vmul.f32 %v2052, 4.0
      %v2055 = vmul.f32 %v2053, 4.0
      %vm2056 = vcmp.eq.s32.totalorder %v2024, 1
      %vm2057 = vcmp.eq.s32.totalorder %v2025, 1
      %vm2058 = vcmp.eq.s32.totalorder %v2020, 1
      %vm2059 = vcmp.eq.s32.totalorder %v2021, 1
      %v2060 = vsel %vm2058, 62.0, 30.0
      %v2061 = vsel %vm2059, 62.0, 30.0
      %v2062 = vsel %vm2056, 59.0, %v2060
      %v2063 = vsel %vm2057, 59.0, %v2061
      %v2064 = vsel %vm2058, 45.0, 61.0
      %v2065 = vsel %vm2059, 45.0, 61.0
      %v2066 = vsel %vm2056, 119.0, %v2064
      %v2067 = vsel %vm2057, 119.0, %v2065
      %v2068 = vmul.f32 %v2050, %v2050
      %v2069 = vmul.f32 %v2051, %v2051
      %vm2070 = vcmp.eq.s32.totalorder %v2030, 2
      %vm2071 = vcmp.eq.s32.totalorder %v2031, 2
      %v2072 = vsel %vm2070, %v2062, %v2066
      %v2073 = vsel %vm2071, %v2063, %v2067
      %v2074 = vmul.f32 %v2068, %v2072
      %v2075 = vmul.f32 %v2069, %v2073
      %vm2076 = vcmp.lt.s32.totalorder %v2030, 2
      %vm2077 = vcmp.lt.s32.totalorder %v2031, 2
      %vm2078 = vcmp.lt.s32.totalorder %v2030, 4
      %vm2079 = vcmp.lt.s32.totalorder %v2031, 4
      %v2080 = vsel %vm2078, %v2074, %v2040
      %v2081 = vsel %vm2079, %v2075, %v2041
      %v2082 = vsel %vm2076, %v2054, %v2080
      %v2083 = vsel %vm2077, %v2055, %v2081
      %2084 = vst [vmem:[%s624] sm:$0xff] %v2082
      %2085 = vst [vmem:[%s624 + $0x8] sm:$0xff] %v2083
      %2086 = vst [vmem:[#allocation3] sm:$0x1] 0.0
      %s2087 = scalar_lea.vmem [#allocation3], 8
      %2088 = vst [vmem:[%s2087] sm:$0x1] %v1861
      %2089 = vst [vmem:[#allocation3] sm:$0x2] %v1861
      %2090 = vst [vmem:[%s2087 - $0x1] sm:$0x4] %v1861
      %2091 = vst [vmem:[#allocation3 - $0x1] sm:$0x8] %v1861
      %2092 = vst [vmem:[%s2087 - $0x2] sm:$0x10] %v1861
      %2093 = vst [vmem:[#allocation3 - $0x2] sm:$0x20] %v1861
      %2094 = vst [vmem:[%s2087 - $0x3] sm:$0x40] %v1861
      %2095 = vst [vmem:[#allocation3 - $0x3] sm:$0x80] %v1861
      %v2096 = vld [vmem:[#allocation3] sm:$0xf]
      %v2097 = vld [vmem:[%s2087] sm:$0xf]
      %v2098 = vld [vmem:[#allocation3 + $0x1] sm:$0xf]
      %v2099 = vpack.c.bf16 %v2096, %v2096
      %v2100 = vld [vmem:[%s5] sm:$0xf]
      %v2101 = vld [vmem:[%s5 + $0x4] sm:$0xf]
      %v2102 = vld [vmem:[%s5 + $0x8] sm:$0xf]
      %v2103 = vld [vmem:[%s5 + $0xc] sm:$0xf]
      %v2104 = vld [vmem:[%s5 + $0x10] sm:$0xf]
      %v2105 = vld [vmem:[%s5 + $0x14] sm:$0xf]
      %v2106 = vld [vmem:[%s5 + $0x18] sm:$0xf]
      %v2107 = vld [vmem:[%s5 + $0x1c] sm:$0xf]
      %v2108 = vld [vmem:[%s5 + $0x20] sm:$0xf]
      %v2109 = vld [vmem:[%s5 + $0x24] sm:$0xf]
      %v2110 = vld [vmem:[%s5 + $0x28] sm:$0xf]
      %v2111 = vld [vmem:[%s5 + $0x2c] sm:$0xf]
      %v2112 = vld [vmem:[%s5 + $0x30] sm:$0xf]
      %v2113 = vld [vmem:[%s5 + $0x34] sm:$0xf]
      %v2114 = vld [vmem:[%s5 + $0x38] sm:$0xf]
      %v2115 = vld [vmem:[%s5 + $0x3c] sm:$0xf]
      %v2116 = vpack.c.bf16 %v2097, %v2097
      %s2117 = scalar_lea.vmem %s5, 64
      %v2118 = vld [vmem:[%s2117] sm:$0xf]
      %v2119 = vld [vmem:[%s2117 + $0x4] sm:$0xf]
      %v2120 = vld [vmem:[%s2117 + $0x8] sm:$0xf]
      %v2121 = vld [vmem:[%s2117 + $0xc] sm:$0xf]
      %v2122 = vld [vmem:[%s2117 + $0x10] sm:$0xf]
      %v2123 = vld [vmem:[%s2117 + $0x14] sm:$0xf]
      %v2124 = vld [vmem:[%s2117 + $0x18] sm:$0xf]
      %v2125 = vld [vmem:[%s2117 + $0x1c] sm:$0xf]
      %v2126 = vld [vmem:[%s2117 + $0x20] sm:$0xf]
      %v2127 = vld [vmem:[%s2117 + $0x24] sm:$0xf]
      %v2128 = vld [vmem:[%s2117 + $0x28] sm:$0xf]
      %v2129 = vld [vmem:[%s2117 + $0x2c] sm:$0xf]
      %v2130 = vld [vmem:[%s2117 + $0x30] sm:$0xf]
      %v2131 = vld [vmem:[%s2117 + $0x34] sm:$0xf]
      %v2132 = vld [vmem:[%s2117 + $0x38] sm:$0xf]
      %v2133 = vld [vmem:[%s2117 + $0x3c] sm:$0xf]
      %v2150 = vunpack.c.l.b16 %v2118
      %v2151 = vunpack.c.l.b16 %v2119
      %v2152 = vunpack.c.l.b16 %v2120
      %v2153 = vunpack.c.l.b16 %v2121
      %v2154 = vunpack.c.l.b16 %v2122
      %v2155 = vunpack.c.l.b16 %v2123
      %v2156 = vunpack.c.l.b16 %v2124
      %v2157 = vunpack.c.l.b16 %v2125
      %v2158 = vunpack.c.l.b16 %v2126
      %v2159 = vunpack.c.l.b16 %v2127
      %v2160 = vunpack.c.l.b16 %v2128
      %v2161 = vunpack.c.l.b16 %v2129
      %v2162 = vunpack.c.l.b16 %v2130
      %v2163 = vunpack.c.l.b16 %v2131
      %v2164 = vunpack.c.l.b16 %v2132
      %v2165 = vunpack.c.l.b16 %v2133
      %v2166 = vpack.c.b16 %v2151, %v2150
      %v2167 = vpack.c.b16 %v2153, %v2152
      %v2168 = vpack.c.b16 %v2155, %v2154
      %v2169 = vpack.c.b16 %v2157, %v2156
      %v2170 = vpack.c.b16 %v2159, %v2158
      %v2171 = vpack.c.b16 %v2161, %v2160
      %v2172 = vpack.c.b16 %v2163, %v2162
      %v2173 = vpack.c.b16 %v2165, %v2164
      %2182 = vmatprep.subr.bf16.mxu0 0
      %2183 = vmatpush1.bf16.msra.mxu0 %v2173
      %2184 = vmatprep.subr.bf16.mxu0 0
      %2185 = vmatpush1.bf16.msra.mxu0 %v2172
      %2186 = vmatprep.subr.bf16.mxu0 0
      %2187 = vmatpush1.bf16.msra.mxu0 %v2171
      %2188 = vmatprep.subr.bf16.mxu0 0
      %2189 = vmatpush1.bf16.msra.mxu0 %v2170
      %2190 = vmatprep.subr.bf16.mxu0 0
      %2191 = vmatpush1.bf16.msra.mxu0 %v2169
      %2192 = vmatprep.subr.bf16.mxu0 0
      %2193 = vmatpush1.bf16.msra.mxu0 %v2168
      %2194 = vmatprep.subr.bf16.mxu0 0
      %2195 = vmatpush1.bf16.msra.mxu0 %v2167
      %2196 = vmatprep.subr.bf16.mxu0 0
      %2197 = vmatpush1.bf16.msra.mxu0 %v2166
      %2198 = vmatprep.subr.bf16.mxu0 0
      %2199 = vmatpush2.bf16.msra.mxu0 0
      %2200 = vmatprep.subr.bf16.mxu0 0
      %2201 = vmatpush2.bf16.msra.mxu0 0
      %2202 = vmatprep.subr.bf16.mxu0 0
      %2203 = vmatpush2.bf16.msra.mxu0 0
      %2204 = vmatprep.subr.bf16.mxu0 0
      %2205 = vmatpush2.bf16.msra.mxu0 0
      %2206 = vmatprep.subr.bf16.mxu0 0
      %2207 = vmatpush2.bf16.msra.mxu0 0
      %2208 = vmatprep.subr.bf16.mxu0 0
      %2209 = vmatpush2.bf16.msra.mxu0 0
      %2210 = vmatprep.subr.bf16.mxu0 0
      %2211 = vmatpush2.bf16.msra.mxu0 0
      %2212 = vmatprep.subr.bf16.mxu0 0
      %2213 = vmatpush2.bf16.msra.mxu0 0
      %2214 = vmatprep.mubr.bf16.mxu0 0
      %2215 = vmatmul.mubr.bf16.gmra.mxu0 %v2116
      %v2216 = vpop.f32.mrf.mxu0
      %v2217 = vadd.f32 0.0, %v2216
      %v2218 = vpop.f32.mrf.mxu0
      %v2219 = vpop.f32.mrf.mxu0
      %v2220 = vpop.f32.mrf.mxu0
      %2221 = vdwg.mxu0
      %v2238 = vunpack.c.l.b16 %v2100
      %v2239 = vunpack.c.l.b16 %v2101
      %v2240 = vunpack.c.l.b16 %v2102
      %v2241 = vunpack.c.l.b16 %v2103
      %v2242 = vunpack.c.l.b16 %v2104
      %v2243 = vunpack.c.l.b16 %v2105
      %v2244 = vunpack.c.l.b16 %v2106
      %v2245 = vunpack.c.l.b16 %v2107
      %v2246 = vunpack.c.l.b16 %v2108
      %v2247 = vunpack.c.l.b16 %v2109
      %v2248 = vunpack.c.l.b16 %v2110
      %v2249 = vunpack.c.l.b16 %v2111
      %v2250 = vunpack.c.l.b16 %v2112
      %v2251 = vunpack.c.l.b16 %v2113
      %v2252 = vunpack.c.l.b16 %v2114
      %v2253 = vunpack.c.l.b16 %v2115
      %v2254 = vpack.c.b16 %v2239, %v2238
      %v2255 = vpack.c.b16 %v2241, %v2240
      %v2256 = vpack.c.b16 %v2243, %v2242
      %v2257 = vpack.c.b16 %v2245, %v2244
      %v2258 = vpack.c.b16 %v2247, %v2246
      %v2259 = vpack.c.b16 %v2249, %v2248
      %v2260 = vpack.c.b16 %v2251, %v2250
      %v2261 = vpack.c.b16 %v2253, %v2252
      %2270 = vmatprep.subr.bf16.mxu0 0
      %2271 = vmatpush1.bf16.msra.mxu0 %v2261
      %2272 = vmatprep.subr.bf16.mxu0 0
      %2273 = vmatpush1.bf16.msra.mxu0 %v2260
      %2274 = vmatprep.subr.bf16.mxu0 0
      %2275 = vmatpush1.bf16.msra.mxu0 %v2259
      %2276 = vmatprep.subr.bf16.mxu0 0
      %2277 = vmatpush1.bf16.msra.mxu0 %v2258
      %2278 = vmatprep.subr.bf16.mxu0 0
      %2279 = vmatpush1.bf16.msra.mxu0 %v2257
      %2280 = vmatprep.subr.bf16.mxu0 0
      %2281 = vmatpush1.bf16.msra.mxu0 %v2256
      %2282 = vmatprep.subr.bf16.mxu0 0
      %2283 = vmatpush1.bf16.msra.mxu0 %v2255
      %2284 = vmatprep.subr.bf16.mxu0 0
      %2285 = vmatpush1.bf16.msra.mxu0 %v2254
      %2286 = vmatprep.subr.bf16.mxu0 0
      %2287 = vmatpush2.bf16.msra.mxu0 0
      %2288 = vmatprep.subr.bf16.mxu0 0
      %2289 = vmatpush2.bf16.msra.mxu0 0
      %2290 = vmatprep.subr.bf16.mxu0 0
      %2291 = vmatpush2.bf16.msra.mxu0 0
      %2292 = vmatprep.subr.bf16.mxu0 0
      %2293 = vmatpush2.bf16.msra.mxu0 0
      %2294 = vmatprep.subr.bf16.mxu0 0
      %2295 = vmatpush2.bf16.msra.mxu0 0
      %2296 = vmatprep.subr.bf16.mxu0 0
      %2297 = vmatpush2.bf16.msra.mxu0 0
      %2298 = vmatprep.subr.bf16.mxu0 0
      %2299 = vmatpush2.bf16.msra.mxu0 0
      %2300 = vmatprep.subr.bf16.mxu0 0
      %2301 = vmatpush2.bf16.msra.mxu0 0
      %2302 = vmatprep.mubr.bf16.mxu0 0
      %2303 = vmatmul.mubr.bf16.gmra.mxu0 %v2099
      %v2304 = vpop.f32.mrf.mxu0
      %v2305 = vadd.f32 %v2217, %v2304
      %v2306 = vpop.f32.mrf.mxu0
      %v2307 = vpop.f32.mrf.mxu0
      %v2308 = vpop.f32.mrf.mxu0
      %2309 = vdwg.mxu0
      %v2310 = vpack.c.bf16 %v2098, %v2098
      %s2311 = scalar_lea.vmem %s5, 128
      %v2312 = vld [vmem:[%s2311] sm:$0xf]
      %v2313 = vld [vmem:[%s2311 + $0x4] sm:$0xf]
      %v2314 = vld [vmem:[%s2311 + $0x8] sm:$0xf]
      %v2315 = vld [vmem:[%s2311 + $0xc] sm:$0xf]
      %v2316 = vld [vmem:[%s2311 + $0x10] sm:$0xf]
      %v2317 = vld [vmem:[%s2311 + $0x14] sm:$0xf]
      %v2318 = vld [vmem:[%s2311 + $0x18] sm:$0xf]
      %v2319 = vld [vmem:[%s2311 + $0x1c] sm:$0xf]
      %v2320 = vld [vmem:[%s2311 + $0x20] sm:$0xf]
      %v2321 = vld [vmem:[%s2311 + $0x24] sm:$0xf]
      %v2322 = vld [vmem:[%s2311 + $0x28] sm:$0xf]
      %v2323 = vld [vmem:[%s2311 + $0x2c] sm:$0xf]
      %v2324 = vld [vmem:[%s2311 + $0x30] sm:$0xf]
      %v2325 = vld [vmem:[%s2311 + $0x34] sm:$0xf]
      %v2326 = vld [vmem:[%s2311 + $0x38] sm:$0xf]
      %v2327 = vld [vmem:[%s2311 + $0x3c] sm:$0xf]
      %v2344 = vunpack.c.l.b16 %v2312
      %v2345 = vunpack.c.l.b16 %v2313
      %v2346 = vunpack.c.l.b16 %v2314
      %v2347 = vunpack.c.l.b16 %v2315
      %v2348 = vunpack.c.l.b16 %v2316
      %v2349 = vunpack.c.l.b16 %v2317
      %v2350 = vunpack.c.l.b16 %v2318
      %v2351 = vunpack.c.l.b16 %v2319
      %v2352 = vunpack.c.l.b16 %v2320
      %v2353 = vunpack.c.l.b16 %v2321
      %v2354 = vunpack.c.l.b16 %v2322
      %v2355 = vunpack.c.l.b16 %v2323
      %v2356 = vunpack.c.l.b16 %v2324
      %v2357 = vunpack.c.l.b16 %v2325
      %v2358 = vunpack.c.l.b16 %v2326
      %v2359 = vunpack.c.l.b16 %v2327
      %v2360 = vpack.c.b16 %v2345, %v2344
      %v2361 = vpack.c.b16 %v2347, %v2346
      %v2362 = vpack.c.b16 %v2349, %v2348
      %v2363 = vpack.c.b16 %v2351, %v2350
      %v2364 = vpack.c.b16 %v2353, %v2352
      %v2365 = vpack.c.b16 %v2355, %v2354
      %v2366 = vpack.c.b16 %v2357, %v2356
      %v2367 = vpack.c.b16 %v2359, %v2358
      %2376 = vmatprep.subr.bf16.mxu0 0
      %2377 = vmatpush1.bf16.msra.mxu0 %v2367
      %2378 = vmatprep.subr.bf16.mxu0 0
      %2379 = vmatpush1.bf16.msra.mxu0 %v2366
      %2380 = vmatprep.subr.bf16.mxu0 0
      %2381 = vmatpush1.bf16.msra.mxu0 %v2365
      %2382 = vmatprep.subr.bf16.mxu0 0
      %2383 = vmatpush1.bf16.msra.mxu0 %v2364
      %2384 = vmatprep.subr.bf16.mxu0 0
      %2385 = vmatpush1.bf16.msra.mxu0 %v2363
      %2386 = vmatprep.subr.bf16.mxu0 0
      %2387 = vmatpush1.bf16.msra.mxu0 %v2362
      %2388 = vmatprep.subr.bf16.mxu0 0
      %2389 = vmatpush1.bf16.msra.mxu0 %v2361
      %2390 = vmatprep.subr.bf16.mxu0 0
      %2391 = vmatpush1.bf16.msra.mxu0 %v2360
      %2392 = vmatprep.subr.bf16.mxu0 0
      %2393 = vmatpush2.bf16.msra.mxu0 0
      %2394 = vmatprep.subr.bf16.mxu0 0
      %2395 = vmatpush2.bf16.msra.mxu0 0
      %2396 = vmatprep.subr.bf16.mxu0 0
      %2397 = vmatpush2.bf16.msra.mxu0 0
      %2398 = vmatprep.subr.bf16.mxu0 0
      %2399 = vmatpush2.bf16.msra.mxu0 0
      %2400 = vmatprep.subr.bf16.mxu0 0
      %2401 = vmatpush2.bf16.msra.mxu0 0
      %2402 = vmatprep.subr.bf16.mxu0 0
      %2403 = vmatpush2.bf16.msra.mxu0 0
      %2404 = vmatprep.subr.bf16.mxu0 0
      %2405 = vmatpush2.bf16.msra.mxu0 0
      %2406 = vmatprep.subr.bf16.mxu0 0
      %2407 = vmatpush2.bf16.msra.mxu0 0
      %2408 = vmatprep.mubr.bf16.mxu0 0
      %2409 = vmatmul.mubr.bf16.gmra.mxu0 %v2310
      %v2410 = vpop.f32.mrf.mxu0
      %v2411 = vadd.f32 0.0, %v2410
      %v2412 = vpop.f32.mrf.mxu0
      %v2413 = vpop.f32.mrf.mxu0
      %v2414 = vpop.f32.mrf.mxu0
      %2415 = vdwg.mxu0
      %v2416 = vadd.f32 %v2305, %v2411
      %v2417 = vld [vmem:[%s6] sm:$0x1]
      %v2419 = vlaneseq
      %v2420 = vshrl.u32 %v2419, 7
      %v2421 = vsub.s32 0, %v2420
      %v2422 = vrot.slane %v2417, %v2421
      %v2424 = vadd.f32 %v2416, %v2422
      %v2425 = vsub.f32 0.0, %v2424
      %v2426 = vmul.f32 %v2425, 1.442695
      %v2427 = vpow.pop %v2426
      %v2428 = vadd.f32 %v2427, 1.0
      %v2429 = vrcp.pop %v2428
      %v2430 = vmul.f32 %v2424, %v2429
      %v2431 = vpack.c.bf16 %v2430, %v2430
      %v2432 = vld [vmem:[%s11] sm:$0xf]
      %v2433 = vld [vmem:[%s11 + $0x4] sm:$0xf]
      %v2434 = vld [vmem:[%s11 + $0x8] sm:$0xf]
      %v2435 = vld [vmem:[%s11 + $0xc] sm:$0xf]
      %v2436 = vld [vmem:[%s11 + $0x10] sm:$0xf]
      %v2437 = vld [vmem:[%s11 + $0x14] sm:$0xf]
      %v2438 = vld [vmem:[%s11 + $0x18] sm:$0xf]
      %v2439 = vld [vmem:[%s11 + $0x1c] sm:$0xf]
      %v2440 = vld [vmem:[%s11 + $0x20] sm:$0xf]
      %v2441 = vld [vmem:[%s11 + $0x24] sm:$0xf]
      %v2442 = vld [vmem:[%s11 + $0x28] sm:$0xf]
      %v2443 = vld [vmem:[%s11 + $0x2c] sm:$0xf]
      %v2444 = vld [vmem:[%s11 + $0x30] sm:$0xf]
      %v2445 = vld [vmem:[%s11 + $0x34] sm:$0xf]
      %v2446 = vld [vmem:[%s11 + $0x38] sm:$0xf]
      %v2447 = vld [vmem:[%s11 + $0x3c] sm:$0xf]
      %v2448 = vld [vmem:[%s12] sm:$0x1]
      %v2450 = vlaneseq
      %v2451 = vshrl.u32 %v2450, 7
      %v2452 = vsub.s32 0, %v2451
      %v2453 = vrot.slane %v2448, %v2452
      %v2471 = vunpack.c.l.b16 %v2432
      %v2472 = vunpack.c.l.b16 %v2433
      %v2473 = vunpack.c.l.b16 %v2434
      %v2474 = vunpack.c.l.b16 %v2435
      %v2475 = vunpack.c.l.b16 %v2436
      %v2476 = vunpack.c.l.b16 %v2437
      %v2477 = vunpack.c.l.b16 %v2438
      %v2478 = vunpack.c.l.b16 %v2439
      %v2479 = vunpack.c.l.b16 %v2440
      %v2480 = vunpack.c.l.b16 %v2441
      %v2481 = vunpack.c.l.b16 %v2442
      %v2482 = vunpack.c.l.b16 %v2443
      %v2483 = vunpack.c.l.b16 %v2444
      %v2484 = vunpack.c.l.b16 %v2445
      %v2485 = vunpack.c.l.b16 %v2446
      %v2486 = vunpack.c.l.b16 %v2447
      %v2487 = vpack.c.b16 %v2472, %v2471
      %v2488 = vpack.c.b16 %v2474, %v2473
      %v2489 = vpack.c.b16 %v2476, %v2475
      %v2490 = vpack.c.b16 %v2478, %v2477
      %v2491 = vpack.c.b16 %v2480, %v2479
      %v2492 = vpack.c.b16 %v2482, %v2481
      %v2493 = vpack.c.b16 %v2484, %v2483
      %v2494 = vpack.c.b16 %v2486, %v2485
      %2503 = vmatprep.subr.bf16.mxu0 0
      %2504 = vmatpush1.bf16.msra.mxu0 %v2494
      %2505 = vmatprep.subr.bf16.mxu0 0
      %2506 = vmatpush1.bf16.msra.mxu0 %v2493
      %2507 = vmatprep.subr.bf16.mxu0 0
      %2508 = vmatpush1.bf16.msra.mxu0 %v2492
      %2509 = vmatprep.subr.bf16.mxu0 0
      %2510 = vmatpush1.bf16.msra.mxu0 %v2491
      %2511 = vmatprep.subr.bf16.mxu0 0
      %2512 = vmatpush1.bf16.msra.mxu0 %v2490
      %2513 = vmatprep.subr.bf16.mxu0 0
      %2514 = vmatpush1.bf16.msra.mxu0 %v2489
      %2515 = vmatprep.subr.bf16.mxu0 0
      %2516 = vmatpush1.bf16.msra.mxu0 %v2488
      %2517 = vmatprep.subr.bf16.mxu0 0
      %2518 = vmatpush1.bf16.msra.mxu0 %v2487
      %2519 = vmatprep.subr.bf16.mxu0 0
      %2520 = vmatpush2.bf16.msra.mxu0 0
      %2521 = vmatprep.subr.bf16.mxu0 0
      %2522 = vmatpush2.bf16.msra.mxu0 0
      %2523 = vmatprep.subr.bf16.mxu0 0
      %2524 = vmatpush2.bf16.msra.mxu0 0
      %2525 = vmatprep.subr.bf16.mxu0 0
      %2526 = vmatpush2.bf16.msra.mxu0 0
      %2527 = vmatprep.subr.bf16.mxu0 0
      %2528 = vmatpush2.bf16.msra.mxu0 0
      %2529 = vmatprep.subr.bf16.mxu0 0
      %2530 = vmatpush2.bf16.msra.mxu0 0
      %2531 = vmatprep.subr.bf16.mxu0 0
      %2532 = vmatpush2.bf16.msra.mxu0 0
      %2533 = vmatprep.subr.bf16.mxu0 0
      %2534 = vmatpush2.bf16.msra.mxu0 0
      %2535 = vmatprep.mubr.bf16.mxu0 0
      %2536 = vmatmul.mubr.bf16.gmra.mxu0 %v2431
      %v2537 = vpop.f32.mrf.mxu0
      %v2538 = vadd.f32 %v2453, %v2537
      %v2539 = vpop.f32.mrf.mxu0
      %v2540 = vpop.f32.mrf.mxu0
      %v2541 = vpop.f32.mrf.mxu0
      %2542 = vdwg.mxu0
      %2543 = vst [vmem:[%s628] sm:$0xf] %v2538
      %v2544 = vand.u32 %v1297, 3
      %v2545 = vshra.s32 %v1297, 2
      %vm2546 = vcmp.ge.s32.totalorder %v2545, 9
      %v2547 = vsel %vm2546, 1, 0
      %vm2548 = vcmp.ge.s32.totalorder %v2545, 18
      %v2549 = vsel %vm2548, 1, 0
      %v2550 = vadd.s32 %v2547, %v2549
      %v2551 = vmul.u32 %v2550, 9
      %v2552 = vsub.s32 %v2545, %v2551
      %v2553 = vsub.f32 0.0, %v2538
      %v2554 = vmul.f32 %v2553, 1.442695
      %v2555 = vpow.pop %v2554
      %v2556 = vadd.f32 %v2555, 1.0
      %v2557 = vrcp.pop %v2556
      %vm2558 = vcmp.eq.s32.totalorder %v2552, 0
      %v2559 = vsel %vm2558, %v2544, %v1294
      %v2560 = vcvt.s32.f32 %v2559
      %v2561 = vsub.f32 %v2560, 0.5
      %v2562 = vmul.f32 %v2557, 2.0
      %v2563 = vadd.f32 %v2562, %v2561
      %v2564 = vmul.f32 %v2563, 8.0
      %vm2565 = vcmp.eq.s32.totalorder %v2549, 1
      %vm2566 = vcmp.eq.s32.totalorder %v2547, 1
      %v2567 = vsel %vm2566, 156.0, 116.0
      %v2568 = vsel %vm2565, 373.0, %v2567
      %v2569 = vsel %vm2566, 198.0, 90.0
      %v2570 = vsel %vm2565, 326.0, %v2569
      %v2571 = vmul.f32 %v2562, %v2562
      %vm2572 = vcmp.eq.s32.totalorder %v2552, 2
      %v2573 = vsel %vm2572, %v2568, %v2570
      %v2574 = vmul.f32 %v2571, %v2573
      %vm2575 = vcmp.lt.s32.totalorder %v2552, 2
      %vm2576 = vcmp.lt.s32.totalorder %v2552, 4
      %v2577 = vsel %vm2576, %v2574, %v2557
      %v2578 = vsel %vm2575, %v2564, %v2577
      %2579 = vst [vmem:[%s632] sm:$0xf] %v2578
      %p2580 = scmp.lt.s32.totalorder %s30, 1
      %s2581 = scalar_select %p2580, %s30, 1
      %s2582 = smul.addr %s2581, 8
      %s2583 = smul.addr %s2582, 8
      %s2584 = scalar_lea.vmem %s13, %s2583
      %p2585 = scmp.lt.s32.totalorder %s30, 1
      %s2586 = scalar_select %p2585, %s30, 1
      %s2587 = smul.addr %s2586, 8
      %s2588 = smul.addr %s2587, 8
      %s2589 = scalar_lea.vmem %s14, %s2588
      %p2590 = scmp.lt.s32.totalorder %s30, 1
      %s2591 = scalar_select %p2590, %s30, 1
      %s2592 = smul.addr %s2591, 2
      %s2593 = smul.addr %s2592, 8
      %s2594 = scalar_lea.vmem %s15, %s2593
      %p2595 = scmp.lt.s32.totalorder %s30, 1
      %s2596 = scalar_select %p2595, %s30, 1
      %s2597 = smul.addr %s2596, 2
      %s2598 = smul.addr %s2597, 8
      %s2599 = scalar_lea.vmem %s16, %s2598
      %p2600 = scmp.lt.s32.totalorder %s30, 1
      %s2601 = scalar_select %p2600, %s30, 1
      %s2602 = smul.addr %s2601, 4
      %s2603 = scalar_lea.vmem %s17, %s2602
      %p2604 = scmp.lt.s32.totalorder %s30, 1
      %s2605 = scalar_select %p2604, %s30, 1
      %s2606 = smul.addr %s2605, 4
      %s2607 = scalar_lea.vmem %s18, %s2606
      // Predicated region
      $region73: #{detection_model_forward.1} parent=71 // pred_check
        %p2608 = pneg %p326
      $region74: #{detection_model_forward.1} parent=71 // pred_check_branch
        %2610 = sbr.rel (%p2608) target = $region76
      $region75: #{detection_model_forward.1} parent=71 // pred_region
        _
      $region76: #{detection_model_forward.1} parent=71 // pred_fallthru
        _
      // Predicated region
      $region77: #{detection_model_forward.1} parent=71 // pred_check
        %p2611 = pneg %p352
      $region78: #{detection_model_forward.1} parent=71 // pred_check_branch
        %2613 = sbr.rel (%p2611) target = $region80
      $region79: #{detection_model_forward.1} parent=71 // pred_region
        _
      $region80: #{detection_model_forward.1} parent=71 // pred_fallthru
        _
      // Predicated region
      $region81: #{detection_model_forward.1} parent=71 // pred_check
        %p2614 = pneg %p378
      $region82: #{detection_model_forward.1} parent=71 // pred_check_branch
        %2616 = sbr.rel (%p2614) target = $region84
      $region83: #{detection_model_forward.1} parent=71 // pred_region
        _
      $region84: #{detection_model_forward.1} parent=71 // pred_fallthru
        _
      // Predicated region
      $region85: #{detection_model_forward.1} parent=71 // pred_check
        %p2617 = pneg %p404
      $region86: #{detection_model_forward.1} parent=71 // pred_check_branch
        %2619 = sbr.rel (%p2617) target = $region88
      $region87: #{detection_model_forward.1} parent=71 // pred_region
        _
      $region88: #{detection_model_forward.1} parent=71 // pred_fallthru
        _
      // Predicated region
      $region89: #{detection_model_forward.1} parent=71 // pred_check
        %p2620 = pneg %p430
      $region90: #{detection_model_forward.1} parent=71 // pred_check_branch
        %2622 = sbr.rel (%p2620) target = $region92
      $region91: #{detection_model_forward.1} parent=71 // pred_region
        _
      $region92: #{detection_model_forward.1} parent=71 // pred_fallthru
        _
      // Predicated region
      $region93: #{detection_model_forward.1} parent=71 // pred_check
        %p2623 = pneg %p456
      $region94: #{detection_model_forward.1} parent=71 // pred_check_branch
        %2625 = sbr.rel (%p2623) target = $region96
      $region95: #{detection_model_forward.1} parent=71 // pred_region
        _
      $region96: #{detection_model_forward.1} parent=71 // pred_fallthru
        _
    $region72: #{detection_model_forward.1} parent=5 // pred_fallthru
      _
    %p2626 = scmp.le.s32.totalorder 2, %s25
    // Predicated region
    $region97: #{detection_model_forward.1} parent=5 // pred_check
      %p2627 = pneg %p2626
    $region98: #{detection_model_forward.1} parent=5 // pred_check_branch
      %2629 = sbr.rel (%p2627) target = $region100
    $region99: #{detection_model_forward.1} parent=5 // pred_region
      %s2630 = ssub.s32 %s25, 2
      // Predicated region
      $region101: #{detection_model_forward.1} parent=99 // pred_check
        %p2631 = pneg %p332
      $region102: #{detection_model_forward.1} parent=99 // pred_check_branch
        %2633 = sbr.rel (%p2631) target = $region104
      $region103: #{detection_model_forward.1} parent=99 // pred_region
        %p2634 = scmp.lt.s32.totalorder %s31, 1
        %s2635 = scalar_select %p2634, %s31, 1
        %s2636 = smul.addr %s2635, 8
        %s2637 = smul.addr %s2636, 8
        %s2638 = scalar_lea.vmem %s13, %s2637
      $region104: #{detection_model_forward.1} parent=99 // pred_fallthru
        _
      // Predicated region
      $region105: #{detection_model_forward.1} parent=99 // pred_check
        %p2639 = pneg %p358
      $region106: #{detection_model_forward.1} parent=99 // pred_check_branch
        %2641 = sbr.rel (%p2639) target = $region108
      $region107: #{detection_model_forward.1} parent=99 // pred_region
        %p2642 = scmp.lt.s32.totalorder %s31, 1
        %s2643 = scalar_select %p2642, %s31, 1
        %s2644 = smul.addr %s2643, 8
        %s2645 = smul.addr %s2644, 8
        %s2646 = scalar_lea.vmem %s14, %s2645
      $region108: #{detection_model_forward.1} parent=99 // pred_fallthru
        _
      // Predicated region
      $region109: #{detection_model_forward.1} parent=99 // pred_check
        %p2647 = pneg %p384
      $region110: #{detection_model_forward.1} parent=99 // pred_check_branch
        %2649 = sbr.rel (%p2647) target = $region112
      $region111: #{detection_model_forward.1} parent=99 // pred_region
        %p2650 = scmp.lt.s32.totalorder %s31, 1
        %s2651 = scalar_select %p2650, %s31, 1
        %s2652 = smul.addr %s2651, 2
        %s2653 = smul.addr %s2652, 8
        %s2654 = scalar_lea.vmem %s15, %s2653
      $region112: #{detection_model_forward.1} parent=99 // pred_fallthru
        _
      // Predicated region
      $region113: #{detection_model_forward.1} parent=99 // pred_check
        %p2655 = pneg %p410
      $region114: #{detection_model_forward.1} parent=99 // pred_check_branch
        %2657 = sbr.rel (%p2655) target = $region116
      $region115: #{detection_model_forward.1} parent=99 // pred_region
        %p2658 = scmp.lt.s32.totalorder %s31, 1
        %s2659 = scalar_select %p2658, %s31, 1
        %s2660 = smul.addr %s2659, 2
        %s2661 = smul.addr %s2660, 8
        %s2662 = scalar_lea.vmem %s16, %s2661
      $region116: #{detection_model_forward.1} parent=99 // pred_fallthru
        _
      // Predicated region
      $region117: #{detection_model_forward.1} parent=99 // pred_check
        %p2663 = pneg %p436
      $region118: #{detection_model_forward.1} parent=99 // pred_check_branch
        %2665 = sbr.rel (%p2663) target = $region120
      $region119: #{detection_model_forward.1} parent=99 // pred_region
        %p2666 = scmp.lt.s32.totalorder %s31, 1
        %s2667 = scalar_select %p2666, %s31, 1
        %s2668 = smul.addr %s2667, 4
        %s2669 = scalar_lea.vmem %s17, %s2668
      $region120: #{detection_model_forward.1} parent=99 // pred_fallthru
        _
      // Predicated region
      $region121: #{detection_model_forward.1} parent=99 // pred_check
        %p2670 = pneg %p462
      $region122: #{detection_model_forward.1} parent=99 // pred_check_branch
        %2672 = sbr.rel (%p2670) target = $region124
      $region123: #{detection_model_forward.1} parent=99 // pred_region
        %p2673 = scmp.lt.s32.totalorder %s31, 1
        %s2674 = scalar_select %p2673, %s31, 1
        %s2675 = smul.addr %s2674, 4
        %s2676 = scalar_lea.vmem %s18, %s2675
      $region124: #{detection_model_forward.1} parent=99 // pred_fallthru
        _
    $region100: #{detection_model_forward.1} parent=5 // pred_fallthru
      _
  $region6: #{detection_model_forward.1} parent=0 // loop_footer
    %s29 = sadd.s32 1, %s25
  $region7: #{detection_model_forward.1} parent=0 // loop_footer_branch
    %24 = sbr.rel target = $region3
  $region8: #{detection_model_forward.1} parent=0 // loop_exit
    _

</llo_original>
